<compile_context>
chip_gen: v7x
topology: tpu7x:2x2x1
jax: 0.10.0
libtpu: 0.0.40
codegen_flags: <defaults>
</compile_context>

<pallas_src>
import functools

import jax
import jax.numpy as jnp
from jax.experimental import pallas as pl
from jax.experimental.pallas import tpu as pltpu


def _attn_enc_kernel(num_heads, emb_dim,
                     x_ref,
                     g1_ref, b1_ref, g2_ref, b2_ref,
                     wq_ref, wk_ref, wv_ref,
                     qb_ref, kb_ref, vb_ref,
                     wo_ref, bo_ref,
                     w1_ref, bf1_ref, w2_ref, bf2_ref,
                     o_ref):
    eps = 1e-5
    x = x_ref[0]                                   # (C, N) float32, N in lanes

    # ---- shared GroupNorm(1, C) statistics (per sample, over C*N) ----
    mu = jnp.mean(x)
    xc = x - mu
    var = jnp.mean(xc * xc)
    xc = xc * jax.lax.rsqrt(var + eps)             # normalized, affine-free
    xn1 = xc * g1_ref[...] + b1_ref[...]           # (C,N) * (C,1) lane-broadcast
    xn2 = xc * g2_ref[...] + b2_ref[...]

    # ---- attention branch ----
    # q/k/v projections: (HE, C) @ (C, N) + precomputed coord/bias term (HE, N).
    # The 1/sqrt(E) scale is already folded into wq / qb by the wrapper.
    q = jnp.dot(wq_ref[...], xn1, preferred_element_type=jnp.float32) + qb_ref[...]
    k = jnp.dot(wk_ref[...], xn1, preferred_element_type=jnp.float32) + kb_ref[...]
    v = jnp.dot(wv_ref[...], xn1, preferred_element_type=jnp.float32) + vb_ref[...]

    head_outs = []
    for h in range(num_heads):                     # static unrolled loop
        lo = h * emb_dim
        qh = q[lo:lo + emb_dim, :]                 # (E, N)
        kh = k[lo:lo + emb_dim, :]
        vh = v[lo:lo + emb_dim, :]
        # A[n, m] = q_n . k_m ; only a small (E, N) -> (N, E) transpose.
        a = jnp.dot(qh.T, kh, preferred_element_type=jnp.float32)   # (N, N)
        # torch softmax(dim=-2): normalize over query positions n (axis 0).
        a = a - jnp.max(a, axis=0, keepdims=True)
        p = jnp.exp(a)
        denom = jnp.sum(p, axis=0, keepdims=True)                    # (1, N)
        p = p * pl.reciprocal(denom, approx=True)
        # out_h[e, m] = sum_n v[e, n] * A[n, m]  -> plain matmul, no transpose.
        head_outs.append(jnp.dot(vh, p, preferred_element_type=jnp.float32))  # (E, N)
    attn = jnp.concatenate(head_outs, axis=0)                         # (HE, N)
    attn = jnp.dot(wo_ref[...], attn, preferred_element_type=jnp.float32) + bo_ref[...]

    # ---- feedforward branch ----
    hid = jnp.dot(w1_ref[...], xn2, preferred_element_type=jnp.float32) + bf1_ref[...]
    hid = jnp.maximum(hid, 0.0)
    ff = jnp.dot(w2_ref[...], hid, preferred_element_type=jnp.float32) + bf2_ref[...]

    o_ref[0] = x + attn + ff                        # lane-dense (C, N) store


def attention_encoder_2d(x_nchw, params, *, num_heads, emb_dim, enc_norm):
    B, C, H, W = x_nchw.shape
    N = H * W
    HE = num_heads * emb_dim
    f32 = jnp.float32

    # Channel-major flatten: pure reshape, no transpose.
    x = x_nchw.reshape(B, C, N).astype(f32)

    # Positional coord channels (row, col)/enc_norm as (2, N), batch invariant.
    rows = jax.lax.broadcasted_iota(f32, (H, W), 0).reshape(N)
    cols = jax.lax.broadcasted_iota(f32, (H, W), 1).reshape(N)
    coords = jnp.stack([rows, cols], axis=0) / float(enc_norm)        # (2, N)

    scale = 1.0 / (emb_dim ** 0.5)

    def split_proj(w, b, extra_scale=1.0):
        w = w.astype(f32)
        b = b.astype(f32)[:, None]                                    # (HE, 1)
        w_chan = w[:, :C] * extra_scale                               # (HE, C)
        bias = (w[:, C:] @ coords + b) * extra_scale                  # (HE, N)
        return w_chan, bias

    wq_c, qb = split_proj(params["wq"], params["bq"], scale)          # scale folded into q
    wk_c, kb = split_proj(params["wk"], params["bk"])
    wv_c, vb = split_proj(params["wv"], params["bv"])

    g1 = params["g1"].astype(f32)[:, None]                            # (C, 1)
    b1 = params["bt1"].astype(f32)[:, None]
    g2 = params["g2"].astype(f32)[:, None]
    b2 = params["bt2"].astype(f32)[:, None]
    wo = params["wo"].astype(f32)                                     # (C, HE)
    bo = params["bo"].astype(f32)[:, None]                            # (C, 1)
    w1 = params["w1"].astype(f32)                                     # (FF, C)
    bf1 = params["bf1"].astype(f32)[:, None]                          # (FF, 1)
    w2 = params["w2"].astype(f32)                                     # (C, FF)
    bf2 = params["bf2"].astype(f32)[:, None]                          # (C, 1)

    flat = [g1, b1, g2, b2, wq_c, wk_c, wv_c, qb, kb, vb,
            wo, bo, w1, bf1, w2, bf2]

    def full_spec(p):
        return pl.BlockSpec(p.shape, lambda b: (0, 0))                # all params are 2-D

    kernel = functools.partial(_attn_enc_kernel, num_heads, emb_dim)
    out = pl.pallas_call(
        kernel,
        out_shape=jax.ShapeDtypeStruct((B, C, N), f32),
        grid=(B,),
        in_specs=[pl.BlockSpec((1, C, N), lambda b: (b, 0, 0))]
                 + [full_spec(p) for p in flat],
        out_specs=pl.BlockSpec((1, C, N), lambda b: (b, 0, 0)),
        compiler_params=pltpu.CompilerParams(dimension_semantics=("parallel",)),
    )(x, *flat)

    return out.reshape(B, C, H, W)


def reference(x_nchw, params, *, num_heads, emb_dim, enc_norm):
    """Pure-JAX reference mirroring the PyTorch forward, for correctness check."""
    B, C, H, W = x_nchw.shape
    N = H * W
    x = x_nchw.reshape(B, C, N).astype(jnp.float32)
    rows = jax.lax.broadcasted_iota(jnp.float32, (H, W), 0).reshape(N)
    cols = jax.lax.broadcasted_iota(jnp.float32, (H, W), 1).reshape(N)
    coords = jnp.stack([rows, cols], axis=0) / float(enc_norm)        # (2, N)
    eps = 1e-5

    def gn(t, g, b):
        mu = jnp.mean(t, axis=(1, 2), keepdims=True)
        var = jnp.mean((t - mu) ** 2, axis=(1, 2), keepdims=True)
        return (t - mu) / jnp.sqrt(var + eps) * g[None, :, None] + b[None, :, None]

    def conv1x1(t, w, b):   # channel-major 1x1 conv
        return jnp.einsum("oc,bcn->bon", w, t) + b[None, :, None]

    xn = gn(x, params["g1"], params["bt1"])
    xa = jnp.concatenate([xn, jnp.broadcast_to(coords, (B, 2, N))], axis=1)
    q = conv1x1(xa, params["wq"], params["bq"])                       # (B, HE, N)
    k = conv1x1(xa, params["wk"], params["bk"])
    v = conv1x1(xa, params["wv"], params["bv"])
    E = emb_dim
    outs = []
    for h in range(num_heads):
        qh, kh, vh = (t[:, h * E:(h + 1) * E, :] for t in (q, k, v))
        a = jnp.einsum("ben,bem->bnm", qh, kh) / (E ** 0.5)           # n=query, m=key
        p = jax.nn.softmax(a, axis=-2)                                # torch dim=-2
        outs.append(jnp.einsum("ben,bnm->bem", vh, p))                # value @ attention
    attn = conv1x1(jnp.concatenate(outs, axis=1), params["wo"], params["bo"])
    xn2 = gn(x, params["g2"], params["bt2"])
    ff = conv1x1(jax.nn.relu(conv1x1(xn2, params["w1"], params["bf1"])),
                 params["w2"], params["bf2"])
    return (x + attn + ff).reshape(B, C, H, W)


def init_params(key, C, num_heads, emb_dim, ff_channels):
    HE = num_heads * emb_dim
    Cp2 = C + 2
    keys = jax.random.split(key, 16)

    def w(k, shape, scale=0.1):
        return jax.random.normal(k, shape, jnp.float32) * scale

    return {
        "g1": 1.0 + w(keys[0], (C,), 0.05), "bt1": w(keys[1], (C,), 0.05),
        "wq": w(keys[2], (HE, Cp2)), "bq": w(keys[3], (HE,), 0.02),
        "wk": w(keys[4], (HE, Cp2)), "bk": w(keys[5], (HE,), 0.02),
        "wv": w(keys[6], (HE, Cp2)), "bv": w(keys[7], (HE,), 0.02),
        "wo": w(keys[8], (C, HE)), "bo": w(keys[9], (C,), 0.02),
        "g2": 1.0 + w(keys[10], (C,), 0.05), "bt2": w(keys[11], (C,), 0.05),
        "w1": w(keys[12], (ff_channels, C)), "bf1": w(keys[13], (ff_channels,), 0.02),
        "w2": w(keys[14], (C, ff_channels)), "bf2": w(keys[15], (C,), 0.02),
    }


if __name__ == "__main__":
    # Small config: in_channels=4, num_heads=2, emb_dim=8, enc_norm=16, feedforward=32
    B, C, H, W = 2, 4, 16, 16
    NUM_HEADS, EMB_DIM, ENC_NORM, FF = 2, 8, 16, 32

    key = jax.random.PRNGKey(0)
    kx, kp = jax.random.split(key)
    x = jax.random.normal(kx, (B, C, H, W), jnp.float32)
    params = init_params(kp, C, NUM_HEADS, EMB_DIM, FF)

    out = attention_encoder_2d(x, params, num_heads=NUM_HEADS,
                               emb_dim=EMB_DIM, enc_norm=ENC_NORM)
    out = jax.block_until_ready(out)

    ref = reference(x, params, num_heads=NUM_HEADS, emb_dim=EMB_DIM, enc_norm=ENC_NORM)
    assert out.shape == (B, C, H, W)
    err = float(jnp.max(jnp.abs(out - ref)))
    assert jnp.allclose(out, ref, rtol=2e-3, atol=2e-3), err

    print("KERNEL_OK")
</pallas_src>

<mosaic_0001>
module attributes {stable_mosaic.version = 11 : i64} {
  func.func @_attn_enc_kernel(%arg0: i32, %arg1: memref<1x4x256xf32, #tpu.memory_space<vmem>>, %arg2: memref<4x1xf32, #tpu.memory_space<vmem>>, %arg3: memref<4x1xf32, #tpu.memory_space<vmem>>, %arg4: memref<4x1xf32, #tpu.memory_space<vmem>>, %arg5: memref<4x1xf32, #tpu.memory_space<vmem>>, %arg6: memref<16x4xf32, #tpu.memory_space<vmem>>, %arg7: memref<16x4xf32, #tpu.memory_space<vmem>>, %arg8: memref<16x4xf32, #tpu.memory_space<vmem>>, %arg9: memref<16x256xf32, #tpu.memory_space<vmem>>, %arg10: memref<16x256xf32, #tpu.memory_space<vmem>>, %arg11: memref<16x256xf32, #tpu.memory_space<vmem>>, %arg12: memref<4x16xf32, #tpu.memory_space<vmem>>, %arg13: memref<4x1xf32, #tpu.memory_space<vmem>>, %arg14: memref<32x4xf32, #tpu.memory_space<vmem>>, %arg15: memref<32x1xf32, #tpu.memory_space<vmem>>, %arg16: memref<4x32xf32, #tpu.memory_space<vmem>>, %arg17: memref<4x1xf32, #tpu.memory_space<vmem>>, %arg18: memref<1x4x256xf32, #tpu.memory_space<vmem>>) attributes {dimension_semantics = [#tpu.dimension_semantics<parallel>], iteration_bounds = array<i64: 2>, scalar_prefetch = 0 : i64, scratch_operands = 0 : i64, tpu.core_type = #tpu.core_type<tc>, window_params = [{transform_indices = @transform_0, window_bounds = array<i64: 1, 4, 256>}, {pipeline_mode = #tpu.pipeline_mode<synchronous>, transform_indices = @transform_1, window_bounds = array<i64: 4, 1>}, {pipeline_mode = #tpu.pipeline_mode<synchronous>, transform_indices = @transform_2, window_bounds = array<i64: 4, 1>}, {pipeline_mode = #tpu.pipeline_mode<synchronous>, transform_indices = @transform_3, window_bounds = array<i64: 4, 1>}, {pipeline_mode = #tpu.pipeline_mode<synchronous>, transform_indices = @transform_4, window_bounds = array<i64: 4, 1>}, {pipeline_mode = #tpu.pipeline_mode<synchronous>, transform_indices = @transform_5, window_bounds = array<i64: 16, 4>}, {pipeline_mode = #tpu.pipeline_mode<synchronous>, transform_indices = @transform_6, window_bounds = array<i64: 16, 4>}, {pipeline_mode = #tpu.pipeline_mode<synchronous>, transform_indices = @transform_7, window_bounds = array<i64: 16, 4>}, {pipeline_mode = #tpu.pipeline_mode<synchronous>, transform_indices = @transform_8, window_bounds = array<i64: 16, 256>}, {pipeline_mode = #tpu.pipeline_mode<synchronous>, transform_indices = @transform_9, window_bounds = array<i64: 16, 256>}, {pipeline_mode = #tpu.pipeline_mode<synchronous>, transform_indices = @transform_10, window_bounds = array<i64: 16, 256>}, {pipeline_mode = #tpu.pipeline_mode<synchronous>, transform_indices = @transform_11, window_bounds = array<i64: 4, 16>}, {pipeline_mode = #tpu.pipeline_mode<synchronous>, transform_indices = @transform_12, window_bounds = array<i64: 4, 1>}, {pipeline_mode = #tpu.pipeline_mode<synchronous>, transform_indices = @transform_13, window_bounds = array<i64: 32, 4>}, {pipeline_mode = #tpu.pipeline_mode<synchronous>, transform_indices = @transform_14, window_bounds = array<i64: 32, 1>}, {pipeline_mode = #tpu.pipeline_mode<synchronous>, transform_indices = @transform_15, window_bounds = array<i64: 4, 32>}, {pipeline_mode = #tpu.pipeline_mode<synchronous>, transform_indices = @transform_16, window_bounds = array<i64: 4, 1>}, {transform_indices = @transform_17, window_bounds = array<i64: 1, 4, 256>}]} {
    %c0 = arith.constant 0 : index
    %c0_0 = arith.constant 0 : index
    %c0_1 = arith.constant 0 : index
    %0 = vector.load %arg1[%c0, %c0_0, %c0_1] : memref<1x4x256xf32, #tpu.memory_space<vmem>>, vector<1x4x256xf32>
    %1 = vector.shape_cast %0 : vector<1x4x256xf32> to vector<4x256xf32>
    %2 = vector.shape_cast %1 : vector<4x256xf32> to vector<1x4x256xf32>
    %cst = arith.constant dense<0.000000e+00> : vector<1xf32>
    %3 = vector.multi_reduction <add>, %2, %cst [1, 2] : vector<1x4x256xf32> to vector<1xf32>
    %4 = vector.shape_cast %3 : vector<1xf32> to vector<1x1x1xf32>
    %5 = vector.extract %4[0, 0, 0] : f32 from vector<1x1x1xf32>
    %cst_2 = arith.constant 1.024000e+03 : f32
    %6 = arith.divf %5, %cst_2 : f32
    %7 = vector.broadcast %6 : f32 to vector<4x256xf32>
    %8 = arith.subf %1, %7 : vector<4x256xf32>
    %9 = arith.mulf %8, %8 : vector<4x256xf32>
    %10 = vector.shape_cast %9 : vector<4x256xf32> to vector<1x4x256xf32>
    %cst_3 = arith.constant dense<0.000000e+00> : vector<1xf32>
    %11 = vector.multi_reduction <add>, %10, %cst_3 [1, 2] : vector<1x4x256xf32> to vector<1xf32>
    %12 = vector.shape_cast %11 : vector<1xf32> to vector<1x1x1xf32>
    %13 = vector.extract %12[0, 0, 0] : f32 from vector<1x1x1xf32>
    %cst_4 = arith.constant 1.024000e+03 : f32
    %14 = arith.divf %13, %cst_4 : f32
    %cst_5 = arith.constant 9.99999974E-6 : f32
    %15 = arith.addf %14, %cst_5 : f32
    %16 = math.rsqrt %15 : f32
    %17 = vector.broadcast %16 : f32 to vector<4x256xf32>
    %18 = arith.mulf %8, %17 : vector<4x256xf32>
    %c0_6 = arith.constant 0 : index
    %c0_7 = arith.constant 0 : index
    %19 = vector.load %arg2[%c0_6, %c0_7] : memref<4x1xf32, #tpu.memory_space<vmem>>, vector<4x1xf32>
    %20 = vector.broadcast %19 : vector<4x1xf32> to vector<4x256xf32>
    %21 = arith.mulf %18, %20 : vector<4x256xf32>
    %c0_8 = arith.constant 0 : index
    %c0_9 = arith.constant 0 : index
    %22 = vector.load %arg3[%c0_8, %c0_9] : memref<4x1xf32, #tpu.memory_space<vmem>>, vector<4x1xf32>
    %23 = vector.broadcast %22 : vector<4x1xf32> to vector<4x256xf32>
    %24 = arith.addf %21, %23 : vector<4x256xf32>
    %c0_10 = arith.constant 0 : index
    %c0_11 = arith.constant 0 : index
    %25 = vector.load %arg4[%c0_10, %c0_11] : memref<4x1xf32, #tpu.memory_space<vmem>>, vector<4x1xf32>
    %26 = vector.broadcast %25 : vector<4x1xf32> to vector<4x256xf32>
    %27 = arith.mulf %18, %26 : vector<4x256xf32>
    %c0_12 = arith.constant 0 : index
    %c0_13 = arith.constant 0 : index
    %28 = vector.load %arg5[%c0_12, %c0_13] : memref<4x1xf32, #tpu.memory_space<vmem>>, vector<4x1xf32>
    %29 = vector.broadcast %28 : vector<4x1xf32> to vector<4x256xf32>
    %30 = arith.addf %27, %29 : vector<4x256xf32>
    %c0_14 = arith.constant 0 : index
    %c0_15 = arith.constant 0 : index
    %31 = vector.load %arg6[%c0_14, %c0_15] : memref<16x4xf32, #tpu.memory_space<vmem>>, vector<16x4xf32>
    %cst_16 = arith.constant dense<0.000000e+00> : vector<16x256xf32>
    %32 = tpu.matmul %31, %24, %cst_16 {dimension_numbers = #tpu.dot_dimension_numbers<[1], [0], [0], [1], [0, 0, 1, 1], [], []>} : vector<16x4xf32>, vector<4x256xf32>, vector<16x256xf32> -> vector<16x256xf32>
    %c0_17 = arith.constant 0 : index
    %c0_18 = arith.constant 0 : index
    %33 = vector.load %arg9[%c0_17, %c0_18] : memref<16x256xf32, #tpu.memory_space<vmem>>, vector<16x256xf32>
    %34 = arith.addf %32, %33 : vector<16x256xf32>
    %c0_19 = arith.constant 0 : index
    %c0_20 = arith.constant 0 : index
    %35 = vector.load %arg7[%c0_19, %c0_20] : memref<16x4xf32, #tpu.memory_space<vmem>>, vector<16x4xf32>
    %cst_21 = arith.constant dense<0.000000e+00> : vector<16x256xf32>
    %36 = tpu.matmul %35, %24, %cst_21 {dimension_numbers = #tpu.dot_dimension_numbers<[1], [0], [0], [1], [0, 0, 1, 1], [], []>} : vector<16x4xf32>, vector<4x256xf32>, vector<16x256xf32> -> vector<16x256xf32>
    %c0_22 = arith.constant 0 : index
    %c0_23 = arith.constant 0 : index
    %37 = vector.load %arg10[%c0_22, %c0_23] : memref<16x256xf32, #tpu.memory_space<vmem>>, vector<16x256xf32>
    %38 = arith.addf %36, %37 : vector<16x256xf32>
    %c0_24 = arith.constant 0 : index
    %c0_25 = arith.constant 0 : index
    %39 = vector.load %arg8[%c0_24, %c0_25] : memref<16x4xf32, #tpu.memory_space<vmem>>, vector<16x4xf32>
    %cst_26 = arith.constant dense<0.000000e+00> : vector<16x256xf32>
    %40 = tpu.matmul %39, %24, %cst_26 {dimension_numbers = #tpu.dot_dimension_numbers<[1], [0], [0], [1], [0, 0, 1, 1], [], []>} : vector<16x4xf32>, vector<4x256xf32>, vector<16x256xf32> -> vector<16x256xf32>
    %c0_27 = arith.constant 0 : index
    %c0_28 = arith.constant 0 : index
    %41 = vector.load %arg11[%c0_27, %c0_28] : memref<16x256xf32, #tpu.memory_space<vmem>>, vector<16x256xf32>
    %42 = arith.addf %40, %41 : vector<16x256xf32>
    %43 = vector.extract_strided_slice %34 {offsets = [0, 0], sizes = [8, 256], strides = [1, 1]} : vector<16x256xf32> to vector<8x256xf32>
    %44 = vector.extract_strided_slice %38 {offsets = [0, 0], sizes = [8, 256], strides = [1, 1]} : vector<16x256xf32> to vector<8x256xf32>
    %45 = vector.extract_strided_slice %42 {offsets = [0, 0], sizes = [8, 256], strides = [1, 1]} : vector<16x256xf32> to vector<8x256xf32>
    %46 = tpu.transpose %43, [1, 0] : vector<8x256xf32> -> vector<256x8xf32>
    %cst_29 = arith.constant dense<0.000000e+00> : vector<256x256xf32>
    %47 = tpu.matmul %46, %44, %cst_29 {dimension_numbers = #tpu.dot_dimension_numbers<[1], [0], [0], [1], [0, 0, 1, 1], [], []>} : vector<256x8xf32>, vector<8x256xf32>, vector<256x256xf32> -> vector<256x256xf32>
    %cst_30 = arith.constant dense<0xFF800000> : vector<256xf32>
    %48 = vector.multi_reduction <maximumf>, %47, %cst_30 [0] : vector<256x256xf32> to vector<256xf32>
    %49 = vector.shape_cast %48 : vector<256xf32> to vector<1x256xf32>
    %50 = vector.broadcast %49 : vector<1x256xf32> to vector<256x256xf32>
    %51 = arith.subf %47, %50 : vector<256x256xf32>
    %52 = math.exp %51 : vector<256x256xf32>
    %cst_31 = arith.constant dense<0.000000e+00> : vector<256xf32>
    %53 = vector.multi_reduction <add>, %52, %cst_31 [0] : vector<256x256xf32> to vector<256xf32>
    %54 = vector.shape_cast %53 : vector<256xf32> to vector<1x256xf32>
    %55 = tpu.reciprocal %54 {approx = true} : vector<1x256xf32> -> vector<1x256xf32>
    %56 = vector.broadcast %55 : vector<1x256xf32> to vector<256x256xf32>
    %57 = arith.mulf %52, %56 : vector<256x256xf32>
    %cst_32 = arith.constant dense<0.000000e+00> : vector<8x256xf32>
    %58 = tpu.matmul %45, %57, %cst_32 {dimension_numbers = #tpu.dot_dimension_numbers<[1], [0], [0], [1], [0, 0, 1, 1], [], []>} : vector<8x256xf32>, vector<256x256xf32>, vector<8x256xf32> -> vector<8x256xf32>
    %59 = vector.extract_strided_slice %34 {offsets = [8, 0], sizes = [8, 256], strides = [1, 1]} : vector<16x256xf32> to vector<8x256xf32>
    %60 = vector.extract_strided_slice %38 {offsets = [8, 0], sizes = [8, 256], strides = [1, 1]} : vector<16x256xf32> to vector<8x256xf32>
    %61 = vector.extract_strided_slice %42 {offsets = [8, 0], sizes = [8, 256], strides = [1, 1]} : vector<16x256xf32> to vector<8x256xf32>
    %62 = tpu.transpose %59, [1, 0] : vector<8x256xf32> -> vector<256x8xf32>
    %cst_33 = arith.constant dense<0.000000e+00> : vector<256x256xf32>
    %63 = tpu.matmul %62, %60, %cst_33 {dimension_numbers = #tpu.dot_dimension_numbers<[1], [0], [0], [1], [0, 0, 1, 1], [], []>} : vector<256x8xf32>, vector<8x256xf32>, vector<256x256xf32> -> vector<256x256xf32>
    %cst_34 = arith.constant dense<0xFF800000> : vector<256xf32>
    %64 = vector.multi_reduction <maximumf>, %63, %cst_34 [0] : vector<256x256xf32> to vector<256xf32>
    %65 = vector.shape_cast %64 : vector<256xf32> to vector<1x256xf32>
    %66 = vector.broadcast %65 : vector<1x256xf32> to vector<256x256xf32>
    %67 = arith.subf %63, %66 : vector<256x256xf32>
    %68 = math.exp %67 : vector<256x256xf32>
    %cst_35 = arith.constant dense<0.000000e+00> : vector<256xf32>
    %69 = vector.multi_reduction <add>, %68, %cst_35 [0] : vector<256x256xf32> to vector<256xf32>
    %70 = vector.shape_cast %69 : vector<256xf32> to vector<1x256xf32>
    %71 = tpu.reciprocal %70 {approx = true} : vector<1x256xf32> -> vector<1x256xf32>
    %72 = vector.broadcast %71 : vector<1x256xf32> to vector<256x256xf32>
    %73 = arith.mulf %68, %72 : vector<256x256xf32>
    %cst_36 = arith.constant dense<0.000000e+00> : vector<8x256xf32>
    %74 = tpu.matmul %61, %73, %cst_36 {dimension_numbers = #tpu.dot_dimension_numbers<[1], [0], [0], [1], [0, 0, 1, 1], [], []>} : vector<8x256xf32>, vector<256x256xf32>, vector<8x256xf32> -> vector<8x256xf32>
    %75 = tpu.concatenate %58, %74 in 0 : vector<8x256xf32>, vector<8x256xf32> -> vector<16x256xf32>
    %c0_37 = arith.constant 0 : index
    %c0_38 = arith.constant 0 : index
    %76 = vector.load %arg12[%c0_37, %c0_38] : memref<4x16xf32, #tpu.memory_space<vmem>>, vector<4x16xf32>
    %cst_39 = arith.constant dense<0.000000e+00> : vector<4x256xf32>
    %77 = tpu.matmul %76, %75, %cst_39 {dimension_numbers = #tpu.dot_dimension_numbers<[1], [0], [0], [1], [0, 0, 1, 1], [], []>} : vector<4x16xf32>, vector<16x256xf32>, vector<4x256xf32> -> vector<4x256xf32>
    %c0_40 = arith.constant 0 : index
    %c0_41 = arith.constant 0 : index
    %78 = vector.load %arg13[%c0_40, %c0_41] : memref<4x1xf32, #tpu.memory_space<vmem>>, vector<4x1xf32>
    %79 = vector.broadcast %78 : vector<4x1xf32> to vector<4x256xf32>
    %80 = arith.addf %77, %79 : vector<4x256xf32>
    %c0_42 = arith.constant 0 : index
    %c0_43 = arith.constant 0 : index
    %81 = vector.load %arg14[%c0_42, %c0_43] : memref<32x4xf32, #tpu.memory_space<vmem>>, vector<32x4xf32>
    %cst_44 = arith.constant dense<0.000000e+00> : vector<32x256xf32>
    %82 = tpu.matmul %81, %30, %cst_44 {dimension_numbers = #tpu.dot_dimension_numbers<[1], [0], [0], [1], [0, 0, 1, 1], [], []>} : vector<32x4xf32>, vector<4x256xf32>, vector<32x256xf32> -> vector<32x256xf32>
    %c0_45 = arith.constant 0 : index
    %c0_46 = arith.constant 0 : index
    %83 = vector.load %arg15[%c0_45, %c0_46] : memref<32x1xf32, #tpu.memory_space<vmem>>, vector<32x1xf32>
    %84 = vector.broadcast %83 : vector<32x1xf32> to vector<32x256xf32>
    %85 = arith.addf %82, %84 : vector<32x256xf32>
    %cst_47 = arith.constant 0.000000e+00 : f32
    %86 = vector.broadcast %cst_47 : f32 to vector<32x256xf32>
    %87 = arith.maximumf %85, %86 : vector<32x256xf32>
    %c0_48 = arith.constant 0 : index
    %c0_49 = arith.constant 0 : index
    %88 = vector.load %arg16[%c0_48, %c0_49] : memref<4x32xf32, #tpu.memory_space<vmem>>, vector<4x32xf32>
    %cst_50 = arith.constant dense<0.000000e+00> : vector<4x256xf32>
    %89 = tpu.matmul %88, %87, %cst_50 {dimension_numbers = #tpu.dot_dimension_numbers<[1], [0], [0], [1], [0, 0, 1, 1], [], []>} : vector<4x32xf32>, vector<32x256xf32>, vector<4x256xf32> -> vector<4x256xf32>
    %c0_51 = arith.constant 0 : index
    %c0_52 = arith.constant 0 : index
    %90 = vector.load %arg17[%c0_51, %c0_52] : memref<4x1xf32, #tpu.memory_space<vmem>>, vector<4x1xf32>
    %91 = vector.broadcast %90 : vector<4x1xf32> to vector<4x256xf32>
    %92 = arith.addf %89, %91 : vector<4x256xf32>
    %93 = arith.addf %1, %80 : vector<4x256xf32>
    %94 = arith.addf %93, %92 : vector<4x256xf32>
    %c0_53 = arith.constant 0 : index
    %c0_54 = arith.constant 0 : index
    %c0_55 = arith.constant 0 : index
    %95 = vector.load %arg18[%c0_53, %c0_54, %c0_55] : memref<1x4x256xf32, #tpu.memory_space<vmem>>, vector<1x4x256xf32>
    %96 = vector.shape_cast %95 : vector<1x4x256xf32> to vector<4x256xf32>
    %97 = vector.shape_cast %94 : vector<4x256xf32> to vector<1x4x256xf32>
    tpu.vector_store %arg18[%c0_53, %c0_54, %c0_55], %97 {strides = array<i32>} : memref<1x4x256xf32, #tpu.memory_space<vmem>>, vector<1x4x256xf32>,
    return
  }
  func.func @transform_0(%arg0: i32) -> (i32, i32, i32) {
    %c0_i32 = arith.constant 0 : i32
    %c0_i32_0 = arith.constant 0 : i32
    %c0_i32_1 = arith.constant 0 : i32
    return %arg0, %c0_i32, %c0_i32_0 : i32, i32, i32
  }
  func.func @transform_1(%arg0: i32) -> (i32, i32) {
    %c0_i32 = arith.constant 0 : i32
    %c0_i32_0 = arith.constant 0 : i32
    %c0_i32_1 = arith.constant 0 : i32
    return %c0_i32, %c0_i32_0 : i32, i32
  }
  func.func @transform_2(%arg0: i32) -> (i32, i32) {
    %c0_i32 = arith.constant 0 : i32
    %c0_i32_0 = arith.constant 0 : i32
    %c0_i32_1 = arith.constant 0 : i32
    return %c0_i32, %c0_i32_0 : i32, i32
  }
  func.func @transform_3(%arg0: i32) -> (i32, i32) {
    %c0_i32 = arith.constant 0 : i32
    %c0_i32_0 = arith.constant 0 : i32
    %c0_i32_1 = arith.constant 0 : i32
    return %c0_i32, %c0_i32_0 : i32, i32
  }
  func.func @transform_4(%arg0: i32) -> (i32, i32) {
    %c0_i32 = arith.constant 0 : i32
    %c0_i32_0 = arith.constant 0 : i32
    %c0_i32_1 = arith.constant 0 : i32
    return %c0_i32, %c0_i32_0 : i32, i32
  }
  func.func @transform_5(%arg0: i32) -> (i32, i32) {
    %c0_i32 = arith.constant 0 : i32
    %c0_i32_0 = arith.constant 0 : i32
    %c0_i32_1 = arith.constant 0 : i32
    return %c0_i32, %c0_i32_0 : i32, i32
  }
  func.func @transform_6(%arg0: i32) -> (i32, i32) {
    %c0_i32 = arith.constant 0 : i32
    %c0_i32_0 = arith.constant 0 : i32
    %c0_i32_1 = arith.constant 0 : i32
    return %c0_i32, %c0_i32_0 : i32, i32
  }
  func.func @transform_7(%arg0: i32) -> (i32, i32) {
    %c0_i32 = arith.constant 0 : i32
    %c0_i32_0 = arith.constant 0 : i32
    %c0_i32_1 = arith.constant 0 : i32
    return %c0_i32, %c0_i32_0 : i32, i32
  }
  func.func @transform_8(%arg0: i32) -> (i32, i32) {
    %c0_i32 = arith.constant 0 : i32
    %c0_i32_0 = arith.constant 0 : i32
    %c0_i32_1 = arith.constant 0 : i32
    return %c0_i32, %c0_i32_0 : i32, i32
  }
  func.func @transform_9(%arg0: i32) -> (i32, i32) {
    %c0_i32 = arith.constant 0 : i32
    %c0_i32_0 = arith.constant 0 : i32
    %c0_i32_1 = arith.constant 0 : i32
    return %c0_i32, %c0_i32_0 : i32, i32
  }
  func.func @transform_10(%arg0: i32) -> (i32, i32) {
    %c0_i32 = arith.constant 0 : i32
    %c0_i32_0 = arith.constant 0 : i32
    %c0_i32_1 = arith.constant 0 : i32
    return %c0_i32, %c0_i32_0 : i32, i32
  }
  func.func @transform_11(%arg0: i32) -> (i32, i32) {
    %c0_i32 = arith.constant 0 : i32
    %c0_i32_0 = arith.constant 0 : i32
    %c0_i32_1 = arith.constant 0 : i32
    return %c0_i32, %c0_i32_0 : i32, i32
  }
  func.func @transform_12(%arg0: i32) -> (i32, i32) {
    %c0_i32 = arith.constant 0 : i32
    %c0_i32_0 = arith.constant 0 : i32
    %c0_i32_1 = arith.constant 0 : i32
    return %c0_i32, %c0_i32_0 : i32, i32
  }
  func.func @transform_13(%arg0: i32) -> (i32, i32) {
    %c0_i32 = arith.constant 0 : i32
    %c0_i32_0 = arith.constant 0 : i32
    %c0_i32_1 = arith.constant 0 : i32
    return %c0_i32, %c0_i32_0 : i32, i32
  }
  func.func @transform_14(%arg0: i32) -> (i32, i32) {
    %c0_i32 = arith.constant 0 : i32
    %c0_i32_0 = arith.constant 0 : i32
    %c0_i32_1 = arith.constant 0 : i32
    return %c0_i32, %c0_i32_0 : i32, i32
  }
  func.func @transform_15(%arg0: i32) -> (i32, i32) {
    %c0_i32 = arith.constant 0 : i32
    %c0_i32_0 = arith.constant 0 : i32
    %c0_i32_1 = arith.constant 0 : i32
    return %c0_i32, %c0_i32_0 : i32, i32
  }
  func.func @transform_16(%arg0: i32) -> (i32, i32) {
    %c0_i32 = arith.constant 0 : i32
    %c0_i32_0 = arith.constant 0 : i32
    %c0_i32_1 = arith.constant 0 : i32
    return %c0_i32, %c0_i32_0 : i32, i32
  }
  func.func @transform_17(%arg0: i32) -> (i32, i32, i32) {
    %c0_i32 = arith.constant 0 : i32
    %c0_i32_0 = arith.constant 0 : i32
    %c0_i32_1 = arith.constant 0 : i32
    return %arg0, %c0_i32, %c0_i32_0 : i32, i32, i32
  }
}

</mosaic_0001>

<llo_original>
// kernel: tpu_custom_call.1
$region0: #{tpu_custom_call.1}
  #allocation0 [shape = 'u32[]', space=smem, size = 0x4, offset = 0x4, fixed_abs, tag = 'smem constant byte address 0x4 - core index']
  #allocation1 [shape = 'u32[144,128]{1,0:T(1,128)}', space=vmem, size = 0x12000, scoped, tag = 'internal scratch']
  %s0 = inlined_call_operand.vmem [shape: f32[2,4,256], index: 0, kind: input, shape index: {}]
  %s1 = inlined_call_operand.vmem [shape: f32[4,1], index: 1, kind: input, shape index: {}]
  %s2 = inlined_call_operand.vmem [shape: f32[4,1], index: 2, kind: input, shape index: {}]
  %s3 = inlined_call_operand.vmem [shape: f32[4,1], index: 3, kind: input, shape index: {}]
  %s4 = inlined_call_operand.vmem [shape: f32[4,1], index: 4, kind: input, shape index: {}]
  %s5 = inlined_call_operand.vmem [shape: f32[16,4], index: 5, kind: input, shape index: {}]
  %s6 = inlined_call_operand.vmem [shape: f32[16,4], index: 6, kind: input, shape index: {}]
  %s7 = inlined_call_operand.vmem [shape: f32[16,4], index: 7, kind: input, shape index: {}]
  %s8 = inlined_call_operand.vmem [shape: f32[16,256], index: 8, kind: input, shape index: {}]
  %s9 = inlined_call_operand.vmem [shape: f32[16,256], index: 9, kind: input, shape index: {}]
  %s10 = inlined_call_operand.vmem [shape: f32[16,256], index: 10, kind: input, shape index: {}]
  %s11 = inlined_call_operand.vmem [shape: f32[4,16], index: 11, kind: input, shape index: {}]
  %s12 = inlined_call_operand.vmem [shape: f32[4,1], index: 12, kind: input, shape index: {}]
  %s13 = inlined_call_operand.vmem [shape: f32[32,4], index: 13, kind: input, shape index: {}]
  %s14 = inlined_call_operand.vmem [shape: f32[32,1], index: 14, kind: input, shape index: {}]
  %s15 = inlined_call_operand.vmem [shape: f32[4,32], index: 15, kind: input, shape index: {}]
  %s16 = inlined_call_operand.vmem [shape: f32[4,1], index: 16, kind: input, shape index: {}]
  %s17 = inlined_call_operand.hbm [shape: f32[2,4,256], index: 17, kind: output, shape index: {}]
  %s18 = sld [smem:[#allocation0]]
  $region101: #{tpu_custom_call.1} parent=0
    _
  %s20 = ssub.s32 1, %s18
  %s21 = scalar_select 0, %s20, %s18
  $region1: #{tpu_custom_call.1} parent=0
    #allocation2 [shape = 'u8[8192]{0}', space=vmem, size = 0x2000, scoped, tag = 'output window, operand 0']
    #allocation3 [shape = 's32[2]{0}', space=sflag, size = 0x8, scoped, tag = 'scoped memory for tpu_custom_call.1']
    %22 = vsyncpa [#allocation3], 0
    %s23 = scalar_lea.sflag [#allocation3], 1
    %24 = vsyncpa %s23, 0
    loop: start=0, step=1, limit=4
    $region2: #{tpu_custom_call.1} parent=1 // loop_pre_header
      _
    $region3: #{tpu_custom_call.1} parent=1 // loop_header
      %s26 = sphi 0, %s30
      %p27 = scmp.ge.s32.totalorder %s26, 4
      %s36 = sphi 0, %s38
      %s39 = sphi 0, %s36
      %s40 = sphi 0, %s39
      %s56 = sphi 0, %s40
      %s60 = sphi 0, %s60
      %s62 = sphi 0, %s60
      %s63 = sphi 0, %s62
      %s77 = sphi 0, %s63
      %s81 = sphi 0, %s81
      %s83 = sphi 0, %s81
      %s84 = sphi 0, %s83
      %s98 = sphi 0, %s84
      %s102 = sphi 0, %s102
      %s104 = sphi 0, %s102
      %s105 = sphi 0, %s104
      %s119 = sphi 0, %s105
      %s123 = sphi 0, %s123
      %s125 = sphi 0, %s123
      %s126 = sphi 0, %s125
      %s140 = sphi 0, %s126
      %s144 = sphi 0, %s144
      %s146 = sphi 0, %s144
      %s147 = sphi 0, %s146
      %s161 = sphi 0, %s147
      %s165 = sphi 0, %s165
      %s167 = sphi 0, %s165
      %s168 = sphi 0, %s167
      %s182 = sphi 0, %s168
      %s186 = sphi 0, %s186
      %s188 = sphi 0, %s186
      %s189 = sphi 0, %s188
      %s203 = sphi 0, %s189
      %s207 = sphi 0, %s207
      %s209 = sphi 0, %s207
      %s210 = sphi 0, %s209
      %s224 = sphi 0, %s210
      %s228 = sphi 0, %s228
      %s230 = sphi 0, %s228
      %s231 = sphi 0, %s230
      %s245 = sphi 0, %s231
      %s249 = sphi 0, %s249
      %s251 = sphi 0, %s249
      %s252 = sphi 0, %s251
      %s266 = sphi 0, %s252
      %s270 = sphi 0, %s270
      %s272 = sphi 0, %s270
      %s273 = sphi 0, %s272
      %s287 = sphi 0, %s273
      %s291 = sphi 0, %s291
      %s293 = sphi 0, %s291
      %s294 = sphi 0, %s293
      %s308 = sphi 0, %s294
      %s312 = sphi 0, %s312
      %s314 = sphi 0, %s312
      %s315 = sphi 0, %s314
      %s329 = sphi 0, %s315
      %s333 = sphi 0, %s333
      %s335 = sphi 0, %s333
      %s336 = sphi 0, %s335
      %s350 = sphi 0, %s336
      %s354 = sphi 0, %s354
      %s356 = sphi 0, %s354
      %s357 = sphi 0, %s356
      %s371 = sphi 0, %s357
      %s375 = sphi 0, %s375
      %s377 = sphi 0, %s375
      %s378 = sphi 0, %s377
      %s392 = sphi 0, %s378
      %s398 = sphi 0, %s400
      %s401 = sphi 0, %s398
      %s402 = sphi 0, %s401
      %s418 = sphi 0, %s402
    $region4: #{tpu_custom_call.1} parent=1 // loop_header_branch
      %29 = sbr.rel (%p27) target = $region8
    $region5: #{tpu_custom_call.1} parent=1 // loop_body
      %s31 = ssub.s32 %s26, 1
      %s32 = ssub.s32 %s26, 2
      %s33 = sadd.s32 %s26, 1
      %s34 = ssub.s32 %s26, %s33
      %p35 = scmp.eq.s32.totalorder %s34, 0
      %s37 = sadd.s32 %s36, 1
      %s38 = scalar_select %p35, %s36, %s37
      %p41 = pneg %p35
      %p42 = scmp.eq.s32.totalorder %s26, 1
      %p43 = por %p41, %p42
      %p44 = scmp.ne.s32.totalorder %s36, %s39
      %p45 = scmp.eq.s32.totalorder %s26, 0
      %p46 = por %p44, %p45
      %p47 = scmp.ne.s32.totalorder %s36, %s39
      %p48 = scmp.eq.s32.totalorder %s31, 1
      %p49 = por %p47, %p48
      %p50 = scmp.ne.s32.totalorder %s39, %s40
      %p51 = scmp.eq.s32.totalorder %s31, 0
      %p52 = por %p50, %p51
      %p53 = scmp.ne.s32.totalorder %s39, %s40
      %p54 = scmp.eq.s32.totalorder %s32, 1
      %p55 = por %p53, %p54
      %p57 = scmp.ne.s32.totalorder %s40, %s56
      %p58 = scmp.eq.s32.totalorder %s32, 0
      %p59 = por %p57, %p58
      %s61 = sadd.s32 %s60, 1
      %p64 = scmp.eq.s32.totalorder %s26, 1
      %p65 = scmp.ne.s32.totalorder %s60, %s62
      %p66 = scmp.eq.s32.totalorder %s26, 0
      %p67 = por %p65, %p66
      %p68 = scmp.ne.s32.totalorder %s60, %s62
      %p69 = scmp.eq.s32.totalorder %s31, 1
      %p70 = por %p68, %p69
      %p71 = scmp.ne.s32.totalorder %s62, %s63
      %p72 = scmp.eq.s32.totalorder %s31, 0
      %p73 = por %p71, %p72
      %p74 = scmp.ne.s32.totalorder %s62, %s63
      %p75 = scmp.eq.s32.totalorder %s32, 1
      %p76 = por %p74, %p75
      %p78 = scmp.ne.s32.totalorder %s63, %s77
      %p79 = scmp.eq.s32.totalorder %s32, 0
      %p80 = por %p78, %p79
      %s82 = sadd.s32 %s81, 1
      %p85 = scmp.eq.s32.totalorder %s26, 1
      %p86 = scmp.ne.s32.totalorder %s81, %s83
      %p87 = scmp.eq.s32.totalorder %s26, 0
      %p88 = por %p86, %p87
      %p89 = scmp.ne.s32.totalorder %s81, %s83
      %p90 = scmp.eq.s32.totalorder %s31, 1
      %p91 = por %p89, %p90
      %p92 = scmp.ne.s32.totalorder %s83, %s84
      %p93 = scmp.eq.s32.totalorder %s31, 0
      %p94 = por %p92, %p93
      %p95 = scmp.ne.s32.totalorder %s83, %s84
      %p96 = scmp.eq.s32.totalorder %s32, 1
      %p97 = por %p95, %p96
      %p99 = scmp.ne.s32.totalorder %s84, %s98
      %p100 = scmp.eq.s32.totalorder %s32, 0
      %p101 = por %p99, %p100
      %s103 = sadd.s32 %s102, 1
      %p106 = scmp.eq.s32.totalorder %s26, 1
      %p107 = scmp.ne.s32.totalorder %s102, %s104
      %p108 = scmp.eq.s32.totalorder %s26, 0
      %p109 = por %p107, %p108
      %p110 = scmp.ne.s32.totalorder %s102, %s104
      %p111 = scmp.eq.s32.totalorder %s31, 1
      %p112 = por %p110, %p111
      %p113 = scmp.ne.s32.totalorder %s104, %s105
      %p114 = scmp.eq.s32.totalorder %s31, 0
      %p115 = por %p113, %p114
      %p116 = scmp.ne.s32.totalorder %s104, %s105
      %p117 = scmp.eq.s32.totalorder %s32, 1
      %p118 = por %p116, %p117
      %p120 = scmp.ne.s32.totalorder %s105, %s119
      %p121 = scmp.eq.s32.totalorder %s32, 0
      %p122 = por %p120, %p121
      %s124 = sadd.s32 %s123, 1
      %p127 = scmp.eq.s32.totalorder %s26, 1
      %p128 = scmp.ne.s32.totalorder %s123, %s125
      %p129 = scmp.eq.s32.totalorder %s26, 0
      %p130 = por %p128, %p129
      %p131 = scmp.ne.s32.totalorder %s123, %s125
      %p132 = scmp.eq.s32.totalorder %s31, 1
      %p133 = por %p131, %p132
      %p134 = scmp.ne.s32.totalorder %s125, %s126
      %p135 = scmp.eq.s32.totalorder %s31, 0
      %p136 = por %p134, %p135
      %p137 = scmp.ne.s32.totalorder %s125, %s126
      %p138 = scmp.eq.s32.totalorder %s32, 1
      %p139 = por %p137, %p138
      %p141 = scmp.ne.s32.totalorder %s126, %s140
      %p142 = scmp.eq.s32.totalorder %s32, 0
      %p143 = por %p141, %p142
      %s145 = sadd.s32 %s144, 1
      %p148 = scmp.eq.s32.totalorder %s26, 1
      %p149 = scmp.ne.s32.totalorder %s144, %s146
      %p150 = scmp.eq.s32.totalorder %s26, 0
      %p151 = por %p149, %p150
      %p152 = scmp.ne.s32.totalorder %s144, %s146
      %p153 = scmp.eq.s32.totalorder %s31, 1
      %p154 = por %p152, %p153
      %p155 = scmp.ne.s32.totalorder %s146, %s147
      %p156 = scmp.eq.s32.totalorder %s31, 0
      %p157 = por %p155, %p156
      %p158 = scmp.ne.s32.totalorder %s146, %s147
      %p159 = scmp.eq.s32.totalorder %s32, 1
      %p160 = por %p158, %p159
      %p162 = scmp.ne.s32.totalorder %s147, %s161
      %p163 = scmp.eq.s32.totalorder %s32, 0
      %p164 = por %p162, %p163
      %s166 = sadd.s32 %s165, 1
      %p169 = scmp.eq.s32.totalorder %s26, 1
      %p170 = scmp.ne.s32.totalorder %s165, %s167
      %p171 = scmp.eq.s32.totalorder %s26, 0
      %p172 = por %p170, %p171
      %p173 = scmp.ne.s32.totalorder %s165, %s167
      %p174 = scmp.eq.s32.totalorder %s31, 1
      %p175 = por %p173, %p174
      %p176 = scmp.ne.s32.totalorder %s167, %s168
      %p177 = scmp.eq.s32.totalorder %s31, 0
      %p178 = por %p176, %p177
      %p179 = scmp.ne.s32.totalorder %s167, %s168
      %p180 = scmp.eq.s32.totalorder %s32, 1
      %p181 = por %p179, %p180
      %p183 = scmp.ne.s32.totalorder %s168, %s182
      %p184 = scmp.eq.s32.totalorder %s32, 0
      %p185 = por %p183, %p184
      %s187 = sadd.s32 %s186, 1
      %p190 = scmp.eq.s32.totalorder %s26, 1
      %p191 = scmp.ne.s32.totalorder %s186, %s188
      %p192 = scmp.eq.s32.totalorder %s26, 0
      %p193 = por %p191, %p192
      %p194 = scmp.ne.s32.totalorder %s186, %s188
      %p195 = scmp.eq.s32.totalorder %s31, 1
      %p196 = por %p194, %p195
      %p197 = scmp.ne.s32.totalorder %s188, %s189
      %p198 = scmp.eq.s32.totalorder %s31, 0
      %p199 = por %p197, %p198
      %p200 = scmp.ne.s32.totalorder %s188, %s189
      %p201 = scmp.eq.s32.totalorder %s32, 1
      %p202 = por %p200, %p201
      %p204 = scmp.ne.s32.totalorder %s189, %s203
      %p205 = scmp.eq.s32.totalorder %s32, 0
      %p206 = por %p204, %p205
      %s208 = sadd.s32 %s207, 1
      %p211 = scmp.eq.s32.totalorder %s26, 1
      %p212 = scmp.ne.s32.totalorder %s207, %s209
      %p213 = scmp.eq.s32.totalorder %s26, 0
      %p214 = por %p212, %p213
      %p215 = scmp.ne.s32.totalorder %s207, %s209
      %p216 = scmp.eq.s32.totalorder %s31, 1
      %p217 = por %p215, %p216
      %p218 = scmp.ne.s32.totalorder %s209, %s210
      %p219 = scmp.eq.s32.totalorder %s31, 0
      %p220 = por %p218, %p219
      %p221 = scmp.ne.s32.totalorder %s209, %s210
      %p222 = scmp.eq.s32.totalorder %s32, 1
      %p223 = por %p221, %p222
      %p225 = scmp.ne.s32.totalorder %s210, %s224
      %p226 = scmp.eq.s32.totalorder %s32, 0
      %p227 = por %p225, %p226
      %s229 = sadd.s32 %s228, 1
      %p232 = scmp.eq.s32.totalorder %s26, 1
      %p233 = scmp.ne.s32.totalorder %s228, %s230
      %p234 = scmp.eq.s32.totalorder %s26, 0
      %p235 = por %p233, %p234
      %p236 = scmp.ne.s32.totalorder %s228, %s230
      %p237 = scmp.eq.s32.totalorder %s31, 1
      %p238 = por %p236, %p237
      %p239 = scmp.ne.s32.totalorder %s230, %s231
      %p240 = scmp.eq.s32.totalorder %s31, 0
      %p241 = por %p239, %p240
      %p242 = scmp.ne.s32.totalorder %s230, %s231
      %p243 = scmp.eq.s32.totalorder %s32, 1
      %p244 = por %p242, %p243
      %p246 = scmp.ne.s32.totalorder %s231, %s245
      %p247 = scmp.eq.s32.totalorder %s32, 0
      %p248 = por %p246, %p247
      %s250 = sadd.s32 %s249, 1
      %p253 = scmp.eq.s32.totalorder %s26, 1
      %p254 = scmp.ne.s32.totalorder %s249, %s251
      %p255 = scmp.eq.s32.totalorder %s26, 0
      %p256 = por %p254, %p255
      %p257 = scmp.ne.s32.totalorder %s249, %s251
      %p258 = scmp.eq.s32.totalorder %s31, 1
      %p259 = por %p257, %p258
      %p260 = scmp.ne.s32.totalorder %s251, %s252
      %p261 = scmp.eq.s32.totalorder %s31, 0
      %p262 = por %p260, %p261
      %p263 = scmp.ne.s32.totalorder %s251, %s252
      %p264 = scmp.eq.s32.totalorder %s32, 1
      %p265 = por %p263, %p264
      %p267 = scmp.ne.s32.totalorder %s252, %s266
      %p268 = scmp.eq.s32.totalorder %s32, 0
      %p269 = por %p267, %p268
      %s271 = sadd.s32 %s270, 1
      %p274 = scmp.eq.s32.totalorder %s26, 1
      %p275 = scmp.ne.s32.totalorder %s270, %s272
      %p276 = scmp.eq.s32.totalorder %s26, 0
      %p277 = por %p275, %p276
      %p278 = scmp.ne.s32.totalorder %s270, %s272
      %p279 = scmp.eq.s32.totalorder %s31, 1
      %p280 = por %p278, %p279
      %p281 = scmp.ne.s32.totalorder %s272, %s273
      %p282 = scmp.eq.s32.totalorder %s31, 0
      %p283 = por %p281, %p282
      %p284 = scmp.ne.s32.totalorder %s272, %s273
      %p285 = scmp.eq.s32.totalorder %s32, 1
      %p286 = por %p284, %p285
      %p288 = scmp.ne.s32.totalorder %s273, %s287
      %p289 = scmp.eq.s32.totalorder %s32, 0
      %p290 = por %p288, %p289
      %s292 = sadd.s32 %s291, 1
      %p295 = scmp.eq.s32.totalorder %s26, 1
      %p296 = scmp.ne.s32.totalorder %s291, %s293
      %p297 = scmp.eq.s32.totalorder %s26, 0
      %p298 = por %p296, %p297
      %p299 = scmp.ne.s32.totalorder %s291, %s293
      %p300 = scmp.eq.s32.totalorder %s31, 1
      %p301 = por %p299, %p300
      %p302 = scmp.ne.s32.totalorder %s293, %s294
      %p303 = scmp.eq.s32.totalorder %s31, 0
      %p304 = por %p302, %p303
      %p305 = scmp.ne.s32.totalorder %s293, %s294
      %p306 = scmp.eq.s32.totalorder %s32, 1
      %p307 = por %p305, %p306
      %p309 = scmp.ne.s32.totalorder %s294, %s308
      %p310 = scmp.eq.s32.totalorder %s32, 0
      %p311 = por %p309, %p310
      %s313 = sadd.s32 %s312, 1
      %p316 = scmp.eq.s32.totalorder %s26, 1
      %p317 = scmp.ne.s32.totalorder %s312, %s314
      %p318 = scmp.eq.s32.totalorder %s26, 0
      %p319 = por %p317, %p318
      %p320 = scmp.ne.s32.totalorder %s312, %s314
      %p321 = scmp.eq.s32.totalorder %s31, 1
      %p322 = por %p320, %p321
      %p323 = scmp.ne.s32.totalorder %s314, %s315
      %p324 = scmp.eq.s32.totalorder %s31, 0
      %p325 = por %p323, %p324
      %p326 = scmp.ne.s32.totalorder %s314, %s315
      %p327 = scmp.eq.s32.totalorder %s32, 1
      %p328 = por %p326, %p327
      %p330 = scmp.ne.s32.totalorder %s315, %s329
      %p331 = scmp.eq.s32.totalorder %s32, 0
      %p332 = por %p330, %p331
      %s334 = sadd.s32 %s333, 1
      %p337 = scmp.eq.s32.totalorder %s26, 1
      %p338 = scmp.ne.s32.totalorder %s333, %s335
      %p339 = scmp.eq.s32.totalorder %s26, 0
      %p340 = por %p338, %p339
      %p341 = scmp.ne.s32.totalorder %s333, %s335
      %p342 = scmp.eq.s32.totalorder %s31, 1
      %p343 = por %p341, %p342
      %p344 = scmp.ne.s32.totalorder %s335, %s336
      %p345 = scmp.eq.s32.totalorder %s31, 0
      %p346 = por %p344, %p345
      %p347 = scmp.ne.s32.totalorder %s335, %s336
      %p348 = scmp.eq.s32.totalorder %s32, 1
      %p349 = por %p347, %p348
      %p351 = scmp.ne.s32.totalorder %s336, %s350
      %p352 = scmp.eq.s32.totalorder %s32, 0
      %p353 = por %p351, %p352
      %s355 = sadd.s32 %s354, 1
      %p358 = scmp.eq.s32.totalorder %s26, 1
      %p359 = scmp.ne.s32.totalorder %s354, %s356
      %p360 = scmp.eq.s32.totalorder %s26, 0
      %p361 = por %p359, %p360
      %p362 = scmp.ne.s32.totalorder %s354, %s356
      %p363 = scmp.eq.s32.totalorder %s31, 1
      %p364 = por %p362, %p363
      %p365 = scmp.ne.s32.totalorder %s356, %s357
      %p366 = scmp.eq.s32.totalorder %s31, 0
      %p367 = por %p365, %p366
      %p368 = scmp.ne.s32.totalorder %s356, %s357
      %p369 = scmp.eq.s32.totalorder %s32, 1
      %p370 = por %p368, %p369
      %p372 = scmp.ne.s32.totalorder %s357, %s371
      %p373 = scmp.eq.s32.totalorder %s32, 0
      %p374 = por %p372, %p373
      %s376 = sadd.s32 %s375, 1
      %p379 = scmp.eq.s32.totalorder %s26, 1
      %p380 = scmp.ne.s32.totalorder %s375, %s377
      %p381 = scmp.eq.s32.totalorder %s26, 0
      %p382 = por %p380, %p381
      %p383 = scmp.ne.s32.totalorder %s375, %s377
      %p384 = scmp.eq.s32.totalorder %s31, 1
      %p385 = por %p383, %p384
      %p386 = scmp.ne.s32.totalorder %s377, %s378
      %p387 = scmp.eq.s32.totalorder %s31, 0
      %p388 = por %p386, %p387
      %p389 = scmp.ne.s32.totalorder %s377, %s378
      %p390 = scmp.eq.s32.totalorder %s32, 1
      %p391 = por %p389, %p390
      %p393 = scmp.ne.s32.totalorder %s378, %s392
      %p394 = scmp.eq.s32.totalorder %s32, 0
      %p395 = por %p393, %p394
      %s396 = ssub.s32 %s26, %s33
      %p397 = scmp.eq.s32.totalorder %s396, 0
      %s399 = sadd.s32 %s398, 1
      %s400 = scalar_select %p397, %s398, %s399
      %p403 = pneg %p397
      %p404 = scmp.eq.s32.totalorder %s26, 1
      %p405 = por %p403, %p404
      %p406 = scmp.ne.s32.totalorder %s398, %s401
      %p407 = scmp.eq.s32.totalorder %s26, 0
      %p408 = por %p406, %p407
      %p409 = scmp.ne.s32.totalorder %s398, %s401
      %p410 = scmp.eq.s32.totalorder %s31, 1
      %p411 = por %p409, %p410
      %p412 = scmp.ne.s32.totalorder %s401, %s402
      %p413 = scmp.eq.s32.totalorder %s31, 0
      %p414 = por %p412, %p413
      %p415 = scmp.ne.s32.totalorder %s401, %s402
      %p416 = scmp.eq.s32.totalorder %s32, 1
      %p417 = por %p415, %p416
      %p419 = scmp.ne.s32.totalorder %s402, %s418
      %p420 = scmp.eq.s32.totalorder %s32, 0
      %p421 = por %p419, %p420
      %p422 = scmp.le.s32.totalorder 1, %s26
      %p423 = scmp.lt.s32.totalorder %s26, 3
      %p424 = pnand %p422, %p423
      %p425 = pneg %p424
      // Predicated region
      $region9: #{tpu_custom_call.1} parent=5 // pred_check
        _
      $region10: #{tpu_custom_call.1} parent=5 // pred_check_branch
        %427 = sbr.rel (%p424) target = $region12
      $region11: #{tpu_custom_call.1} parent=5 // pred_region
        %s428 = ssub.s32 %s26, 1
        // Predicated region
        $region13: #{tpu_custom_call.1} parent=11 // pred_check
          %p429 = pneg %p73
        $region14: #{tpu_custom_call.1} parent=11 // pred_check_branch
          %431 = sbr.rel (%p429) target = $region16
        $region15: #{tpu_custom_call.1} parent=11 // pred_region
          _
        $region16: #{tpu_custom_call.1} parent=11 // pred_fallthru
          _
        // Predicated region
        $region17: #{tpu_custom_call.1} parent=11 // pred_check
          %p432 = pneg %p94
        $region18: #{tpu_custom_call.1} parent=11 // pred_check_branch
          %434 = sbr.rel (%p432) target = $region20
        $region19: #{tpu_custom_call.1} parent=11 // pred_region
          _
        $region20: #{tpu_custom_call.1} parent=11 // pred_fallthru
          _
        // Predicated region
        $region21: #{tpu_custom_call.1} parent=11 // pred_check
          %p435 = pneg %p115
        $region22: #{tpu_custom_call.1} parent=11 // pred_check_branch
          %437 = sbr.rel (%p435) target = $region24
        $region23: #{tpu_custom_call.1} parent=11 // pred_region
          _
        $region24: #{tpu_custom_call.1} parent=11 // pred_fallthru
          _
        // Predicated region
        $region25: #{tpu_custom_call.1} parent=11 // pred_check
          %p438 = pneg %p136
        $region26: #{tpu_custom_call.1} parent=11 // pred_check_branch
          %440 = sbr.rel (%p438) target = $region28
        $region27: #{tpu_custom_call.1} parent=11 // pred_region
          _
        $region28: #{tpu_custom_call.1} parent=11 // pred_fallthru
          _
        // Predicated region
        $region29: #{tpu_custom_call.1} parent=11 // pred_check
          %p441 = pneg %p157
        $region30: #{tpu_custom_call.1} parent=11 // pred_check_branch
          %443 = sbr.rel (%p441) target = $region32
        $region31: #{tpu_custom_call.1} parent=11 // pred_region
          _
        $region32: #{tpu_custom_call.1} parent=11 // pred_fallthru
          _
        // Predicated region
        $region33: #{tpu_custom_call.1} parent=11 // pred_check
          %p444 = pneg %p178
        $region34: #{tpu_custom_call.1} parent=11 // pred_check_branch
          %446 = sbr.rel (%p444) target = $region36
        $region35: #{tpu_custom_call.1} parent=11 // pred_region
          _
        $region36: #{tpu_custom_call.1} parent=11 // pred_fallthru
          _
        // Predicated region
        $region37: #{tpu_custom_call.1} parent=11 // pred_check
          %p447 = pneg %p199
        $region38: #{tpu_custom_call.1} parent=11 // pred_check_branch
          %449 = sbr.rel (%p447) target = $region40
        $region39: #{tpu_custom_call.1} parent=11 // pred_region
          _
        $region40: #{tpu_custom_call.1} parent=11 // pred_fallthru
          _
        // Predicated region
        $region41: #{tpu_custom_call.1} parent=11 // pred_check
          %p450 = pneg %p220
        $region42: #{tpu_custom_call.1} parent=11 // pred_check_branch
          %452 = sbr.rel (%p450) target = $region44
        $region43: #{tpu_custom_call.1} parent=11 // pred_region
          _
        $region44: #{tpu_custom_call.1} parent=11 // pred_fallthru
          _
        // Predicated region
        $region45: #{tpu_custom_call.1} parent=11 // pred_check
          %p453 = pneg %p241
        $region46: #{tpu_custom_call.1} parent=11 // pred_check_branch
          %455 = sbr.rel (%p453) target = $region48
        $region47: #{tpu_custom_call.1} parent=11 // pred_region
          _
        $region48: #{tpu_custom_call.1} parent=11 // pred_fallthru
          _
        // Predicated region
        $region49: #{tpu_custom_call.1} parent=11 // pred_check
          %p456 = pneg %p262
        $region50: #{tpu_custom_call.1} parent=11 // pred_check_branch
          %458 = sbr.rel (%p456) target = $region52
        $region51: #{tpu_custom_call.1} parent=11 // pred_region
          _
        $region52: #{tpu_custom_call.1} parent=11 // pred_fallthru
          _
        // Predicated region
        $region53: #{tpu_custom_call.1} parent=11 // pred_check
          %p459 = pneg %p283
        $region54: #{tpu_custom_call.1} parent=11 // pred_check_branch
          %461 = sbr.rel (%p459) target = $region56
        $region55: #{tpu_custom_call.1} parent=11 // pred_region
          _
        $region56: #{tpu_custom_call.1} parent=11 // pred_fallthru
          _
        // Predicated region
        $region57: #{tpu_custom_call.1} parent=11 // pred_check
          %p462 = pneg %p304
        $region58: #{tpu_custom_call.1} parent=11 // pred_check_branch
          %464 = sbr.rel (%p462) target = $region60
        $region59: #{tpu_custom_call.1} parent=11 // pred_region
          _
        $region60: #{tpu_custom_call.1} parent=11 // pred_fallthru
          _
        // Predicated region
        $region61: #{tpu_custom_call.1} parent=11 // pred_check
          %p465 = pneg %p325
        $region62: #{tpu_custom_call.1} parent=11 // pred_check_branch
          %467 = sbr.rel (%p465) target = $region64
        $region63: #{tpu_custom_call.1} parent=11 // pred_region
          _
        $region64: #{tpu_custom_call.1} parent=11 // pred_fallthru
          _
        // Predicated region
        $region65: #{tpu_custom_call.1} parent=11 // pred_check
          %p468 = pneg %p346
        $region66: #{tpu_custom_call.1} parent=11 // pred_check_branch
          %470 = sbr.rel (%p468) target = $region68
        $region67: #{tpu_custom_call.1} parent=11 // pred_region
          _
        $region68: #{tpu_custom_call.1} parent=11 // pred_fallthru
          _
        // Predicated region
        $region69: #{tpu_custom_call.1} parent=11 // pred_check
          %p471 = pneg %p367
        $region70: #{tpu_custom_call.1} parent=11 // pred_check_branch
          %473 = sbr.rel (%p471) target = $region72
        $region71: #{tpu_custom_call.1} parent=11 // pred_region
          _
        $region72: #{tpu_custom_call.1} parent=11 // pred_fallthru
          _
        // Predicated region
        $region73: #{tpu_custom_call.1} parent=11 // pred_check
          %p474 = pneg %p388
        $region74: #{tpu_custom_call.1} parent=11 // pred_check_branch
          %476 = sbr.rel (%p474) target = $region76
        $region75: #{tpu_custom_call.1} parent=11 // pred_region
          _
        $region76: #{tpu_custom_call.1} parent=11 // pred_fallthru
          _
      $region12: #{tpu_custom_call.1} parent=5 // pred_fallthru
        _
      %p477 = scmp.lt.s32.totalorder %s26, 2
      // Predicated region
      $region77: #{tpu_custom_call.1} parent=5 // pred_check
        %p478 = pneg %p477
      $region78: #{tpu_custom_call.1} parent=5 // pred_check_branch
        %480 = sbr.rel (%p478) target = $region80
      $region79: #{tpu_custom_call.1} parent=5 // pred_region
        // Predicated region
        $region81: #{tpu_custom_call.1} parent=79 // pred_check
          %p481 = pneg %p46
        $region82: #{tpu_custom_call.1} parent=79 // pred_check_branch
          %483 = sbr.rel (%p481) target = $region84
        $region83: #{tpu_custom_call.1} parent=79 // pred_region
          %p484 = scmp.lt.s32.totalorder %s26, 1
          %s485 = scalar_select %p484, %s26, 1
          %s486 = smul.addr %s485, 2
          %s487 = smul.addr %s486, 4
          %s488 = scalar_lea.vmem %s0, %s487
        $region84: #{tpu_custom_call.1} parent=79 // pred_fallthru
          _
      $region80: #{tpu_custom_call.1} parent=5 // pred_fallthru
        _
      %p489 = scmp.le.s32.totalorder 1, %s26
      %p490 = scmp.lt.s32.totalorder %s26, 3
      %p491 = pnand %p489, %p490
      %p492 = pneg %p491
      // Predicated region
      $region85: #{tpu_custom_call.1} parent=5 // pred_check
        _
      $region86: #{tpu_custom_call.1} parent=5 // pred_check_branch
        %494 = sbr.rel (%p491) target = $region88
      $region87: #{tpu_custom_call.1} parent=5 // pred_region
        %s495 = ssub.s32 %s26, 1
        %p496 = scmp.lt.s32.totalorder %s31, 1
        %s497 = scalar_select %p496, %s31, 1
        %s498 = smul.addr %s497, 2
        %s499 = smul.addr %s498, 4
        %s500 = scalar_lea.vmem %s0, %s499
        %p501 = pneg %p52
        %p502 = pneg %p49
        %p503 = pneg %p73
        %p504 = pneg %p70
        %p505 = pneg %p94
        %p506 = pneg %p91
        %p507 = pneg %p115
        %p508 = pneg %p112
        %p509 = pneg %p136
        %p510 = pneg %p133
        %p511 = pneg %p157
        %p512 = pneg %p154
        %p513 = pneg %p178
        %p514 = pneg %p175
        %p515 = pneg %p199
        %p516 = pneg %p196
        %p517 = pneg %p220
        %p518 = pneg %p217
        %p519 = pneg %p241
        %p520 = pneg %p238
        %p521 = pneg %p262
        %p522 = pneg %p259
        %p523 = pneg %p283
        %p524 = pneg %p280
        %p525 = pneg %p304
        %p526 = pneg %p301
        %p527 = pneg %p325
        %p528 = pneg %p322
        %p529 = pneg %p346
        %p530 = pneg %p343
        %p531 = pneg %p367
        %p532 = pneg %p364
        %p533 = pneg %p388
        %p534 = pneg %p385
        %p535 = pneg %p414
        %p536 = pneg %p411
        %s537 = sand.u32 %s401, 1
        %s538 = scalar_lea.sflag [#allocation3], %s537
        %s539 = sand.u32 %s401, 1
        %s540 = smul.addr %s539, 8
        %s541 = scalar_lea.vmem [#allocation2], %s540
        %p542 = scmp.lt.s32.totalorder %s31, 1
        %s543 = scalar_select %p542, %s31, 1
        %s544 = smul.addr %s543, 2
        %s545 = smul.addr %s544, 4
        %s546 = scalar_lea.vmem %s0, %s545
        %v547 = vld [vmem:[%s546] sm:$0xff]
        %v549 = vcombine.high %v547, %v547
        %vm551 = vcmask 1043456
        %v552 = vsel %vm551, %v547, 0.0
        %v553 = vsel %vm551, %v549, 0.0
        %v554 = vadd.f32 %v552, %v553
        %555 = vadd.xlane.f32.xlu0 %v554
        %v556 = vpop.xlane.xlu0 %555
        %v557 = vrot.slane %v556, 4
        %v558 = vadd.f32 %v556, %v557
        %v559 = vrot.slane %v558, 2
        %v560 = vadd.f32 %v558, %v559
        %v561 = vrot.slane %v560, 1
        %v562 = vadd.f32 %v560, %v561
        %s563 = vtos %v562
        %v564 = vrcp.pop 1024.0
        %s565 = vtos %v564
        %s566 = smul.f32 %s563, %s565
        %v567 = vstv %s566
        %v568 = vsub.f32 %v547, %v567
        %v569 = vmul.f32 %v568, %v568
        %v571 = vcombine.high %v569, %v569
        %v573 = vsel %vm551, %v569, 0.0
        %v574 = vsel %vm551, %v571, 0.0
        %v575 = vadd.f32 %v573, %v574
        %576 = vadd.xlane.f32.xlu0 %v575
        %v577 = vpop.xlane.xlu0 %576
        %v578 = vrot.slane %v577, 4
        %v579 = vadd.f32 %v577, %v578
        %v580 = vrot.slane %v579, 2
        %v581 = vadd.f32 %v579, %v580
        %v582 = vrot.slane %v581, 1
        %v583 = vadd.f32 %v581, %v582
        %s584 = vtos %v583
        %v585 = vrcp.pop 1024.0
        %s586 = vtos %v585
        %s587 = smul.f32 %s584, %s586
        %s588 = sadd.f32 %s587, 1e-05
        %v589 = vstv %s588
        %v590 = vrsqrt.pop %v589
        %s591 = vtos %v590
        %v592 = vstv %s591
        %v593 = vmul.f32 %v568, %v592
        %v594 = vld [vmem:[%s1] sm:$0xf]
        %596 = vset.pattern.permute.xlu0 0
        %597 = vperm.xlu0 %596, %v594
        %v598 = vpop.permute.xlu0 %597
        %v600 = vunpack.c.l.s4 839922192
        %v601 = vunpack.c.0.s8 %v600
        %v602 = vlaneseq
        %v603 = vshrl.u32 %v602, 7
        %v604 = vsub.s32 %v601, %v603
        %v605 = vrot.slane %v598, %v604
        %v607 = vmul.f32 %v593, %v605
        %v608 = vld [vmem:[%s2] sm:$0xf]
        %610 = vset.pattern.permute.xlu0 0
        %611 = vperm.xlu0 %610, %v608
        %v612 = vpop.permute.xlu0 %611
        %v614 = vunpack.c.l.s4 839922192
        %v615 = vunpack.c.0.s8 %v614
        %v616 = vlaneseq
        %v617 = vshrl.u32 %v616, 7
        %v618 = vsub.s32 %v615, %v617
        %v619 = vrot.slane %v612, %v618
        %v621 = vadd.f32 %v607, %v619
        %v622 = vld [vmem:[%s3] sm:$0xf]
        %624 = vset.pattern.permute.xlu0 0
        %625 = vperm.xlu0 %624, %v622
        %v626 = vpop.permute.xlu0 %625
        %v628 = vunpack.c.l.s4 839922192
        %v629 = vunpack.c.0.s8 %v628
        %v630 = vlaneseq
        %v631 = vshrl.u32 %v630, 7
        %v632 = vsub.s32 %v629, %v631
        %v633 = vrot.slane %v626, %v632
        %v635 = vmul.f32 %v593, %v633
        %v636 = vld [vmem:[%s4] sm:$0xf]
        %638 = vset.pattern.permute.xlu0 0
        %639 = vperm.xlu0 %638, %v636
        %v640 = vpop.permute.xlu0 %639
        %v642 = vunpack.c.l.s4 839922192
        %v643 = vunpack.c.0.s8 %v642
        %v644 = vlaneseq
        %v645 = vshrl.u32 %v644, 7
        %v646 = vsub.s32 %v643, %v645
        %v647 = vrot.slane %v640, %v646
        %v649 = vadd.f32 %v635, %v647
        %v650 = vld [vmem:[%s5] sm:$0xff]
        %v651 = vld [vmem:[%s5 + $0x8] sm:$0xff]
        %v652 = vld [vmem:[%s8] sm:$0xff]
        %v653 = vld [vmem:[%s8 + $0x8] sm:$0xff]
        %v654 = vld [vmem:[%s8 + $0x10] sm:$0xff]
        %v655 = vld [vmem:[%s8 + $0x18] sm:$0xff]
        %v657 = vcombine.high %v621, %v621
        %vm658 = vcmask 31744
        %v660 = vsel %vm658, %v650, 0
        %v663 = vsel %vm658, %v651, 0
        %v665 = vsel %vm551, %v621, 0
        %v667 = vsel %vm551, %v657, 0
        %669 = vmatprep.subr.mxu0 %v667
        %670 = vmatpush1.msra.mxu0 %v665
        %671 = vmatprep.subr.mxu0 0.0
        %672 = vmatpush1.msra.mxu0 0.0
        %673 = vmatprep.subr.mxu0 0.0
        %674 = vmatpush1.msra.mxu0 0.0
        %675 = vmatprep.subr.mxu0 0.0
        %676 = vmatpush1.msra.mxu0 0.0
        %677 = vmatprep.subr.mxu0 0.0
        %678 = vmatpush1.msra.mxu0 0.0
        %679 = vmatprep.subr.mxu0 0.0
        %680 = vmatpush1.msra.mxu0 0.0
        %681 = vmatprep.subr.mxu0 0.0
        %682 = vmatpush1.msra.mxu0 0.0
        %683 = vmatprep.subr.mxu0 0.0
        %684 = vmatpush1.msra.mxu0 0.0
        %685 = vmatprep.subr.mxu0 0.0
        %686 = vmatpush1.msra.mxu0 0.0
        %687 = vmatprep.subr.mxu0 0.0
        %688 = vmatpush1.msra.mxu0 0.0
        %689 = vmatprep.subr.mxu0 0.0
        %690 = vmatpush1.msra.mxu0 0.0
        %691 = vmatprep.subr.mxu0 0.0
        %692 = vmatpush1.msra.mxu0 0.0
        %693 = vmatprep.subr.mxu0 0.0
        %694 = vmatpush1.msra.mxu0 0.0
        %695 = vmatprep.subr.mxu0 0.0
        %696 = vmatpush1.msra.mxu0 0.0
        %697 = vmatprep.subr.mxu0 0.0
        %698 = vmatpush1.msra.mxu0 0.0
        %699 = vmatprep.subr.mxu0 0.0
        %700 = vmatpush1.msra.mxu0 0.0
        %701 = vmatprep.subr.mxu0 0.0
        %702 = vmatpush1.msra.mxu0 0.0
        %703 = vmatprep.subr.mxu0 0.0
        %704 = vmatpush1.msra.mxu0 0.0
        %705 = vmatprep.subr.mxu0 0.0
        %706 = vmatpush1.msra.mxu0 0.0
        %707 = vmatprep.subr.mxu0 0.0
        %708 = vmatpush1.msra.mxu0 0.0
        %709 = vmatprep.subr.mxu0 0.0
        %710 = vmatpush1.msra.mxu0 0.0
        %711 = vmatprep.subr.mxu0 0.0
        %712 = vmatpush1.msra.mxu0 0.0
        %713 = vmatprep.subr.mxu0 0.0
        %714 = vmatpush1.msra.mxu0 0.0
        %715 = vmatprep.subr.mxu0 0.0
        %716 = vmatpush1.msra.mxu0 0.0
        %717 = vmatprep.subr.mxu0 0.0
        %718 = vmatpush1.msra.mxu0 0.0
        %719 = vmatprep.subr.mxu0 0.0
        %720 = vmatpush1.msra.mxu0 0.0
        %721 = vmatprep.subr.mxu0 0.0
        %722 = vmatpush1.msra.mxu0 0.0
        %723 = vmatprep.subr.mxu0 0.0
        %724 = vmatpush1.msra.mxu0 0.0
        %725 = vmatprep.subr.mxu0 0.0
        %726 = vmatpush1.msra.mxu0 0.0
        %727 = vmatprep.subr.mxu0 0.0
        %728 = vmatpush1.msra.mxu0 0.0
        %729 = vmatprep.subr.mxu0 0.0
        %730 = vmatpush1.msra.mxu0 0.0
        %731 = vmatprep.subr.mxu0 0.0
        %732 = vmatpush1.msra.mxu0 0.0
        %733 = vmatprep.mubr.f32.mxu0 0.0
        %734 = vmatmul.mubr.f32.gmra.mrb[0].mxu0 %v660
        %v735 = vpop.f32.mrb[0].mxu0
        %v736 = vadd.f32 %v652, %v735
        %v737 = vpop.f32.mrb[0].mxu0
        %v738 = vadd.f32 %v653, %v737
        %739 = vmatprep.mubr.f32.mxu0 0.0
        %740 = vmatmul.mubr.f32.gmra.mrb[0].mxu0 %v663
        %v741 = vpop.f32.mrb[0].mxu0
        %v742 = vadd.f32 %v654, %v741
        %v743 = vpop.f32.mrb[0].mxu0
        %v744 = vadd.f32 %v655, %v743
        %745 = vdwg.mxu0
        %v746 = vld [vmem:[%s6] sm:$0xff]
        %v747 = vld [vmem:[%s6 + $0x8] sm:$0xff]
        %v748 = vld [vmem:[%s9] sm:$0xff]
        %v749 = vld [vmem:[%s9 + $0x8] sm:$0xff]
        %v750 = vld [vmem:[%s9 + $0x10] sm:$0xff]
        %v751 = vld [vmem:[%s9 + $0x18] sm:$0xff]
        %v753 = vsel %vm658, %v746, 0
        %v756 = vsel %vm658, %v747, 0
        %758 = vmatprep.subr.mxu0 %v667
        %759 = vmatpush1.msra.mxu0 %v665
        %760 = vmatprep.subr.mxu0 0.0
        %761 = vmatpush1.msra.mxu0 0.0
        %762 = vmatprep.subr.mxu0 0.0
        %763 = vmatpush1.msra.mxu0 0.0
        %764 = vmatprep.subr.mxu0 0.0
        %765 = vmatpush1.msra.mxu0 0.0
        %766 = vmatprep.subr.mxu0 0.0
        %767 = vmatpush1.msra.mxu0 0.0
        %768 = vmatprep.subr.mxu0 0.0
        %769 = vmatpush1.msra.mxu0 0.0
        %770 = vmatprep.subr.mxu0 0.0
        %771 = vmatpush1.msra.mxu0 0.0
        %772 = vmatprep.subr.mxu0 0.0
        %773 = vmatpush1.msra.mxu0 0.0
        %774 = vmatprep.subr.mxu0 0.0
        %775 = vmatpush1.msra.mxu0 0.0
        %776 = vmatprep.subr.mxu0 0.0
        %777 = vmatpush1.msra.mxu0 0.0
        %778 = vmatprep.subr.mxu0 0.0
        %779 = vmatpush1.msra.mxu0 0.0
        %780 = vmatprep.subr.mxu0 0.0
        %781 = vmatpush1.msra.mxu0 0.0
        %782 = vmatprep.subr.mxu0 0.0
        %783 = vmatpush1.msra.mxu0 0.0
        %784 = vmatprep.subr.mxu0 0.0
        %785 = vmatpush1.msra.mxu0 0.0
        %786 = vmatprep.subr.mxu0 0.0
        %787 = vmatpush1.msra.mxu0 0.0
        %788 = vmatprep.subr.mxu0 0.0
        %789 = vmatpush1.msra.mxu0 0.0
        %790 = vmatprep.subr.mxu0 0.0
        %791 = vmatpush1.msra.mxu0 0.0
        %792 = vmatprep.subr.mxu0 0.0
        %793 = vmatpush1.msra.mxu0 0.0
        %794 = vmatprep.subr.mxu0 0.0
        %795 = vmatpush1.msra.mxu0 0.0
        %796 = vmatprep.subr.mxu0 0.0
        %797 = vmatpush1.msra.mxu0 0.0
        %798 = vmatprep.subr.mxu0 0.0
        %799 = vmatpush1.msra.mxu0 0.0
        %800 = vmatprep.subr.mxu0 0.0
        %801 = vmatpush1.msra.mxu0 0.0
        %802 = vmatprep.subr.mxu0 0.0
        %803 = vmatpush1.msra.mxu0 0.0
        %804 = vmatprep.subr.mxu0 0.0
        %805 = vmatpush1.msra.mxu0 0.0
        %806 = vmatprep.subr.mxu0 0.0
        %807 = vmatpush1.msra.mxu0 0.0
        %808 = vmatprep.subr.mxu0 0.0
        %809 = vmatpush1.msra.mxu0 0.0
        %810 = vmatprep.subr.mxu0 0.0
        %811 = vmatpush1.msra.mxu0 0.0
        %812 = vmatprep.subr.mxu0 0.0
        %813 = vmatpush1.msra.mxu0 0.0
        %814 = vmatprep.subr.mxu0 0.0
        %815 = vmatpush1.msra.mxu0 0.0
        %816 = vmatprep.subr.mxu0 0.0
        %817 = vmatpush1.msra.mxu0 0.0
        %818 = vmatprep.subr.mxu0 0.0
        %819 = vmatpush1.msra.mxu0 0.0
        %820 = vmatprep.subr.mxu0 0.0
        %821 = vmatpush1.msra.mxu0 0.0
        %822 = vmatprep.mubr.f32.mxu0 0.0
        %823 = vmatmul.mubr.f32.gmra.mrb[0].mxu0 %v753
        %v824 = vpop.f32.mrb[0].mxu0
        %v825 = vadd.f32 %v748, %v824
        %v826 = vpop.f32.mrb[0].mxu0
        %v827 = vadd.f32 %v749, %v826
        %828 = vmatprep.mubr.f32.mxu0 0.0
        %829 = vmatmul.mubr.f32.gmra.mrb[0].mxu0 %v756
        %v830 = vpop.f32.mrb[0].mxu0
        %v831 = vadd.f32 %v750, %v830
        %v832 = vpop.f32.mrb[0].mxu0
        %v833 = vadd.f32 %v751, %v832
        %834 = vdwg.mxu0
        %v835 = vld [vmem:[%s7] sm:$0xff]
        %v836 = vld [vmem:[%s7 + $0x8] sm:$0xff]
        %v837 = vld [vmem:[%s10] sm:$0xff]
        %v838 = vld [vmem:[%s10 + $0x8] sm:$0xff]
        %v839 = vld [vmem:[%s10 + $0x10] sm:$0xff]
        %v840 = vld [vmem:[%s10 + $0x18] sm:$0xff]
        %v842 = vsel %vm658, %v835, 0
        %v845 = vsel %vm658, %v836, 0
        %847 = vmatprep.subr.mxu0 %v667
        %848 = vmatpush1.msra.mxu0 %v665
        %849 = vmatprep.subr.mxu0 0.0
        %850 = vmatpush1.msra.mxu0 0.0
        %851 = vmatprep.subr.mxu0 0.0
        %852 = vmatpush1.msra.mxu0 0.0
        %853 = vmatprep.subr.mxu0 0.0
        %854 = vmatpush1.msra.mxu0 0.0
        %855 = vmatprep.subr.mxu0 0.0
        %856 = vmatpush1.msra.mxu0 0.0
        %857 = vmatprep.subr.mxu0 0.0
        %858 = vmatpush1.msra.mxu0 0.0
        %859 = vmatprep.subr.mxu0 0.0
        %860 = vmatpush1.msra.mxu0 0.0
        %861 = vmatprep.subr.mxu0 0.0
        %862 = vmatpush1.msra.mxu0 0.0
        %863 = vmatprep.subr.mxu0 0.0
        %864 = vmatpush1.msra.mxu0 0.0
        %865 = vmatprep.subr.mxu0 0.0
        %866 = vmatpush1.msra.mxu0 0.0
        %867 = vmatprep.subr.mxu0 0.0
        %868 = vmatpush1.msra.mxu0 0.0
        %869 = vmatprep.subr.mxu0 0.0
        %870 = vmatpush1.msra.mxu0 0.0
        %871 = vmatprep.subr.mxu0 0.0
        %872 = vmatpush1.msra.mxu0 0.0
        %873 = vmatprep.subr.mxu0 0.0
        %874 = vmatpush1.msra.mxu0 0.0
        %875 = vmatprep.subr.mxu0 0.0
        %876 = vmatpush1.msra.mxu0 0.0
        %877 = vmatprep.subr.mxu0 0.0
        %878 = vmatpush1.msra.mxu0 0.0
        %879 = vmatprep.subr.mxu0 0.0
        %880 = vmatpush1.msra.mxu0 0.0
        %881 = vmatprep.subr.mxu0 0.0
        %882 = vmatpush1.msra.mxu0 0.0
        %883 = vmatprep.subr.mxu0 0.0
        %884 = vmatpush1.msra.mxu0 0.0
        %885 = vmatprep.subr.mxu0 0.0
        %886 = vmatpush1.msra.mxu0 0.0
        %887 = vmatprep.subr.mxu0 0.0
        %888 = vmatpush1.msra.mxu0 0.0
        %889 = vmatprep.subr.mxu0 0.0
        %890 = vmatpush1.msra.mxu0 0.0
        %891 = vmatprep.subr.mxu0 0.0
        %892 = vmatpush1.msra.mxu0 0.0
        %893 = vmatprep.subr.mxu0 0.0
        %894 = vmatpush1.msra.mxu0 0.0
        %895 = vmatprep.subr.mxu0 0.0
        %896 = vmatpush1.msra.mxu0 0.0
        %897 = vmatprep.subr.mxu0 0.0
        %898 = vmatpush1.msra.mxu0 0.0
        %899 = vmatprep.subr.mxu0 0.0
        %900 = vmatpush1.msra.mxu0 0.0
        %901 = vmatprep.subr.mxu0 0.0
        %902 = vmatpush1.msra.mxu0 0.0
        %903 = vmatprep.subr.mxu0 0.0
        %904 = vmatpush1.msra.mxu0 0.0
        %905 = vmatprep.subr.mxu0 0.0
        %906 = vmatpush1.msra.mxu0 0.0
        %907 = vmatprep.subr.mxu0 0.0
        %908 = vmatpush1.msra.mxu0 0.0
        %909 = vmatprep.subr.mxu0 0.0
        %910 = vmatpush1.msra.mxu0 0.0
        %911 = vmatprep.mubr.f32.mxu0 0.0
        %912 = vmatmul.mubr.f32.gmra.mrb[0].mxu0 %v842
        %v913 = vpop.f32.mrb[0].mxu0
        %v914 = vadd.f32 %v837, %v913
        %v915 = vpop.f32.mrb[0].mxu0
        %v916 = vadd.f32 %v838, %v915
        %917 = vmatprep.mubr.f32.mxu0 0.0
        %918 = vmatmul.mubr.f32.gmra.mrb[0].mxu0 %v845
        %v919 = vpop.f32.mrb[0].mxu0
        %v920 = vadd.f32 %v839, %v919
        %v921 = vpop.f32.mrb[0].mxu0
        %v922 = vadd.f32 %v840, %v921
        %923 = vdwg.mxu0
        %924 = vxpose.xlu0.b32.start [1/16] %v736, 128
        %925 = vxpose.xlu0.b32.cont [2/16] 0.0, 128
        %926 = vxpose.xlu0.b32.cont [3/16] 0.0, 128
        %927 = vxpose.xlu0.b32.cont [4/16] 0.0, 128
        %928 = vxpose.xlu0.b32.cont [5/16] 0.0, 128
        %929 = vxpose.xlu0.b32.cont [6/16] 0.0, 128
        %930 = vxpose.xlu0.b32.cont [7/16] 0.0, 128
        %931 = vxpose.xlu0.b32.cont [8/16] 0.0, 128
        %932 = vxpose.xlu0.b32.cont [9/16] 0.0, 128
        %933 = vxpose.xlu0.b32.cont [10/16] 0.0, 128
        %934 = vxpose.xlu0.b32.cont [11/16] 0.0, 128
        %935 = vxpose.xlu0.b32.cont [12/16] 0.0, 128
        %936 = vxpose.xlu0.b32.cont [13/16] 0.0, 128
        %937 = vxpose.xlu0.b32.cont [14/16] 0.0, 128
        %938 = vxpose.xlu0.b32.cont [15/16] 0.0, 128
        %939 = vxpose.xlu0.b32.end [16/16] 0.0, 128
        %v940 = vpop.trf.xlu0
        %v941 = vpop.trf.xlu0
        %v942 = vpop.trf.xlu0
        %v943 = vpop.trf.xlu0
        %v944 = vpop.trf.xlu0
        %v945 = vpop.trf.xlu0
        %v946 = vpop.trf.xlu0
        %v947 = vpop.trf.xlu0
        %v948 = vpop.trf.xlu0
        %v949 = vpop.trf.xlu0
        %v950 = vpop.trf.xlu0
        %v951 = vpop.trf.xlu0
        %v952 = vpop.trf.xlu0
        %v953 = vpop.trf.xlu0
        %v954 = vpop.trf.xlu0
        %v955 = vpop.trf.xlu0
        %956 = vxpose.xlu0.b32.start [1/16] %v738, 128
        %957 = vxpose.xlu0.b32.cont [2/16] 0.0, 128
        %958 = vxpose.xlu0.b32.cont [3/16] 0.0, 128
        %959 = vxpose.xlu0.b32.cont [4/16] 0.0, 128
        %960 = vxpose.xlu0.b32.cont [5/16] 0.0, 128
        %961 = vxpose.xlu0.b32.cont [6/16] 0.0, 128
        %962 = vxpose.xlu0.b32.cont [7/16] 0.0, 128
        %963 = vxpose.xlu0.b32.cont [8/16] 0.0, 128
        %964 = vxpose.xlu0.b32.cont [9/16] 0.0, 128
        %965 = vxpose.xlu0.b32.cont [10/16] 0.0, 128
        %966 = vxpose.xlu0.b32.cont [11/16] 0.0, 128
        %967 = vxpose.xlu0.b32.cont [12/16] 0.0, 128
        %968 = vxpose.xlu0.b32.cont [13/16] 0.0, 128
        %969 = vxpose.xlu0.b32.cont [14/16] 0.0, 128
        %970 = vxpose.xlu0.b32.cont [15/16] 0.0, 128
        %971 = vxpose.xlu0.b32.end [16/16] 0.0, 128
        %v972 = vpop.trf.xlu0
        %v973 = vpop.trf.xlu0
        %v974 = vpop.trf.xlu0
        %v975 = vpop.trf.xlu0
        %v976 = vpop.trf.xlu0
        %v977 = vpop.trf.xlu0
        %v978 = vpop.trf.xlu0
        %v979 = vpop.trf.xlu0
        %v980 = vpop.trf.xlu0
        %v981 = vpop.trf.xlu0
        %v982 = vpop.trf.xlu0
        %v983 = vpop.trf.xlu0
        %v984 = vpop.trf.xlu0
        %v985 = vpop.trf.xlu0
        %v986 = vpop.trf.xlu0
        %v987 = vpop.trf.xlu0
        %vm988 = vcmask 64512
        %v990 = vsel %vm988, %v940, 0
        %v993 = vsel %vm988, %v941, 0
        %v996 = vsel %vm988, %v942, 0
        %v999 = vsel %vm988, %v943, 0
        %v1002 = vsel %vm988, %v944, 0
        %v1005 = vsel %vm988, %v945, 0
        %v1008 = vsel %vm988, %v946, 0
        %v1011 = vsel %vm988, %v947, 0
        %v1014 = vsel %vm988, %v948, 0
        %v1017 = vsel %vm988, %v949, 0
        %v1020 = vsel %vm988, %v950, 0
        %v1023 = vsel %vm988, %v951, 0
        %v1026 = vsel %vm988, %v952, 0
        %v1029 = vsel %vm988, %v953, 0
        %v1032 = vsel %vm988, %v954, 0
        %v1035 = vsel %vm988, %v955, 0
        %v1038 = vsel %vm988, %v972, 0
        %v1041 = vsel %vm988, %v973, 0
        %v1044 = vsel %vm988, %v974, 0
        %v1047 = vsel %vm988, %v975, 0
        %v1050 = vsel %vm988, %v976, 0
        %v1053 = vsel %vm988, %v977, 0
        %v1056 = vsel %vm988, %v978, 0
        %v1059 = vsel %vm988, %v979, 0
        %v1062 = vsel %vm988, %v980, 0
        %v1065 = vsel %vm988, %v981, 0
        %v1068 = vsel %vm988, %v982, 0
        %v1071 = vsel %vm988, %v983, 0
        %v1074 = vsel %vm988, %v984, 0
        %v1077 = vsel %vm988, %v985, 0
        %v1080 = vsel %vm988, %v986, 0
        %v1083 = vsel %vm988, %v987, 0
        %1085 = vmatprep.subr.mxu0 %v827
        %1086 = vmatpush1.msra.mxu0 %v825
        %1087 = vmatprep.subr.mxu0 0.0
        %1088 = vmatpush1.msra.mxu0 0.0
        %1089 = vmatprep.subr.mxu0 0.0
        %1090 = vmatpush1.msra.mxu0 0.0
        %1091 = vmatprep.subr.mxu0 0.0
        %1092 = vmatpush1.msra.mxu0 0.0
        %1093 = vmatprep.subr.mxu0 0.0
        %1094 = vmatpush1.msra.mxu0 0.0
        %1095 = vmatprep.subr.mxu0 0.0
        %1096 = vmatpush1.msra.mxu0 0.0
        %1097 = vmatprep.subr.mxu0 0.0
        %1098 = vmatpush1.msra.mxu0 0.0
        %1099 = vmatprep.subr.mxu0 0.0
        %1100 = vmatpush1.msra.mxu0 0.0
        %1101 = vmatprep.subr.mxu0 0.0
        %1102 = vmatpush1.msra.mxu0 0.0
        %1103 = vmatprep.subr.mxu0 0.0
        %1104 = vmatpush1.msra.mxu0 0.0
        %1105 = vmatprep.subr.mxu0 0.0
        %1106 = vmatpush1.msra.mxu0 0.0
        %1107 = vmatprep.subr.mxu0 0.0
        %1108 = vmatpush1.msra.mxu0 0.0
        %1109 = vmatprep.subr.mxu0 0.0
        %1110 = vmatpush1.msra.mxu0 0.0
        %1111 = vmatprep.subr.mxu0 0.0
        %1112 = vmatpush1.msra.mxu0 0.0
        %1113 = vmatprep.subr.mxu0 0.0
        %1114 = vmatpush1.msra.mxu0 0.0
        %1115 = vmatprep.subr.mxu0 0.0
        %1116 = vmatpush1.msra.mxu0 0.0
        %1117 = vmatprep.subr.mxu0 0.0
        %1118 = vmatpush1.msra.mxu0 0.0
        %1119 = vmatprep.subr.mxu0 0.0
        %1120 = vmatpush1.msra.mxu0 0.0
        %1121 = vmatprep.subr.mxu0 0.0
        %1122 = vmatpush1.msra.mxu0 0.0
        %1123 = vmatprep.subr.mxu0 0.0
        %1124 = vmatpush1.msra.mxu0 0.0
        %1125 = vmatprep.subr.mxu0 0.0
        %1126 = vmatpush1.msra.mxu0 0.0
        %1127 = vmatprep.subr.mxu0 0.0
        %1128 = vmatpush1.msra.mxu0 0.0
        %1129 = vmatprep.subr.mxu0 0.0
        %1130 = vmatpush1.msra.mxu0 0.0
        %1131 = vmatprep.subr.mxu0 0.0
        %1132 = vmatpush1.msra.mxu0 0.0
        %1133 = vmatprep.subr.mxu0 0.0
        %1134 = vmatpush1.msra.mxu0 0.0
        %1135 = vmatprep.subr.mxu0 0.0
        %1136 = vmatpush1.msra.mxu0 0.0
        %1137 = vmatprep.subr.mxu0 0.0
        %1138 = vmatpush1.msra.mxu0 0.0
        %1139 = vmatprep.subr.mxu0 0.0
        %1140 = vmatpush1.msra.mxu0 0.0
        %1141 = vmatprep.subr.mxu0 0.0
        %1142 = vmatpush1.msra.mxu0 0.0
        %1143 = vmatprep.subr.mxu0 0.0
        %1144 = vmatpush1.msra.mxu0 0.0
        %1145 = vmatprep.subr.mxu0 0.0
        %1146 = vmatpush1.msra.mxu0 0.0
        %1147 = vmatprep.subr.mxu0 0.0
        %1148 = vmatpush1.msra.mxu0 0.0
        %1149 = vmatprep.mubr.f32.mxu0 0.0
        %1150 = vmatmul.mubr.f32.gmra.mrb[0].mxu0 %v990
        %v1151 = vpop.f32.mrb[0].mxu0
        %v1152 = vadd.f32 0.0, %v1151
        %v1153 = vpop.f32.mrb[0].mxu0
        %v1154 = vadd.f32 0.0, %v1153
        %1155 = vmatprep.mubr.f32.mxu0 0.0
        %1156 = vmatmul.mubr.f32.gmra.mrb[0].mxu0 %v993
        %v1157 = vpop.f32.mrb[0].mxu0
        %v1158 = vadd.f32 0.0, %v1157
        %v1159 = vpop.f32.mrb[0].mxu0
        %v1160 = vadd.f32 0.0, %v1159
        %1161 = vmatprep.mubr.f32.mxu0 0.0
        %1162 = vmatmul.mubr.f32.gmra.mrb[0].mxu0 %v996
        %v1163 = vpop.f32.mrb[0].mxu0
        %v1164 = vadd.f32 0.0, %v1163
        %v1165 = vpop.f32.mrb[0].mxu0
        %v1166 = vadd.f32 0.0, %v1165
        %1167 = vmatprep.mubr.f32.mxu0 0.0
        %1168 = vmatmul.mubr.f32.gmra.mrb[0].mxu0 %v999
        %v1169 = vpop.f32.mrb[0].mxu0
        %v1170 = vadd.f32 0.0, %v1169
        %v1171 = vpop.f32.mrb[0].mxu0
        %v1172 = vadd.f32 0.0, %v1171
        %1173 = vmatprep.mubr.f32.mxu0 0.0
        %1174 = vmatmul.mubr.f32.gmra.mrb[0].mxu0 %v1002
        %v1175 = vpop.f32.mrb[0].mxu0
        %v1176 = vadd.f32 0.0, %v1175
        %v1177 = vpop.f32.mrb[0].mxu0
        %v1178 = vadd.f32 0.0, %v1177
        %1179 = vmatprep.mubr.f32.mxu0 0.0
        %1180 = vmatmul.mubr.f32.gmra.mrb[0].mxu0 %v1005
        %v1181 = vpop.f32.mrb[0].mxu0
        %v1182 = vadd.f32 0.0, %v1181
        %v1183 = vpop.f32.mrb[0].mxu0
        %v1184 = vadd.f32 0.0, %v1183
        %1185 = vmatprep.mubr.f32.mxu0 0.0
        %1186 = vmatmul.mubr.f32.gmra.mrb[0].mxu0 %v1008
        %v1187 = vpop.f32.mrb[0].mxu0
        %v1188 = vadd.f32 0.0, %v1187
        %v1189 = vpop.f32.mrb[0].mxu0
        %v1190 = vadd.f32 0.0, %v1189
        %1191 = vmatprep.mubr.f32.mxu0 0.0
        %1192 = vmatmul.mubr.f32.gmra.mrb[0].mxu0 %v1011
        %v1193 = vpop.f32.mrb[0].mxu0
        %v1194 = vadd.f32 0.0, %v1193
        %v1195 = vpop.f32.mrb[0].mxu0
        %v1196 = vadd.f32 0.0, %v1195
        %1197 = vmatprep.mubr.f32.mxu0 0.0
        %1198 = vmatmul.mubr.f32.gmra.mrb[0].mxu0 %v1014
        %v1199 = vpop.f32.mrb[0].mxu0
        %v1200 = vadd.f32 0.0, %v1199
        %v1201 = vpop.f32.mrb[0].mxu0
        %v1202 = vadd.f32 0.0, %v1201
        %1203 = vmatprep.mubr.f32.mxu0 0.0
        %1204 = vmatmul.mubr.f32.gmra.mrb[0].mxu0 %v1017
        %v1205 = vpop.f32.mrb[0].mxu0
        %v1206 = vadd.f32 0.0, %v1205
        %v1207 = vpop.f32.mrb[0].mxu0
        %v1208 = vadd.f32 0.0, %v1207
        %1209 = vmatprep.mubr.f32.mxu0 0.0
        %1210 = vmatmul.mubr.f32.gmra.mrb[0].mxu0 %v1020
        %v1211 = vpop.f32.mrb[0].mxu0
        %v1212 = vadd.f32 0.0, %v1211
        %v1213 = vpop.f32.mrb[0].mxu0
        %v1214 = vadd.f32 0.0, %v1213
        %1215 = vmatprep.mubr.f32.mxu0 0.0
        %1216 = vmatmul.mubr.f32.gmra.mrb[0].mxu0 %v1023
        %v1217 = vpop.f32.mrb[0].mxu0
        %v1218 = vadd.f32 0.0, %v1217
        %v1219 = vpop.f32.mrb[0].mxu0
        %v1220 = vadd.f32 0.0, %v1219
        %1221 = vmatprep.mubr.f32.mxu0 0.0
        %1222 = vmatmul.mubr.f32.gmra.mrb[0].mxu0 %v1026
        %v1223 = vpop.f32.mrb[0].mxu0
        %v1224 = vadd.f32 0.0, %v1223
        %v1225 = vpop.f32.mrb[0].mxu0
        %v1226 = vadd.f32 0.0, %v1225
        %1227 = vmatprep.mubr.f32.mxu0 0.0
        %1228 = vmatmul.mubr.f32.gmra.mrb[0].mxu0 %v1029
        %v1229 = vpop.f32.mrb[0].mxu0
        %v1230 = vadd.f32 0.0, %v1229
        %v1231 = vpop.f32.mrb[0].mxu0
        %v1232 = vadd.f32 0.0, %v1231
        %1233 = vmatprep.mubr.f32.mxu0 0.0
        %1234 = vmatmul.mubr.f32.gmra.mrb[0].mxu0 %v1032
        %v1235 = vpop.f32.mrb[0].mxu0
        %v1236 = vadd.f32 0.0, %v1235
        %v1237 = vpop.f32.mrb[0].mxu0
        %v1238 = vadd.f32 0.0, %v1237
        %1239 = vmatprep.mubr.f32.mxu0 0.0
        %1240 = vmatmul.mubr.f32.gmra.mrb[0].mxu0 %v1035
        %v1241 = vpop.f32.mrb[0].mxu0
        %v1242 = vadd.f32 0.0, %v1241
        %v1243 = vpop.f32.mrb[0].mxu0
        %v1244 = vadd.f32 0.0, %v1243
        %1245 = vmatprep.mubr.f32.mxu0 0.0
        %1246 = vmatmul.mubr.f32.gmra.mrb[0].mxu0 %v1038
        %v1247 = vpop.f32.mrb[0].mxu0
        %v1248 = vadd.f32 0.0, %v1247
        %v1249 = vpop.f32.mrb[0].mxu0
        %v1250 = vadd.f32 0.0, %v1249
        %1251 = vmatprep.mubr.f32.mxu0 0.0
        %1252 = vmatmul.mubr.f32.gmra.mrb[0].mxu0 %v1041
        %v1253 = vpop.f32.mrb[0].mxu0
        %v1254 = vadd.f32 0.0, %v1253
        %v1255 = vpop.f32.mrb[0].mxu0
        %v1256 = vadd.f32 0.0, %v1255
        %1257 = vmatprep.mubr.f32.mxu0 0.0
        %1258 = vmatmul.mubr.f32.gmra.mrb[0].mxu0 %v1044
        %v1259 = vpop.f32.mrb[0].mxu0
        %v1260 = vadd.f32 0.0, %v1259
        %v1261 = vpop.f32.mrb[0].mxu0
        %v1262 = vadd.f32 0.0, %v1261
        %1263 = vmatprep.mubr.f32.mxu0 0.0
        %1264 = vmatmul.mubr.f32.gmra.mrb[0].mxu0 %v1047
        %v1265 = vpop.f32.mrb[0].mxu0
        %v1266 = vadd.f32 0.0, %v1265
        %v1267 = vpop.f32.mrb[0].mxu0
        %v1268 = vadd.f32 0.0, %v1267
        %1269 = vmatprep.mubr.f32.mxu0 0.0
        %1270 = vmatmul.mubr.f32.gmra.mrb[0].mxu0 %v1050
        %v1271 = vpop.f32.mrb[0].mxu0
        %v1272 = vadd.f32 0.0, %v1271
        %v1273 = vpop.f32.mrb[0].mxu0
        %v1274 = vadd.f32 0.0, %v1273
        %1275 = vmatprep.mubr.f32.mxu0 0.0
        %1276 = vmatmul.mubr.f32.gmra.mrb[0].mxu0 %v1053
        %v1277 = vpop.f32.mrb[0].mxu0
        %v1278 = vadd.f32 0.0, %v1277
        %v1279 = vpop.f32.mrb[0].mxu0
        %v1280 = vadd.f32 0.0, %v1279
        %1281 = vmatprep.mubr.f32.mxu0 0.0
        %1282 = vmatmul.mubr.f32.gmra.mrb[0].mxu0 %v1056
        %v1283 = vpop.f32.mrb[0].mxu0
        %v1284 = vadd.f32 0.0, %v1283
        %v1285 = vpop.f32.mrb[0].mxu0
        %v1286 = vadd.f32 0.0, %v1285
        %1287 = vmatprep.mubr.f32.mxu0 0.0
        %1288 = vmatmul.mubr.f32.gmra.mrb[0].mxu0 %v1059
        %v1289 = vpop.f32.mrb[0].mxu0
        %v1290 = vadd.f32 0.0, %v1289
        %v1291 = vpop.f32.mrb[0].mxu0
        %v1292 = vadd.f32 0.0, %v1291
        %1293 = vmatprep.mubr.f32.mxu0 0.0
        %1294 = vmatmul.mubr.f32.gmra.mrb[0].mxu0 %v1062
        %v1295 = vpop.f32.mrb[0].mxu0
        %v1296 = vadd.f32 0.0, %v1295
        %v1297 = vpop.f32.mrb[0].mxu0
        %v1298 = vadd.f32 0.0, %v1297
        %1299 = vmatprep.mubr.f32.mxu0 0.0
        %1300 = vmatmul.mubr.f32.gmra.mrb[0].mxu0 %v1065
        %v1301 = vpop.f32.mrb[0].mxu0
        %v1302 = vadd.f32 0.0, %v1301
        %v1303 = vpop.f32.mrb[0].mxu0
        %v1304 = vadd.f32 0.0, %v1303
        %1305 = vmatprep.mubr.f32.mxu0 0.0
        %1306 = vmatmul.mubr.f32.gmra.mrb[0].mxu0 %v1068
        %v1307 = vpop.f32.mrb[0].mxu0
        %v1308 = vadd.f32 0.0, %v1307
        %v1309 = vpop.f32.mrb[0].mxu0
        %v1310 = vadd.f32 0.0, %v1309
        %1311 = vmatprep.mubr.f32.mxu0 0.0
        %1312 = vmatmul.mubr.f32.gmra.mrb[0].mxu0 %v1071
        %v1313 = vpop.f32.mrb[0].mxu0
        %v1314 = vadd.f32 0.0, %v1313
        %v1315 = vpop.f32.mrb[0].mxu0
        %v1316 = vadd.f32 0.0, %v1315
        %1317 = vmatprep.mubr.f32.mxu0 0.0
        %1318 = vmatmul.mubr.f32.gmra.mrb[0].mxu0 %v1074
        %v1319 = vpop.f32.mrb[0].mxu0
        %v1320 = vadd.f32 0.0, %v1319
        %v1321 = vpop.f32.mrb[0].mxu0
        %v1322 = vadd.f32 0.0, %v1321
        %1323 = vmatprep.mubr.f32.mxu0 0.0
        %1324 = vmatmul.mubr.f32.gmra.mrb[0].mxu0 %v1077
        %v1325 = vpop.f32.mrb[0].mxu0
        %v1326 = vadd.f32 0.0, %v1325
        %v1327 = vpop.f32.mrb[0].mxu0
        %v1328 = vadd.f32 0.0, %v1327
        %1329 = vmatprep.mubr.f32.mxu0 0.0
        %1330 = vmatmul.mubr.f32.gmra.mrb[0].mxu0 %v1080
        %v1331 = vpop.f32.mrb[0].mxu0
        %v1332 = vadd.f32 0.0, %v1331
        %v1333 = vpop.f32.mrb[0].mxu0
        %v1334 = vadd.f32 0.0, %v1333
        %1335 = vmatprep.mubr.f32.mxu0 0.0
        %1336 = vmatmul.mubr.f32.gmra.mrb[0].mxu0 %v1083
        %v1337 = vpop.f32.mrb[0].mxu0
        %v1338 = vadd.f32 0.0, %v1337
        %v1339 = vpop.f32.mrb[0].mxu0
        %v1340 = vadd.f32 0.0, %v1339
        %1341 = vdwg.mxu0
        %v1342 = vmax.f32 %v1152, %v1164
        %v1343 = vmax.f32 %v1158, %v1170
        %v1344 = vmax.f32 %v1342, %v1176
        %v1345 = vmax.f32 %v1343, %v1182
        %v1346 = vmax.f32 %v1344, %v1188
        %v1347 = vmax.f32 %v1345, %v1194
        %v1348 = vmax.f32 %v1346, %v1200
        %v1349 = vmax.f32 %v1347, %v1206
        %v1350 = vmax.f32 %v1348, %v1212
        %v1351 = vmax.f32 %v1349, %v1218
        %v1352 = vmax.f32 %v1350, %v1224
        %v1353 = vmax.f32 %v1351, %v1230
        %v1354 = vmax.f32 %v1352, %v1236
        %v1355 = vmax.f32 %v1353, %v1242
        %v1356 = vmax.f32 %v1354, %v1248
        %v1357 = vmax.f32 %v1355, %v1254
        %v1358 = vmax.f32 %v1356, %v1260
        %v1359 = vmax.f32 %v1357, %v1266
        %v1360 = vmax.f32 %v1358, %v1272
        %v1361 = vmax.f32 %v1359, %v1278
        %v1362 = vmax.f32 %v1360, %v1284
        %v1363 = vmax.f32 %v1361, %v1290
        %v1364 = vmax.f32 %v1362, %v1296
        %v1365 = vmax.f32 %v1363, %v1302
        %v1366 = vmax.f32 %v1364, %v1308
        %v1367 = vmax.f32 %v1365, %v1314
        %v1368 = vmax.f32 %v1366, %v1320
        %v1369 = vmax.f32 %v1367, %v1326
        %v1370 = vmax.f32 %v1368, %v1332
        %v1371 = vmax.f32 %v1369, %v1338
        %v1372 = vmax.f32 %v1370, %v1371
        %v1373 = vrot.slane %v1372, 4
        %v1374 = vmax.f32 %v1372, %v1373
        %v1375 = vrot.slane %v1374, 2
        %v1376 = vmax.f32 %v1374, %v1375
        %v1377 = vrot.slane %v1376, 1
        %v1378 = vmax.f32 %v1376, %v1377
        %v1379 = vmax.f32 %v1154, %v1166
        %v1380 = vmax.f32 %v1160, %v1172
        %v1381 = vmax.f32 %v1379, %v1178
        %v1382 = vmax.f32 %v1380, %v1184
        %v1383 = vmax.f32 %v1381, %v1190
        %v1384 = vmax.f32 %v1382, %v1196
        %v1385 = vmax.f32 %v1383, %v1202
        %v1386 = vmax.f32 %v1384, %v1208
        %v1387 = vmax.f32 %v1385, %v1214
        %v1388 = vmax.f32 %v1386, %v1220
        %v1389 = vmax.f32 %v1387, %v1226
        %v1390 = vmax.f32 %v1388, %v1232
        %v1391 = vmax.f32 %v1389, %v1238
        %v1392 = vmax.f32 %v1390, %v1244
        %v1393 = vmax.f32 %v1391, %v1250
        %v1394 = vmax.f32 %v1392, %v1256
        %v1395 = vmax.f32 %v1393, %v1262
        %v1396 = vmax.f32 %v1394, %v1268
        %v1397 = vmax.f32 %v1395, %v1274
        %v1398 = vmax.f32 %v1396, %v1280
        %v1399 = vmax.f32 %v1397, %v1286
        %v1400 = vmax.f32 %v1398, %v1292
        %v1401 = vmax.f32 %v1399, %v1298
        %v1402 = vmax.f32 %v1400, %v1304
        %v1403 = vmax.f32 %v1401, %v1310
        %v1404 = vmax.f32 %v1402, %v1316
        %v1405 = vmax.f32 %v1403, %v1322
        %v1406 = vmax.f32 %v1404, %v1328
        %v1407 = vmax.f32 %v1405, %v1334
        %v1408 = vmax.f32 %v1406, %v1340
        %v1409 = vmax.f32 %v1407, %v1408
        %v1410 = vrot.slane %v1409, 4
        %v1411 = vmax.f32 %v1409, %v1410
        %v1412 = vrot.slane %v1411, 2
        %v1413 = vmax.f32 %v1411, %v1412
        %v1414 = vrot.slane %v1413, 1
        %v1415 = vmax.f32 %v1413, %v1414
        %v1416 = vsub.f32 %v1152, %v1378
        %v1417 = vsub.f32 %v1154, %v1415
        %v1418 = vsub.f32 %v1158, %v1378
        %v1419 = vsub.f32 %v1160, %v1415
        %v1420 = vsub.f32 %v1164, %v1378
        %v1421 = vsub.f32 %v1166, %v1415
        %v1422 = vsub.f32 %v1170, %v1378
        %v1423 = vsub.f32 %v1172, %v1415
        %v1424 = vsub.f32 %v1176, %v1378
        %v1425 = vsub.f32 %v1178, %v1415
        %v1426 = vsub.f32 %v1182, %v1378
        %v1427 = vsub.f32 %v1184, %v1415
        %v1428 = vsub.f32 %v1188, %v1378
        %v1429 = vsub.f32 %v1190, %v1415
        %v1430 = vsub.f32 %v1194, %v1378
        %v1431 = vsub.f32 %v1196, %v1415
        %v1432 = vsub.f32 %v1200, %v1378
        %v1433 = vsub.f32 %v1202, %v1415
        %v1434 = vsub.f32 %v1206, %v1378
        %v1435 = vsub.f32 %v1208, %v1415
        %v1436 = vsub.f32 %v1212, %v1378
        %v1437 = vsub.f32 %v1214, %v1415
        %v1438 = vsub.f32 %v1218, %v1378
        %v1439 = vsub.f32 %v1220, %v1415
        %v1440 = vsub.f32 %v1224, %v1378
        %v1441 = vsub.f32 %v1226, %v1415
        %v1442 = vsub.f32 %v1230, %v1378
        %v1443 = vsub.f32 %v1232, %v1415
        %v1444 = vsub.f32 %v1236, %v1378
        %v1445 = vsub.f32 %v1238, %v1415
        %v1446 = vsub.f32 %v1242, %v1378
        %v1447 = vsub.f32 %v1244, %v1415
        %v1448 = vsub.f32 %v1248, %v1378
        %v1449 = vsub.f32 %v1250, %v1415
        %v1450 = vsub.f32 %v1254, %v1378
        %v1451 = vsub.f32 %v1256, %v1415
        %v1452 = vsub.f32 %v1260, %v1378
        %v1453 = vsub.f32 %v1262, %v1415
        %v1454 = vsub.f32 %v1266, %v1378
        %v1455 = vsub.f32 %v1268, %v1415
        %v1456 = vsub.f32 %v1272, %v1378
        %v1457 = vsub.f32 %v1274, %v1415
        %v1458 = vsub.f32 %v1278, %v1378
        %v1459 = vsub.f32 %v1280, %v1415
        %v1460 = vsub.f32 %v1284, %v1378
        %v1461 = vsub.f32 %v1286, %v1415
        %v1462 = vsub.f32 %v1290, %v1378
        %v1463 = vsub.f32 %v1292, %v1415
        %v1464 = vsub.f32 %v1296, %v1378
        %v1465 = vsub.f32 %v1298, %v1415
        %v1466 = vsub.f32 %v1302, %v1378
        %v1467 = vsub.f32 %v1304, %v1415
        %v1468 = vsub.f32 %v1308, %v1378
        %v1469 = vsub.f32 %v1310, %v1415
        %v1470 = vsub.f32 %v1314, %v1378
        %v1471 = vsub.f32 %v1316, %v1415
        %v1472 = vsub.f32 %v1320, %v1378
        %v1473 = vsub.f32 %v1322, %v1415
        %v1474 = vsub.f32 %v1326, %v1378
        %v1475 = vsub.f32 %v1328, %v1415
        %v1476 = vsub.f32 %v1332, %v1378
        %v1477 = vsub.f32 %v1334, %v1415
        %v1478 = vsub.f32 %v1338, %v1378
        %v1479 = vsub.f32 %v1340, %v1415
        %v1480 = vmul.f32 %v1416, 1.442695
        %v1481 = vpow.pop %v1480
        %v1482 = vmul.f32 %v1417, 1.442695
        %v1483 = vpow.pop %v1482
        %v1484 = vmul.f32 %v1418, 1.442695
        %v1485 = vpow.pop %v1484
        %v1486 = vmul.f32 %v1419, 1.442695
        %v1487 = vpow.pop %v1486
        %v1488 = vmul.f32 %v1420, 1.442695
        %v1489 = vpow.pop %v1488
        %v1490 = vmul.f32 %v1421, 1.442695
        %v1491 = vpow.pop %v1490
        %v1492 = vmul.f32 %v1422, 1.442695
        %v1493 = vpow.pop %v1492
        %v1494 = vmul.f32 %v1423, 1.442695
        %v1495 = vpow.pop %v1494
        %v1496 = vmul.f32 %v1424, 1.442695
        %v1497 = vpow.pop %v1496
        %v1498 = vmul.f32 %v1425, 1.442695
        %v1499 = vpow.pop %v1498
        %v1500 = vmul.f32 %v1426, 1.442695
        %v1501 = vpow.pop %v1500
        %v1502 = vmul.f32 %v1427, 1.442695
        %v1503 = vpow.pop %v1502
        %v1504 = vmul.f32 %v1428, 1.442695
        %v1505 = vpow.pop %v1504
        %v1506 = vmul.f32 %v1429, 1.442695
        %v1507 = vpow.pop %v1506
        %v1508 = vmul.f32 %v1430, 1.442695
        %v1509 = vpow.pop %v1508
        %v1510 = vmul.f32 %v1431, 1.442695
        %v1511 = vpow.pop %v1510
        %v1512 = vmul.f32 %v1432, 1.442695
        %v1513 = vpow.pop %v1512
        %v1514 = vmul.f32 %v1433, 1.442695
        %v1515 = vpow.pop %v1514
        %v1516 = vmul.f32 %v1434, 1.442695
        %v1517 = vpow.pop %v1516
        %v1518 = vmul.f32 %v1435, 1.442695
        %v1519 = vpow.pop %v1518
        %v1520 = vmul.f32 %v1436, 1.442695
        %v1521 = vpow.pop %v1520
        %v1522 = vmul.f32 %v1437, 1.442695
        %v1523 = vpow.pop %v1522
        %v1524 = vmul.f32 %v1438, 1.442695
        %v1525 = vpow.pop %v1524
        %v1526 = vmul.f32 %v1439, 1.442695
        %v1527 = vpow.pop %v1526
        %v1528 = vmul.f32 %v1440, 1.442695
        %v1529 = vpow.pop %v1528
        %v1530 = vmul.f32 %v1441, 1.442695
        %v1531 = vpow.pop %v1530
        %v1532 = vmul.f32 %v1442, 1.442695
        %v1533 = vpow.pop %v1532
        %v1534 = vmul.f32 %v1443, 1.442695
        %v1535 = vpow.pop %v1534
        %v1536 = vmul.f32 %v1444, 1.442695
        %v1537 = vpow.pop %v1536
        %v1538 = vmul.f32 %v1445, 1.442695
        %v1539 = vpow.pop %v1538
        %v1540 = vmul.f32 %v1446, 1.442695
        %v1541 = vpow.pop %v1540
        %v1542 = vmul.f32 %v1447, 1.442695
        %v1543 = vpow.pop %v1542
        %v1544 = vmul.f32 %v1448, 1.442695
        %v1545 = vpow.pop %v1544
        %v1546 = vmul.f32 %v1449, 1.442695
        %v1547 = vpow.pop %v1546
        %v1548 = vmul.f32 %v1450, 1.442695
        %v1549 = vpow.pop %v1548
        %v1550 = vmul.f32 %v1451, 1.442695
        %v1551 = vpow.pop %v1550
        %v1552 = vmul.f32 %v1452, 1.442695
        %v1553 = vpow.pop %v1552
        %v1554 = vmul.f32 %v1453, 1.442695
        %v1555 = vpow.pop %v1554
        %v1556 = vmul.f32 %v1454, 1.442695
        %v1557 = vpow.pop %v1556
        %v1558 = vmul.f32 %v1455, 1.442695
        %v1559 = vpow.pop %v1558
        %v1560 = vmul.f32 %v1456, 1.442695
        %v1561 = vpow.pop %v1560
        %v1562 = vmul.f32 %v1457, 1.442695
        %v1563 = vpow.pop %v1562
        %v1564 = vmul.f32 %v1458, 1.442695
        %v1565 = vpow.pop %v1564
        %v1566 = vmul.f32 %v1459, 1.442695
        %v1567 = vpow.pop %v1566
        %v1568 = vmul.f32 %v1460, 1.442695
        %v1569 = vpow.pop %v1568
        %v1570 = vmul.f32 %v1461, 1.442695
        %v1571 = vpow.pop %v1570
        %v1572 = vmul.f32 %v1462, 1.442695
        %v1573 = vpow.pop %v1572
        %v1574 = vmul.f32 %v1463, 1.442695
        %v1575 = vpow.pop %v1574
        %v1576 = vmul.f32 %v1464, 1.442695
        %v1577 = vpow.pop %v1576
        %v1578 = vmul.f32 %v1465, 1.442695
        %v1579 = vpow.pop %v1578
        %v1580 = vmul.f32 %v1466, 1.442695
        %v1581 = vpow.pop %v1580
        %v1582 = vmul.f32 %v1467, 1.442695
        %v1583 = vpow.pop %v1582
        %v1584 = vmul.f32 %v1468, 1.442695
        %v1585 = vpow.pop %v1584
        %v1586 = vmul.f32 %v1469, 1.442695
        %v1587 = vpow.pop %v1586
        %v1588 = vmul.f32 %v1470, 1.442695
        %v1589 = vpow.pop %v1588
        %v1590 = vmul.f32 %v1471, 1.442695
        %v1591 = vpow.pop %v1590
        %v1592 = vmul.f32 %v1472, 1.442695
        %v1593 = vpow.pop %v1592
        %v1594 = vmul.f32 %v1473, 1.442695
        %v1595 = vpow.pop %v1594
        %v1596 = vmul.f32 %v1474, 1.442695
        %v1597 = vpow.pop %v1596
        %v1598 = vmul.f32 %v1475, 1.442695
        %v1599 = vpow.pop %v1598
        %v1600 = vmul.f32 %v1476, 1.442695
        %v1601 = vpow.pop %v1600
        %v1602 = vmul.f32 %v1477, 1.442695
        %v1603 = vpow.pop %v1602
        %v1604 = vmul.f32 %v1478, 1.442695
        %v1605 = vpow.pop %v1604
        %v1606 = vmul.f32 %v1479, 1.442695
        %v1607 = vpow.pop %v1606
        %v1608 = vadd.f32 %v1481, %v1485
        %v1609 = vadd.f32 %v1608, %v1489
        %v1610 = vadd.f32 %v1609, %v1493
        %v1611 = vadd.f32 %v1610, %v1497
        %v1612 = vadd.f32 %v1611, %v1501
        %v1613 = vadd.f32 %v1612, %v1505
        %v1614 = vadd.f32 %v1613, %v1509
        %v1615 = vadd.f32 %v1614, %v1513
        %v1616 = vadd.f32 %v1615, %v1517
        %v1617 = vadd.f32 %v1616, %v1521
        %v1618 = vadd.f32 %v1617, %v1525
        %v1619 = vadd.f32 %v1618, %v1529
        %v1620 = vadd.f32 %v1619, %v1533
        %v1621 = vadd.f32 %v1620, %v1537
        %v1622 = vadd.f32 %v1621, %v1541
        %v1623 = vadd.f32 %v1622, %v1545
        %v1624 = vadd.f32 %v1623, %v1549
        %v1625 = vadd.f32 %v1624, %v1553
        %v1626 = vadd.f32 %v1625, %v1557
        %v1627 = vadd.f32 %v1626, %v1561
        %v1628 = vadd.f32 %v1627, %v1565
        %v1629 = vadd.f32 %v1628, %v1569
        %v1630 = vadd.f32 %v1629, %v1573
        %v1631 = vadd.f32 %v1630, %v1577
        %v1632 = vadd.f32 %v1631, %v1581
        %v1633 = vadd.f32 %v1632, %v1585
        %v1634 = vadd.f32 %v1633, %v1589
        %v1635 = vadd.f32 %v1634, %v1593
        %v1636 = vadd.f32 %v1635, %v1597
        %v1637 = vadd.f32 %v1636, %v1601
        %v1638 = vadd.f32 %v1637, %v1605
        %v1639 = vrot.slane %v1638, 4
        %v1640 = vadd.f32 %v1638, %v1639
        %v1641 = vrot.slane %v1640, 2
        %v1642 = vadd.f32 %v1640, %v1641
        %v1643 = vrot.slane %v1642, 1
        %v1644 = vadd.f32 %v1642, %v1643
        %v1645 = vadd.f32 %v1483, %v1487
        %v1646 = vadd.f32 %v1645, %v1491
        %v1647 = vadd.f32 %v1646, %v1495
        %v1648 = vadd.f32 %v1647, %v1499
        %v1649 = vadd.f32 %v1648, %v1503
        %v1650 = vadd.f32 %v1649, %v1507
        %v1651 = vadd.f32 %v1650, %v1511
        %v1652 = vadd.f32 %v1651, %v1515
        %v1653 = vadd.f32 %v1652, %v1519
        %v1654 = vadd.f32 %v1653, %v1523
        %v1655 = vadd.f32 %v1654, %v1527
        %v1656 = vadd.f32 %v1655, %v1531
        %v1657 = vadd.f32 %v1656, %v1535
        %v1658 = vadd.f32 %v1657, %v1539
        %v1659 = vadd.f32 %v1658, %v1543
        %v1660 = vadd.f32 %v1659, %v1547
        %v1661 = vadd.f32 %v1660, %v1551
        %v1662 = vadd.f32 %v1661, %v1555
        %v1663 = vadd.f32 %v1662, %v1559
        %v1664 = vadd.f32 %v1663, %v1563
        %v1665 = vadd.f32 %v1664, %v1567
        %v1666 = vadd.f32 %v1665, %v1571
        %v1667 = vadd.f32 %v1666, %v1575
        %v1668 = vadd.f32 %v1667, %v1579
        %v1669 = vadd.f32 %v1668, %v1583
        %v1670 = vadd.f32 %v1669, %v1587
        %v1671 = vadd.f32 %v1670, %v1591
        %v1672 = vadd.f32 %v1671, %v1595
        %v1673 = vadd.f32 %v1672, %v1599
        %v1674 = vadd.f32 %v1673, %v1603
        %v1675 = vadd.f32 %v1674, %v1607
        %v1676 = vrot.slane %v1675, 4
        %v1677 = vadd.f32 %v1675, %v1676
        %v1678 = vrot.slane %v1677, 2
        %v1679 = vadd.f32 %v1677, %v1678
        %v1680 = vrot.slane %v1679, 1
        %v1681 = vadd.f32 %v1679, %v1680
        %v1682 = vrcp.pop %v1644
        %v1683 = vrcp.pop %v1681
        %v1684 = vmul.f32 %v1481, %v1682
        %v1685 = vmul.f32 %v1483, %v1683
        %v1686 = vmul.f32 %v1485, %v1682
        %v1687 = vmul.f32 %v1487, %v1683
        %v1688 = vmul.f32 %v1489, %v1682
        %v1689 = vmul.f32 %v1491, %v1683
        %v1690 = vmul.f32 %v1493, %v1682
        %v1691 = vmul.f32 %v1495, %v1683
        %v1692 = vmul.f32 %v1497, %v1682
        %v1693 = vmul.f32 %v1499, %v1683
        %v1694 = vmul.f32 %v1501, %v1682
        %v1695 = vmul.f32 %v1503, %v1683
        %v1696 = vmul.f32 %v1505, %v1682
        %v1697 = vmul.f32 %v1507, %v1683
        %v1698 = vmul.f32 %v1509, %v1682
        %v1699 = vmul.f32 %v1511, %v1683
        %v1700 = vmul.f32 %v1513, %v1682
        %v1701 = vmul.f32 %v1515, %v1683
        %v1702 = vmul.f32 %v1517, %v1682
        %v1703 = vmul.f32 %v1519, %v1683
        %v1704 = vmul.f32 %v1521, %v1682
        %v1705 = vmul.f32 %v1523, %v1683
        %v1706 = vmul.f32 %v1525, %v1682
        %v1707 = vmul.f32 %v1527, %v1683
        %v1708 = vmul.f32 %v1529, %v1682
        %v1709 = vmul.f32 %v1531, %v1683
        %v1710 = vmul.f32 %v1533, %v1682
        %v1711 = vmul.f32 %v1535, %v1683
        %v1712 = vmul.f32 %v1537, %v1682
        %v1713 = vmul.f32 %v1539, %v1683
        %v1714 = vmul.f32 %v1541, %v1682
        %v1715 = vmul.f32 %v1543, %v1683
        %v1716 = vmul.f32 %v1545, %v1682
        %v1717 = vmul.f32 %v1547, %v1683
        %v1718 = vmul.f32 %v1549, %v1682
        %v1719 = vmul.f32 %v1551, %v1683
        %v1720 = vmul.f32 %v1553, %v1682
        %v1721 = vmul.f32 %v1555, %v1683
        %v1722 = vmul.f32 %v1557, %v1682
        %v1723 = vmul.f32 %v1559, %v1683
        %v1724 = vmul.f32 %v1561, %v1682
        %v1725 = vmul.f32 %v1563, %v1683
        %v1726 = vmul.f32 %v1565, %v1682
        %v1727 = vmul.f32 %v1567, %v1683
        %v1728 = vmul.f32 %v1569, %v1682
        %v1729 = vmul.f32 %v1571, %v1683
        %v1730 = vmul.f32 %v1573, %v1682
        %v1731 = vmul.f32 %v1575, %v1683
        %v1732 = vmul.f32 %v1577, %v1682
        %v1733 = vmul.f32 %v1579, %v1683
        %v1734 = vmul.f32 %v1581, %v1682
        %v1735 = vmul.f32 %v1583, %v1683
        %v1736 = vmul.f32 %v1585, %v1682
        %v1737 = vmul.f32 %v1587, %v1683
        %v1738 = vmul.f32 %v1589, %v1682
        %v1739 = vmul.f32 %v1591, %v1683
        %v1740 = vmul.f32 %v1593, %v1682
        %v1741 = vmul.f32 %v1595, %v1683
        %v1742 = vmul.f32 %v1597, %v1682
        %v1743 = vmul.f32 %v1599, %v1683
        %v1744 = vmul.f32 %v1601, %v1682
        %v1745 = vmul.f32 %v1603, %v1683
        %v1746 = vmul.f32 %v1605, %v1682
        %v1747 = vmul.f32 %v1607, %v1683
        %1748 = vmatprep.subr.mxu0 %v1685
        %1749 = vmatpush1.msra.mxu0 %v1684
        %1750 = vmatprep.subr.mxu0 %v1687
        %1751 = vmatpush1.msra.mxu0 %v1686
        %1752 = vmatprep.subr.mxu0 %v1689
        %1753 = vmatpush1.msra.mxu0 %v1688
        %1754 = vmatprep.subr.mxu0 %v1691
        %1755 = vmatpush1.msra.mxu0 %v1690
        %1756 = vmatprep.subr.mxu0 %v1693
        %1757 = vmatpush1.msra.mxu0 %v1692
        %1758 = vmatprep.subr.mxu0 %v1695
        %1759 = vmatpush1.msra.mxu0 %v1694
        %1760 = vmatprep.subr.mxu0 %v1697
        %1761 = vmatpush1.msra.mxu0 %v1696
        %1762 = vmatprep.subr.mxu0 %v1699
        %1763 = vmatpush1.msra.mxu0 %v1698
        %1764 = vmatprep.subr.mxu0 %v1701
        %1765 = vmatpush1.msra.mxu0 %v1700
        %1766 = vmatprep.subr.mxu0 %v1703
        %1767 = vmatpush1.msra.mxu0 %v1702
        %1768 = vmatprep.subr.mxu0 %v1705
        %1769 = vmatpush1.msra.mxu0 %v1704
        %1770 = vmatprep.subr.mxu0 %v1707
        %1771 = vmatpush1.msra.mxu0 %v1706
        %1772 = vmatprep.subr.mxu0 %v1709
        %1773 = vmatpush1.msra.mxu0 %v1708
        %1774 = vmatprep.subr.mxu0 %v1711
        %1775 = vmatpush1.msra.mxu0 %v1710
        %1776 = vmatprep.subr.mxu0 %v1713
        %1777 = vmatpush1.msra.mxu0 %v1712
        %1778 = vmatprep.subr.mxu0 %v1715
        %1779 = vmatpush1.msra.mxu0 %v1714
        %1780 = vmatprep.subr.mxu0 %v1717
        %1781 = vmatpush1.msra.mxu0 %v1716
        %1782 = vmatprep.subr.mxu0 %v1719
        %1783 = vmatpush1.msra.mxu0 %v1718
        %1784 = vmatprep.subr.mxu0 %v1721
        %1785 = vmatpush1.msra.mxu0 %v1720
        %1786 = vmatprep.subr.mxu0 %v1723
        %1787 = vmatpush1.msra.mxu0 %v1722
        %1788 = vmatprep.subr.mxu0 %v1725
        %1789 = vmatpush1.msra.mxu0 %v1724
        %1790 = vmatprep.subr.mxu0 %v1727
        %1791 = vmatpush1.msra.mxu0 %v1726
        %1792 = vmatprep.subr.mxu0 %v1729
        %1793 = vmatpush1.msra.mxu0 %v1728
        %1794 = vmatprep.subr.mxu0 %v1731
        %1795 = vmatpush1.msra.mxu0 %v1730
        %1796 = vmatprep.subr.mxu0 %v1733
        %1797 = vmatpush1.msra.mxu0 %v1732
        %1798 = vmatprep.subr.mxu0 %v1735
        %1799 = vmatpush1.msra.mxu0 %v1734
        %1800 = vmatprep.subr.mxu0 %v1737
        %1801 = vmatpush1.msra.mxu0 %v1736
        %1802 = vmatprep.subr.mxu0 %v1739
        %1803 = vmatpush1.msra.mxu0 %v1738
        %1804 = vmatprep.subr.mxu0 %v1741
        %1805 = vmatpush1.msra.mxu0 %v1740
        %1806 = vmatprep.subr.mxu0 %v1743
        %1807 = vmatpush1.msra.mxu0 %v1742
        %1808 = vmatprep.subr.mxu0 %v1745
        %1809 = vmatpush1.msra.mxu0 %v1744
        %1810 = vmatprep.subr.mxu0 %v1747
        %1811 = vmatpush1.msra.mxu0 %v1746
        %1812 = vmatprep.mubr.f32.mxu0 %v916
        %1813 = vmatmul.mubr.f32.gmra.mrb[0].mxu0 %v914
        %v1814 = vpop.f32.mrb[0].mxu0
        %v1815 = vadd.f32 0.0, %v1814
        %v1816 = vpop.f32.mrb[0].mxu0
        %v1817 = vadd.f32 0.0, %v1816
        %1818 = vdwg.mxu0
        %1819 = vxpose.xlu0.b32.start [1/16] %v742, 128
        %1820 = vxpose.xlu0.b32.cont [2/16] 0.0, 128
        %1821 = vxpose.xlu0.b32.cont [3/16] 0.0, 128
        %1822 = vxpose.xlu0.b32.cont [4/16] 0.0, 128
        %1823 = vxpose.xlu0.b32.cont [5/16] 0.0, 128
        %1824 = vxpose.xlu0.b32.cont [6/16] 0.0, 128
        %1825 = vxpose.xlu0.b32.cont [7/16] 0.0, 128
        %1826 = vxpose.xlu0.b32.cont [8/16] 0.0, 128
        %1827 = vxpose.xlu0.b32.cont [9/16] 0.0, 128
        %1828 = vxpose.xlu0.b32.cont [10/16] 0.0, 128
        %1829 = vxpose.xlu0.b32.cont [11/16] 0.0, 128
        %1830 = vxpose.xlu0.b32.cont [12/16] 0.0, 128
        %1831 = vxpose.xlu0.b32.cont [13/16] 0.0, 128
        %1832 = vxpose.xlu0.b32.cont [14/16] 0.0, 128
        %1833 = vxpose.xlu0.b32.cont [15/16] 0.0, 128
        %1834 = vxpose.xlu0.b32.end [16/16] 0.0, 128
        %v1835 = vpop.trf.xlu0
        %v1836 = vpop.trf.xlu0
        %v1837 = vpop.trf.xlu0
        %v1838 = vpop.trf.xlu0
        %v1839 = vpop.trf.xlu0
        %v1840 = vpop.trf.xlu0
        %v1841 = vpop.trf.xlu0
        %v1842 = vpop.trf.xlu0
        %v1843 = vpop.trf.xlu0
        %v1844 = vpop.trf.xlu0
        %v1845 = vpop.trf.xlu0
        %v1846 = vpop.trf.xlu0
        %v1847 = vpop.trf.xlu0
        %v1848 = vpop.trf.xlu0
        %v1849 = vpop.trf.xlu0
        %v1850 = vpop.trf.xlu0
        %1851 = vxpose.xlu0.b32.start [1/16] %v744, 128
        %1852 = vxpose.xlu0.b32.cont [2/16] 0.0, 128
        %1853 = vxpose.xlu0.b32.cont [3/16] 0.0, 128
        %1854 = vxpose.xlu0.b32.cont [4/16] 0.0, 128
        %1855 = vxpose.xlu0.b32.cont [5/16] 0.0, 128
        %1856 = vxpose.xlu0.b32.cont [6/16] 0.0, 128
        %1857 = vxpose.xlu0.b32.cont [7/16] 0.0, 128
        %1858 = vxpose.xlu0.b32.cont [8/16] 0.0, 128
        %1859 = vxpose.xlu0.b32.cont [9/16] 0.0, 128
        %1860 = vxpose.xlu0.b32.cont [10/16] 0.0, 128
        %1861 = vxpose.xlu0.b32.cont [11/16] 0.0, 128
        %1862 = vxpose.xlu0.b32.cont [12/16] 0.0, 128
        %1863 = vxpose.xlu0.b32.cont [13/16] 0.0, 128
        %1864 = vxpose.xlu0.b32.cont [14/16] 0.0, 128
        %1865 = vxpose.xlu0.b32.cont [15/16] 0.0, 128
        %1866 = vxpose.xlu0.b32.end [16/16] 0.0, 128
        %v1867 = vpop.trf.xlu0
        %v1868 = vpop.trf.xlu0
        %v1869 = vpop.trf.xlu0
        %v1870 = vpop.trf.xlu0
        %v1871 = vpop.trf.xlu0
        %v1872 = vpop.trf.xlu0
        %v1873 = vpop.trf.xlu0
        %v1874 = vpop.trf.xlu0
        %v1875 = vpop.trf.xlu0
        %v1876 = vpop.trf.xlu0
        %v1877 = vpop.trf.xlu0
        %v1878 = vpop.trf.xlu0
        %v1879 = vpop.trf.xlu0
        %v1880 = vpop.trf.xlu0
        %v1881 = vpop.trf.xlu0
        %v1882 = vpop.trf.xlu0
        %v1884 = vsel %vm988, %v1835, 0
        %v1887 = vsel %vm988, %v1836, 0
        %v1890 = vsel %vm988, %v1837, 0
        %v1893 = vsel %vm988, %v1838, 0
        %v1896 = vsel %vm988, %v1839, 0
        %v1899 = vsel %vm988, %v1840, 0
        %v1902 = vsel %vm988, %v1841, 0
        %v1905 = vsel %vm988, %v1842, 0
        %v1908 = vsel %vm988, %v1843, 0
        %v1911 = vsel %vm988, %v1844, 0
        %v1914 = vsel %vm988, %v1845, 0
        %v1917 = vsel %vm988, %v1846, 0
        %v1920 = vsel %vm988, %v1847, 0
        %v1923 = vsel %vm988, %v1848, 0
        %v1926 = vsel %vm988, %v1849, 0
        %v1929 = vsel %vm988, %v1850, 0
        %v1932 = vsel %vm988, %v1867, 0
        %v1935 = vsel %vm988, %v1868, 0
        %v1938 = vsel %vm988, %v1869, 0
        %v1941 = vsel %vm988, %v1870, 0
        %v1944 = vsel %vm988, %v1871, 0
        %v1947 = vsel %vm988, %v1872, 0
        %v1950 = vsel %vm988, %v1873, 0
        %v1953 = vsel %vm988, %v1874, 0
        %v1956 = vsel %vm988, %v1875, 0
        %v1959 = vsel %vm988, %v1876, 0
        %v1962 = vsel %vm988, %v1877, 0
        %v1965 = vsel %vm988, %v1878, 0
        %v1968 = vsel %vm988, %v1879, 0
        %v1971 = vsel %vm988, %v1880, 0
        %v1974 = vsel %vm988, %v1881, 0
        %v1977 = vsel %vm988, %v1882, 0
        %1979 = vmatprep.subr.mxu0 %v833
        %1980 = vmatpush1.msra.mxu0 %v831
        %1981 = vmatprep.subr.mxu0 0.0
        %1982 = vmatpush1.msra.mxu0 0.0
        %1983 = vmatprep.subr.mxu0 0.0
        %1984 = vmatpush1.msra.mxu0 0.0
        %1985 = vmatprep.subr.mxu0 0.0
        %1986 = vmatpush1.msra.mxu0 0.0
        %1987 = vmatprep.subr.mxu0 0.0
        %1988 = vmatpush1.msra.mxu0 0.0
        %1989 = vmatprep.subr.mxu0 0.0
        %1990 = vmatpush1.msra.mxu0 0.0
        %1991 = vmatprep.subr.mxu0 0.0
        %1992 = vmatpush1.msra.mxu0 0.0
        %1993 = vmatprep.subr.mxu0 0.0
        %1994 = vmatpush1.msra.mxu0 0.0
        %1995 = vmatprep.subr.mxu0 0.0
        %1996 = vmatpush1.msra.mxu0 0.0
        %1997 = vmatprep.subr.mxu0 0.0
        %1998 = vmatpush1.msra.mxu0 0.0
        %1999 = vmatprep.subr.mxu0 0.0
        %2000 = vmatpush1.msra.mxu0 0.0
        %2001 = vmatprep.subr.mxu0 0.0
        %2002 = vmatpush1.msra.mxu0 0.0
        %2003 = vmatprep.subr.mxu0 0.0
        %2004 = vmatpush1.msra.mxu0 0.0
        %2005 = vmatprep.subr.mxu0 0.0
        %2006 = vmatpush1.msra.mxu0 0.0
        %2007 = vmatprep.subr.mxu0 0.0
        %2008 = vmatpush1.msra.mxu0 0.0
        %2009 = vmatprep.subr.mxu0 0.0
        %2010 = vmatpush1.msra.mxu0 0.0
        %2011 = vmatprep.subr.mxu0 0.0
        %2012 = vmatpush1.msra.mxu0 0.0
        %2013 = vmatprep.subr.mxu0 0.0
        %2014 = vmatpush1.msra.mxu0 0.0
        %2015 = vmatprep.subr.mxu0 0.0
        %2016 = vmatpush1.msra.mxu0 0.0
        %2017 = vmatprep.subr.mxu0 0.0
        %2018 = vmatpush1.msra.mxu0 0.0
        %2019 = vmatprep.subr.mxu0 0.0
        %2020 = vmatpush1.msra.mxu0 0.0
        %2021 = vmatprep.subr.mxu0 0.0
        %2022 = vmatpush1.msra.mxu0 0.0
        %2023 = vmatprep.subr.mxu0 0.0
        %2024 = vmatpush1.msra.mxu0 0.0
        %2025 = vmatprep.subr.mxu0 0.0
        %2026 = vmatpush1.msra.mxu0 0.0
        %2027 = vmatprep.subr.mxu0 0.0
        %2028 = vmatpush1.msra.mxu0 0.0
        %2029 = vmatprep.subr.mxu0 0.0
        %2030 = vmatpush1.msra.mxu0 0.0
        %2031 = vmatprep.subr.mxu0 0.0
        %2032 = vmatpush1.msra.mxu0 0.0
        %2033 = vmatprep.subr.mxu0 0.0
        %2034 = vmatpush1.msra.mxu0 0.0
        %2035 = vmatprep.subr.mxu0 0.0
        %2036 = vmatpush1.msra.mxu0 0.0
        %2037 = vmatprep.subr.mxu0 0.0
        %2038 = vmatpush1.msra.mxu0 0.0
        %2039 = vmatprep.subr.mxu0 0.0
        %2040 = vmatpush1.msra.mxu0 0.0
        %2041 = vmatprep.subr.mxu0 0.0
        %2042 = vmatpush1.msra.mxu0 0.0
        %2043 = vmatprep.mubr.f32.mxu0 0.0
        %2044 = vmatmul.mubr.f32.gmra.mrb[0].mxu0 %v1884
        %v2045 = vpop.f32.mrb[0].mxu0
        %v2046 = vadd.f32 0.0, %v2045
        %v2047 = vpop.f32.mrb[0].mxu0
        %v2048 = vadd.f32 0.0, %v2047
        %2049 = vmatprep.mubr.f32.mxu0 0.0
        %2050 = vmatmul.mubr.f32.gmra.mrb[0].mxu0 %v1887
        %v2051 = vpop.f32.mrb[0].mxu0
        %v2052 = vadd.f32 0.0, %v2051
        %v2053 = vpop.f32.mrb[0].mxu0
        %v2054 = vadd.f32 0.0, %v2053
        %2055 = vmatprep.mubr.f32.mxu0 0.0
        %2056 = vmatmul.mubr.f32.gmra.mrb[0].mxu0 %v1890
        %v2057 = vpop.f32.mrb[0].mxu0
        %v2058 = vadd.f32 0.0, %v2057
        %v2059 = vpop.f32.mrb[0].mxu0
        %v2060 = vadd.f32 0.0, %v2059
        %2061 = vmatprep.mubr.f32.mxu0 0.0
        %2062 = vmatmul.mubr.f32.gmra.mrb[0].mxu0 %v1893
        %v2063 = vpop.f32.mrb[0].mxu0
        %v2064 = vadd.f32 0.0, %v2063
        %v2065 = vpop.f32.mrb[0].mxu0
        %v2066 = vadd.f32 0.0, %v2065
        %2067 = vmatprep.mubr.f32.mxu0 0.0
        %2068 = vmatmul.mubr.f32.gmra.mrb[0].mxu0 %v1896
        %v2069 = vpop.f32.mrb[0].mxu0
        %v2070 = vadd.f32 0.0, %v2069
        %v2071 = vpop.f32.mrb[0].mxu0
        %v2072 = vadd.f32 0.0, %v2071
        %2073 = vmatprep.mubr.f32.mxu0 0.0
        %2074 = vmatmul.mubr.f32.gmra.mrb[0].mxu0 %v1899
        %v2075 = vpop.f32.mrb[0].mxu0
        %v2076 = vadd.f32 0.0, %v2075
        %v2077 = vpop.f32.mrb[0].mxu0
        %v2078 = vadd.f32 0.0, %v2077
        %2079 = vmatprep.mubr.f32.mxu0 0.0
        %2080 = vmatmul.mubr.f32.gmra.mrb[0].mxu0 %v1902
        %v2081 = vpop.f32.mrb[0].mxu0
        %v2082 = vadd.f32 0.0, %v2081
        %v2083 = vpop.f32.mrb[0].mxu0
        %v2084 = vadd.f32 0.0, %v2083
        %2085 = vmatprep.mubr.f32.mxu0 0.0
        %2086 = vmatmul.mubr.f32.gmra.mrb[0].mxu0 %v1905
        %v2087 = vpop.f32.mrb[0].mxu0
        %v2088 = vadd.f32 0.0, %v2087
        %v2089 = vpop.f32.mrb[0].mxu0
        %v2090 = vadd.f32 0.0, %v2089
        %2091 = vmatprep.mubr.f32.mxu0 0.0
        %2092 = vmatmul.mubr.f32.gmra.mrb[0].mxu0 %v1908
        %v2093 = vpop.f32.mrb[0].mxu0
        %v2094 = vadd.f32 0.0, %v2093
        %v2095 = vpop.f32.mrb[0].mxu0
        %v2096 = vadd.f32 0.0, %v2095
        %2097 = vmatprep.mubr.f32.mxu0 0.0
        %2098 = vmatmul.mubr.f32.gmra.mrb[0].mxu0 %v1911
        %v2099 = vpop.f32.mrb[0].mxu0
        %v2100 = vadd.f32 0.0, %v2099
        %v2101 = vpop.f32.mrb[0].mxu0
        %v2102 = vadd.f32 0.0, %v2101
        %2103 = vmatprep.mubr.f32.mxu0 0.0
        %2104 = vmatmul.mubr.f32.gmra.mrb[0].mxu0 %v1914
        %v2105 = vpop.f32.mrb[0].mxu0
        %v2106 = vadd.f32 0.0, %v2105
        %v2107 = vpop.f32.mrb[0].mxu0
        %v2108 = vadd.f32 0.0, %v2107
        %2109 = vmatprep.mubr.f32.mxu0 0.0
        %2110 = vmatmul.mubr.f32.gmra.mrb[0].mxu0 %v1917
        %v2111 = vpop.f32.mrb[0].mxu0
        %v2112 = vadd.f32 0.0, %v2111
        %v2113 = vpop.f32.mrb[0].mxu0
        %v2114 = vadd.f32 0.0, %v2113
        %2115 = vmatprep.mubr.f32.mxu0 0.0
        %2116 = vmatmul.mubr.f32.gmra.mrb[0].mxu0 %v1920
        %v2117 = vpop.f32.mrb[0].mxu0
        %v2118 = vadd.f32 0.0, %v2117
        %v2119 = vpop.f32.mrb[0].mxu0
        %v2120 = vadd.f32 0.0, %v2119
        %2121 = vmatprep.mubr.f32.mxu0 0.0
        %2122 = vmatmul.mubr.f32.gmra.mrb[0].mxu0 %v1923
        %v2123 = vpop.f32.mrb[0].mxu0
        %v2124 = vadd.f32 0.0, %v2123
        %v2125 = vpop.f32.mrb[0].mxu0
        %v2126 = vadd.f32 0.0, %v2125
        %2127 = vmatprep.mubr.f32.mxu0 0.0
        %2128 = vmatmul.mubr.f32.gmra.mrb[0].mxu0 %v1926
        %v2129 = vpop.f32.mrb[0].mxu0
        %v2130 = vadd.f32 0.0, %v2129
        %v2131 = vpop.f32.mrb[0].mxu0
        %v2132 = vadd.f32 0.0, %v2131
        %2133 = vmatprep.mubr.f32.mxu0 0.0
        %2134 = vmatmul.mubr.f32.gmra.mrb[0].mxu0 %v1929
        %v2135 = vpop.f32.mrb[0].mxu0
        %v2136 = vadd.f32 0.0, %v2135
        %v2137 = vpop.f32.mrb[0].mxu0
        %v2138 = vadd.f32 0.0, %v2137
        %2139 = vmatprep.mubr.f32.mxu0 0.0
        %2140 = vmatmul.mubr.f32.gmra.mrb[0].mxu0 %v1932
        %v2141 = vpop.f32.mrb[0].mxu0
        %v2142 = vadd.f32 0.0, %v2141
        %v2143 = vpop.f32.mrb[0].mxu0
        %v2144 = vadd.f32 0.0, %v2143
        %2145 = vmatprep.mubr.f32.mxu0 0.0
        %2146 = vmatmul.mubr.f32.gmra.mrb[0].mxu0 %v1935
        %v2147 = vpop.f32.mrb[0].mxu0
        %v2148 = vadd.f32 0.0, %v2147
        %v2149 = vpop.f32.mrb[0].mxu0
        %v2150 = vadd.f32 0.0, %v2149
        %2151 = vmatprep.mubr.f32.mxu0 0.0
        %2152 = vmatmul.mubr.f32.gmra.mrb[0].mxu0 %v1938
        %v2153 = vpop.f32.mrb[0].mxu0
        %v2154 = vadd.f32 0.0, %v2153
        %v2155 = vpop.f32.mrb[0].mxu0
        %v2156 = vadd.f32 0.0, %v2155
        %2157 = vmatprep.mubr.f32.mxu0 0.0
        %2158 = vmatmul.mubr.f32.gmra.mrb[0].mxu0 %v1941
        %v2159 = vpop.f32.mrb[0].mxu0
        %v2160 = vadd.f32 0.0, %v2159
        %v2161 = vpop.f32.mrb[0].mxu0
        %v2162 = vadd.f32 0.0, %v2161
        %2163 = vmatprep.mubr.f32.mxu0 0.0
        %2164 = vmatmul.mubr.f32.gmra.mrb[0].mxu0 %v1944
        %v2165 = vpop.f32.mrb[0].mxu0
        %v2166 = vadd.f32 0.0, %v2165
        %v2167 = vpop.f32.mrb[0].mxu0
        %v2168 = vadd.f32 0.0, %v2167
        %2169 = vmatprep.mubr.f32.mxu0 0.0
        %2170 = vmatmul.mubr.f32.gmra.mrb[0].mxu0 %v1947
        %v2171 = vpop.f32.mrb[0].mxu0
        %v2172 = vadd.f32 0.0, %v2171
        %v2173 = vpop.f32.mrb[0].mxu0
        %v2174 = vadd.f32 0.0, %v2173
        %2175 = vmatprep.mubr.f32.mxu0 0.0
        %2176 = vmatmul.mubr.f32.gmra.mrb[0].mxu0 %v1950
        %v2177 = vpop.f32.mrb[0].mxu0
        %v2178 = vadd.f32 0.0, %v2177
        %v2179 = vpop.f32.mrb[0].mxu0
        %v2180 = vadd.f32 0.0, %v2179
        %2181 = vmatprep.mubr.f32.mxu0 0.0
        %2182 = vmatmul.mubr.f32.gmra.mrb[0].mxu0 %v1953
        %v2183 = vpop.f32.mrb[0].mxu0
        %v2184 = vadd.f32 0.0, %v2183
        %v2185 = vpop.f32.mrb[0].mxu0
        %v2186 = vadd.f32 0.0, %v2185
        %2187 = vmatprep.mubr.f32.mxu0 0.0
        %2188 = vmatmul.mubr.f32.gmra.mrb[0].mxu0 %v1956
        %v2189 = vpop.f32.mrb[0].mxu0
        %v2190 = vadd.f32 0.0, %v2189
        %v2191 = vpop.f32.mrb[0].mxu0
        %v2192 = vadd.f32 0.0, %v2191
        %2193 = vmatprep.mubr.f32.mxu0 0.0
        %2194 = vmatmul.mubr.f32.gmra.mrb[0].mxu0 %v1959
        %v2195 = vpop.f32.mrb[0].mxu0
        %v2196 = vadd.f32 0.0, %v2195
        %v2197 = vpop.f32.mrb[0].mxu0
        %v2198 = vadd.f32 0.0, %v2197
        %2199 = vmatprep.mubr.f32.mxu0 0.0
        %2200 = vmatmul.mubr.f32.gmra.mrb[0].mxu0 %v1962
        %v2201 = vpop.f32.mrb[0].mxu0
        %v2202 = vadd.f32 0.0, %v2201
        %v2203 = vpop.f32.mrb[0].mxu0
        %v2204 = vadd.f32 0.0, %v2203
        %2205 = vmatprep.mubr.f32.mxu0 0.0
        %2206 = vmatmul.mubr.f32.gmra.mrb[0].mxu0 %v1965
        %v2207 = vpop.f32.mrb[0].mxu0
        %v2208 = vadd.f32 0.0, %v2207
        %v2209 = vpop.f32.mrb[0].mxu0
        %v2210 = vadd.f32 0.0, %v2209
        %2211 = vmatprep.mubr.f32.mxu0 0.0
        %2212 = vmatmul.mubr.f32.gmra.mrb[0].mxu0 %v1968
        %v2213 = vpop.f32.mrb[0].mxu0
        %v2214 = vadd.f32 0.0, %v2213
        %v2215 = vpop.f32.mrb[0].mxu0
        %v2216 = vadd.f32 0.0, %v2215
        %2217 = vmatprep.mubr.f32.mxu0 0.0
        %2218 = vmatmul.mubr.f32.gmra.mrb[0].mxu0 %v1971
        %v2219 = vpop.f32.mrb[0].mxu0
        %v2220 = vadd.f32 0.0, %v2219
        %v2221 = vpop.f32.mrb[0].mxu0
        %v2222 = vadd.f32 0.0, %v2221
        %2223 = vmatprep.mubr.f32.mxu0 0.0
        %2224 = vmatmul.mubr.f32.gmra.mrb[0].mxu0 %v1974
        %v2225 = vpop.f32.mrb[0].mxu0
        %v2226 = vadd.f32 0.0, %v2225
        %v2227 = vpop.f32.mrb[0].mxu0
        %v2228 = vadd.f32 0.0, %v2227
        %2229 = vmatprep.mubr.f32.mxu0 0.0
        %2230 = vmatmul.mubr.f32.gmra.mrb[0].mxu0 %v1977
        %v2231 = vpop.f32.mrb[0].mxu0
        %v2232 = vadd.f32 0.0, %v2231
        %v2233 = vpop.f32.mrb[0].mxu0
        %v2234 = vadd.f32 0.0, %v2233
        %2235 = vdwg.mxu0
        %v2236 = vmax.f32 %v2046, %v2058
        %v2237 = vmax.f32 %v2052, %v2064
        %v2238 = vmax.f32 %v2236, %v2070
        %v2239 = vmax.f32 %v2237, %v2076
        %v2240 = vmax.f32 %v2238, %v2082
        %v2241 = vmax.f32 %v2239, %v2088
        %v2242 = vmax.f32 %v2240, %v2094
        %v2243 = vmax.f32 %v2241, %v2100
        %v2244 = vmax.f32 %v2242, %v2106
        %v2245 = vmax.f32 %v2243, %v2112
        %v2246 = vmax.f32 %v2244, %v2118
        %v2247 = vmax.f32 %v2245, %v2124
        %v2248 = vmax.f32 %v2246, %v2130
        %v2249 = vmax.f32 %v2247, %v2136
        %v2250 = vmax.f32 %v2248, %v2142
        %v2251 = vmax.f32 %v2249, %v2148
        %v2252 = vmax.f32 %v2250, %v2154
        %v2253 = vmax.f32 %v2251, %v2160
        %v2254 = vmax.f32 %v2252, %v2166
        %v2255 = vmax.f32 %v2253, %v2172
        %v2256 = vmax.f32 %v2254, %v2178
        %v2257 = vmax.f32 %v2255, %v2184
        %v2258 = vmax.f32 %v2256, %v2190
        %v2259 = vmax.f32 %v2257, %v2196
        %v2260 = vmax.f32 %v2258, %v2202
        %v2261 = vmax.f32 %v2259, %v2208
        %v2262 = vmax.f32 %v2260, %v2214
        %v2263 = vmax.f32 %v2261, %v2220
        %v2264 = vmax.f32 %v2262, %v2226
        %v2265 = vmax.f32 %v2263, %v2232
        %v2266 = vmax.f32 %v2264, %v2265
        %v2267 = vrot.slane %v2266, 4
        %v2268 = vmax.f32 %v2266, %v2267
        %v2269 = vrot.slane %v2268, 2
        %v2270 = vmax.f32 %v2268, %v2269
        %v2271 = vrot.slane %v2270, 1
        %v2272 = vmax.f32 %v2270, %v2271
        %v2273 = vmax.f32 %v2048, %v2060
        %v2274 = vmax.f32 %v2054, %v2066
        %v2275 = vmax.f32 %v2273, %v2072
        %v2276 = vmax.f32 %v2274, %v2078
        %v2277 = vmax.f32 %v2275, %v2084
        %v2278 = vmax.f32 %v2276, %v2090
        %v2279 = vmax.f32 %v2277, %v2096
        %v2280 = vmax.f32 %v2278, %v2102
        %v2281 = vmax.f32 %v2279, %v2108
        %v2282 = vmax.f32 %v2280, %v2114
        %v2283 = vmax.f32 %v2281, %v2120
        %v2284 = vmax.f32 %v2282, %v2126
        %v2285 = vmax.f32 %v2283, %v2132
        %v2286 = vmax.f32 %v2284, %v2138
        %v2287 = vmax.f32 %v2285, %v2144
        %v2288 = vmax.f32 %v2286, %v2150
        %v2289 = vmax.f32 %v2287, %v2156
        %v2290 = vmax.f32 %v2288, %v2162
        %v2291 = vmax.f32 %v2289, %v2168
        %v2292 = vmax.f32 %v2290, %v2174
        %v2293 = vmax.f32 %v2291, %v2180
        %v2294 = vmax.f32 %v2292, %v2186
        %v2295 = vmax.f32 %v2293, %v2192
        %v2296 = vmax.f32 %v2294, %v2198
        %v2297 = vmax.f32 %v2295, %v2204
        %v2298 = vmax.f32 %v2296, %v2210
        %v2299 = vmax.f32 %v2297, %v2216
        %v2300 = vmax.f32 %v2298, %v2222
        %v2301 = vmax.f32 %v2299, %v2228
        %v2302 = vmax.f32 %v2300, %v2234
        %v2303 = vmax.f32 %v2301, %v2302
        %v2304 = vrot.slane %v2303, 4
        %v2305 = vmax.f32 %v2303, %v2304
        %v2306 = vrot.slane %v2305, 2
        %v2307 = vmax.f32 %v2305, %v2306
        %v2308 = vrot.slane %v2307, 1
        %v2309 = vmax.f32 %v2307, %v2308
        %v2310 = vsub.f32 %v2046, %v2272
        %v2311 = vsub.f32 %v2048, %v2309
        %v2312 = vsub.f32 %v2052, %v2272
        %v2313 = vsub.f32 %v2054, %v2309
        %v2314 = vsub.f32 %v2058, %v2272
        %v2315 = vsub.f32 %v2060, %v2309
        %v2316 = vsub.f32 %v2064, %v2272
        %v2317 = vsub.f32 %v2066, %v2309
        %v2318 = vsub.f32 %v2070, %v2272
        %v2319 = vsub.f32 %v2072, %v2309
        %v2320 = vsub.f32 %v2076, %v2272
        %v2321 = vsub.f32 %v2078, %v2309
        %v2322 = vsub.f32 %v2082, %v2272
        %v2323 = vsub.f32 %v2084, %v2309
        %v2324 = vsub.f32 %v2088, %v2272
        %v2325 = vsub.f32 %v2090, %v2309
        %v2326 = vsub.f32 %v2094, %v2272
        %v2327 = vsub.f32 %v2096, %v2309
        %v2328 = vsub.f32 %v2100, %v2272
        %v2329 = vsub.f32 %v2102, %v2309
        %v2330 = vsub.f32 %v2106, %v2272
        %v2331 = vsub.f32 %v2108, %v2309
        %v2332 = vsub.f32 %v2112, %v2272
        %v2333 = vsub.f32 %v2114, %v2309
        %v2334 = vsub.f32 %v2118, %v2272
        %v2335 = vsub.f32 %v2120, %v2309
        %v2336 = vsub.f32 %v2124, %v2272
        %v2337 = vsub.f32 %v2126, %v2309
        %v2338 = vsub.f32 %v2130, %v2272
        %v2339 = vsub.f32 %v2132, %v2309
        %v2340 = vsub.f32 %v2136, %v2272
        %v2341 = vsub.f32 %v2138, %v2309
        %v2342 = vsub.f32 %v2142, %v2272
        %v2343 = vsub.f32 %v2144, %v2309
        %v2344 = vsub.f32 %v2148, %v2272
        %v2345 = vsub.f32 %v2150, %v2309
        %v2346 = vsub.f32 %v2154, %v2272
        %v2347 = vsub.f32 %v2156, %v2309
        %v2348 = vsub.f32 %v2160, %v2272
        %v2349 = vsub.f32 %v2162, %v2309
        %v2350 = vsub.f32 %v2166, %v2272
        %v2351 = vsub.f32 %v2168, %v2309
        %v2352 = vsub.f32 %v2172, %v2272
        %v2353 = vsub.f32 %v2174, %v2309
        %v2354 = vsub.f32 %v2178, %v2272
        %v2355 = vsub.f32 %v2180, %v2309
        %v2356 = vsub.f32 %v2184, %v2272
        %v2357 = vsub.f32 %v2186, %v2309
        %v2358 = vsub.f32 %v2190, %v2272
        %v2359 = vsub.f32 %v2192, %v2309
        %v2360 = vsub.f32 %v2196, %v2272
        %v2361 = vsub.f32 %v2198, %v2309
        %v2362 = vsub.f32 %v2202, %v2272
        %v2363 = vsub.f32 %v2204, %v2309
        %v2364 = vsub.f32 %v2208, %v2272
        %v2365 = vsub.f32 %v2210, %v2309
        %v2366 = vsub.f32 %v2214, %v2272
        %v2367 = vsub.f32 %v2216, %v2309
        %v2368 = vsub.f32 %v2220, %v2272
        %v2369 = vsub.f32 %v2222, %v2309
        %v2370 = vsub.f32 %v2226, %v2272
        %v2371 = vsub.f32 %v2228, %v2309
        %v2372 = vsub.f32 %v2232, %v2272
        %v2373 = vsub.f32 %v2234, %v2309
        %v2374 = vmul.f32 %v2310, 1.442695
        %v2375 = vpow.pop %v2374
        %v2376 = vmul.f32 %v2311, 1.442695
        %v2377 = vpow.pop %v2376
        %v2378 = vmul.f32 %v2312, 1.442695
        %v2379 = vpow.pop %v2378
        %v2380 = vmul.f32 %v2313, 1.442695
        %v2381 = vpow.pop %v2380
        %v2382 = vmul.f32 %v2314, 1.442695
        %v2383 = vpow.pop %v2382
        %v2384 = vmul.f32 %v2315, 1.442695
        %v2385 = vpow.pop %v2384
        %v2386 = vmul.f32 %v2316, 1.442695
        %v2387 = vpow.pop %v2386
        %v2388 = vmul.f32 %v2317, 1.442695
        %v2389 = vpow.pop %v2388
        %v2390 = vmul.f32 %v2318, 1.442695
        %v2391 = vpow.pop %v2390
        %v2392 = vmul.f32 %v2319, 1.442695
        %v2393 = vpow.pop %v2392
        %v2394 = vmul.f32 %v2320, 1.442695
        %v2395 = vpow.pop %v2394
        %v2396 = vmul.f32 %v2321, 1.442695
        %v2397 = vpow.pop %v2396
        %v2398 = vmul.f32 %v2322, 1.442695
        %v2399 = vpow.pop %v2398
        %v2400 = vmul.f32 %v2323, 1.442695
        %v2401 = vpow.pop %v2400
        %v2402 = vmul.f32 %v2324, 1.442695
        %v2403 = vpow.pop %v2402
        %v2404 = vmul.f32 %v2325, 1.442695
        %v2405 = vpow.pop %v2404
        %v2406 = vmul.f32 %v2326, 1.442695
        %v2407 = vpow.pop %v2406
        %v2408 = vmul.f32 %v2327, 1.442695
        %v2409 = vpow.pop %v2408
        %v2410 = vmul.f32 %v2328, 1.442695
        %v2411 = vpow.pop %v2410
        %v2412 = vmul.f32 %v2329, 1.442695
        %v2413 = vpow.pop %v2412
        %v2414 = vmul.f32 %v2330, 1.442695
        %v2415 = vpow.pop %v2414
        %v2416 = vmul.f32 %v2331, 1.442695
        %v2417 = vpow.pop %v2416
        %v2418 = vmul.f32 %v2332, 1.442695
        %v2419 = vpow.pop %v2418
        %v2420 = vmul.f32 %v2333, 1.442695
        %v2421 = vpow.pop %v2420
        %v2422 = vmul.f32 %v2334, 1.442695
        %v2423 = vpow.pop %v2422
        %v2424 = vmul.f32 %v2335, 1.442695
        %v2425 = vpow.pop %v2424
        %v2426 = vmul.f32 %v2336, 1.442695
        %v2427 = vpow.pop %v2426
        %v2428 = vmul.f32 %v2337, 1.442695
        %v2429 = vpow.pop %v2428
        %v2430 = vmul.f32 %v2338, 1.442695
        %v2431 = vpow.pop %v2430
        %v2432 = vmul.f32 %v2339, 1.442695
        %v2433 = vpow.pop %v2432
        %v2434 = vmul.f32 %v2340, 1.442695
        %v2435 = vpow.pop %v2434
        %v2436 = vmul.f32 %v2341, 1.442695
        %v2437 = vpow.pop %v2436
        %v2438 = vmul.f32 %v2342, 1.442695
        %v2439 = vpow.pop %v2438
        %v2440 = vmul.f32 %v2343, 1.442695
        %v2441 = vpow.pop %v2440
        %v2442 = vmul.f32 %v2344, 1.442695
        %v2443 = vpow.pop %v2442
        %v2444 = vmul.f32 %v2345, 1.442695
        %v2445 = vpow.pop %v2444
        %v2446 = vmul.f32 %v2346, 1.442695
        %v2447 = vpow.pop %v2446
        %v2448 = vmul.f32 %v2347, 1.442695
        %v2449 = vpow.pop %v2448
        %v2450 = vmul.f32 %v2348, 1.442695
        %v2451 = vpow.pop %v2450
        %v2452 = vmul.f32 %v2349, 1.442695
        %v2453 = vpow.pop %v2452
        %v2454 = vmul.f32 %v2350, 1.442695
        %v2455 = vpow.pop %v2454
        %v2456 = vmul.f32 %v2351, 1.442695
        %v2457 = vpow.pop %v2456
        %v2458 = vmul.f32 %v2352, 1.442695
        %v2459 = vpow.pop %v2458
        %v2460 = vmul.f32 %v2353, 1.442695
        %v2461 = vpow.pop %v2460
        %v2462 = vmul.f32 %v2354, 1.442695
        %v2463 = vpow.pop %v2462
        %v2464 = vmul.f32 %v2355, 1.442695
        %v2465 = vpow.pop %v2464
        %v2466 = vmul.f32 %v2356, 1.442695
        %v2467 = vpow.pop %v2466
        %v2468 = vmul.f32 %v2357, 1.442695
        %v2469 = vpow.pop %v2468
        %v2470 = vmul.f32 %v2358, 1.442695
        %v2471 = vpow.pop %v2470
        %v2472 = vmul.f32 %v2359, 1.442695
        %v2473 = vpow.pop %v2472
        %v2474 = vmul.f32 %v2360, 1.442695
        %v2475 = vpow.pop %v2474
        %v2476 = vmul.f32 %v2361, 1.442695
        %v2477 = vpow.pop %v2476
        %v2478 = vmul.f32 %v2362, 1.442695
        %v2479 = vpow.pop %v2478
        %v2480 = vmul.f32 %v2363, 1.442695
        %v2481 = vpow.pop %v2480
        %v2482 = vmul.f32 %v2364, 1.442695
        %v2483 = vpow.pop %v2482
        %v2484 = vmul.f32 %v2365, 1.442695
        %v2485 = vpow.pop %v2484
        %v2486 = vmul.f32 %v2366, 1.442695
        %v2487 = vpow.pop %v2486
        %v2488 = vmul.f32 %v2367, 1.442695
        %v2489 = vpow.pop %v2488
        %v2490 = vmul.f32 %v2368, 1.442695
        %v2491 = vpow.pop %v2490
        %v2492 = vmul.f32 %v2369, 1.442695
        %v2493 = vpow.pop %v2492
        %v2494 = vmul.f32 %v2370, 1.442695
        %v2495 = vpow.pop %v2494
        %v2496 = vmul.f32 %v2371, 1.442695
        %v2497 = vpow.pop %v2496
        %v2498 = vmul.f32 %v2372, 1.442695
        %v2499 = vpow.pop %v2498
        %v2500 = vmul.f32 %v2373, 1.442695
        %v2501 = vpow.pop %v2500
        %v2502 = vadd.f32 %v2375, %v2379
        %v2503 = vadd.f32 %v2502, %v2383
        %v2504 = vadd.f32 %v2503, %v2387
        %v2505 = vadd.f32 %v2504, %v2391
        %v2506 = vadd.f32 %v2505, %v2395
        %v2507 = vadd.f32 %v2506, %v2399
        %v2508 = vadd.f32 %v2507, %v2403
        %v2509 = vadd.f32 %v2508, %v2407
        %v2510 = vadd.f32 %v2509, %v2411
        %v2511 = vadd.f32 %v2510, %v2415
        %v2512 = vadd.f32 %v2511, %v2419
        %v2513 = vadd.f32 %v2512, %v2423
        %v2514 = vadd.f32 %v2513, %v2427
        %v2515 = vadd.f32 %v2514, %v2431
        %v2516 = vadd.f32 %v2515, %v2435
        %v2517 = vadd.f32 %v2516, %v2439
        %v2518 = vadd.f32 %v2517, %v2443
        %v2519 = vadd.f32 %v2518, %v2447
        %v2520 = vadd.f32 %v2519, %v2451
        %v2521 = vadd.f32 %v2520, %v2455
        %v2522 = vadd.f32 %v2521, %v2459
        %v2523 = vadd.f32 %v2522, %v2463
        %v2524 = vadd.f32 %v2523, %v2467
        %v2525 = vadd.f32 %v2524, %v2471
        %v2526 = vadd.f32 %v2525, %v2475
        %v2527 = vadd.f32 %v2526, %v2479
        %v2528 = vadd.f32 %v2527, %v2483
        %v2529 = vadd.f32 %v2528, %v2487
        %v2530 = vadd.f32 %v2529, %v2491
        %v2531 = vadd.f32 %v2530, %v2495
        %v2532 = vadd.f32 %v2531, %v2499
        %v2533 = vrot.slane %v2532, 4
        %v2534 = vadd.f32 %v2532, %v2533
        %v2535 = vrot.slane %v2534, 2
        %v2536 = vadd.f32 %v2534, %v2535
        %v2537 = vrot.slane %v2536, 1
        %v2538 = vadd.f32 %v2536, %v2537
        %v2539 = vadd.f32 %v2377, %v2381
        %v2540 = vadd.f32 %v2539, %v2385
        %v2541 = vadd.f32 %v2540, %v2389
        %v2542 = vadd.f32 %v2541, %v2393
        %v2543 = vadd.f32 %v2542, %v2397
        %v2544 = vadd.f32 %v2543, %v2401
        %v2545 = vadd.f32 %v2544, %v2405
        %v2546 = vadd.f32 %v2545, %v2409
        %v2547 = vadd.f32 %v2546, %v2413
        %v2548 = vadd.f32 %v2547, %v2417
        %v2549 = vadd.f32 %v2548, %v2421
        %v2550 = vadd.f32 %v2549, %v2425
        %v2551 = vadd.f32 %v2550, %v2429
        %v2552 = vadd.f32 %v2551, %v2433
        %v2553 = vadd.f32 %v2552, %v2437
        %v2554 = vadd.f32 %v2553, %v2441
        %v2555 = vadd.f32 %v2554, %v2445
        %v2556 = vadd.f32 %v2555, %v2449
        %v2557 = vadd.f32 %v2556, %v2453
        %v2558 = vadd.f32 %v2557, %v2457
        %v2559 = vadd.f32 %v2558, %v2461
        %v2560 = vadd.f32 %v2559, %v2465
        %v2561 = vadd.f32 %v2560, %v2469
        %v2562 = vadd.f32 %v2561, %v2473
        %v2563 = vadd.f32 %v2562, %v2477
        %v2564 = vadd.f32 %v2563, %v2481
        %v2565 = vadd.f32 %v2564, %v2485
        %v2566 = vadd.f32 %v2565, %v2489
        %v2567 = vadd.f32 %v2566, %v2493
        %v2568 = vadd.f32 %v2567, %v2497
        %v2569 = vadd.f32 %v2568, %v2501
        %v2570 = vrot.slane %v2569, 4
        %v2571 = vadd.f32 %v2569, %v2570
        %v2572 = vrot.slane %v2571, 2
        %v2573 = vadd.f32 %v2571, %v2572
        %v2574 = vrot.slane %v2573, 1
        %v2575 = vadd.f32 %v2573, %v2574
        %v2576 = vrcp.pop %v2538
        %v2577 = vrcp.pop %v2575
        %v2578 = vmul.f32 %v2375, %v2576
        %v2579 = vmul.f32 %v2377, %v2577
        %v2580 = vmul.f32 %v2379, %v2576
        %v2581 = vmul.f32 %v2381, %v2577
        %v2582 = vmul.f32 %v2383, %v2576
        %v2583 = vmul.f32 %v2385, %v2577
        %v2584 = vmul.f32 %v2387, %v2576
        %v2585 = vmul.f32 %v2389, %v2577
        %v2586 = vmul.f32 %v2391, %v2576
        %v2587 = vmul.f32 %v2393, %v2577
        %v2588 = vmul.f32 %v2395, %v2576
        %v2589 = vmul.f32 %v2397, %v2577
        %v2590 = vmul.f32 %v2399, %v2576
        %v2591 = vmul.f32 %v2401, %v2577
        %v2592 = vmul.f32 %v2403, %v2576
        %v2593 = vmul.f32 %v2405, %v2577
        %v2594 = vmul.f32 %v2407, %v2576
        %v2595 = vmul.f32 %v2409, %v2577
        %v2596 = vmul.f32 %v2411, %v2576
        %v2597 = vmul.f32 %v2413, %v2577
        %v2598 = vmul.f32 %v2415, %v2576
        %v2599 = vmul.f32 %v2417, %v2577
        %v2600 = vmul.f32 %v2419, %v2576
        %v2601 = vmul.f32 %v2421, %v2577
        %v2602 = vmul.f32 %v2423, %v2576
        %v2603 = vmul.f32 %v2425, %v2577
        %v2604 = vmul.f32 %v2427, %v2576
        %v2605 = vmul.f32 %v2429, %v2577
        %v2606 = vmul.f32 %v2431, %v2576
        %v2607 = vmul.f32 %v2433, %v2577
        %v2608 = vmul.f32 %v2435, %v2576
        %v2609 = vmul.f32 %v2437, %v2577
        %v2610 = vmul.f32 %v2439, %v2576
        %v2611 = vmul.f32 %v2441, %v2577
        %v2612 = vmul.f32 %v2443, %v2576
        %v2613 = vmul.f32 %v2445, %v2577
        %v2614 = vmul.f32 %v2447, %v2576
        %v2615 = vmul.f32 %v2449, %v2577
        %v2616 = vmul.f32 %v2451, %v2576
        %v2617 = vmul.f32 %v2453, %v2577
        %v2618 = vmul.f32 %v2455, %v2576
        %v2619 = vmul.f32 %v2457, %v2577
        %v2620 = vmul.f32 %v2459, %v2576
        %v2621 = vmul.f32 %v2461, %v2577
        %v2622 = vmul.f32 %v2463, %v2576
        %v2623 = vmul.f32 %v2465, %v2577
        %v2624 = vmul.f32 %v2467, %v2576
        %v2625 = vmul.f32 %v2469, %v2577
        %v2626 = vmul.f32 %v2471, %v2576
        %v2627 = vmul.f32 %v2473, %v2577
        %v2628 = vmul.f32 %v2475, %v2576
        %v2629 = vmul.f32 %v2477, %v2577
        %v2630 = vmul.f32 %v2479, %v2576
        %v2631 = vmul.f32 %v2481, %v2577
        %v2632 = vmul.f32 %v2483, %v2576
        %v2633 = vmul.f32 %v2485, %v2577
        %v2634 = vmul.f32 %v2487, %v2576
        %v2635 = vmul.f32 %v2489, %v2577
        %v2636 = vmul.f32 %v2491, %v2576
        %v2637 = vmul.f32 %v2493, %v2577
        %v2638 = vmul.f32 %v2495, %v2576
        %v2639 = vmul.f32 %v2497, %v2577
        %v2640 = vmul.f32 %v2499, %v2576
        %v2641 = vmul.f32 %v2501, %v2577
        %2642 = vmatprep.subr.mxu0 %v2579
        %2643 = vmatpush1.msra.mxu0 %v2578
        %2644 = vmatprep.subr.mxu0 %v2581
        %2645 = vmatpush1.msra.mxu0 %v2580
        %2646 = vmatprep.subr.mxu0 %v2583
        %2647 = vmatpush1.msra.mxu0 %v2582
        %2648 = vmatprep.subr.mxu0 %v2585
        %2649 = vmatpush1.msra.mxu0 %v2584
        %2650 = vmatprep.subr.mxu0 %v2587
        %2651 = vmatpush1.msra.mxu0 %v2586
        %2652 = vmatprep.subr.mxu0 %v2589
        %2653 = vmatpush1.msra.mxu0 %v2588
        %2654 = vmatprep.subr.mxu0 %v2591
        %2655 = vmatpush1.msra.mxu0 %v2590
        %2656 = vmatprep.subr.mxu0 %v2593
        %2657 = vmatpush1.msra.mxu0 %v2592
        %2658 = vmatprep.subr.mxu0 %v2595
        %2659 = vmatpush1.msra.mxu0 %v2594
        %2660 = vmatprep.subr.mxu0 %v2597
        %2661 = vmatpush1.msra.mxu0 %v2596
        %2662 = vmatprep.subr.mxu0 %v2599
        %2663 = vmatpush1.msra.mxu0 %v2598
        %2664 = vmatprep.subr.mxu0 %v2601
        %2665 = vmatpush1.msra.mxu0 %v2600
        %2666 = vmatprep.subr.mxu0 %v2603
        %2667 = vmatpush1.msra.mxu0 %v2602
        %2668 = vmatprep.subr.mxu0 %v2605
        %2669 = vmatpush1.msra.mxu0 %v2604
        %2670 = vmatprep.subr.mxu0 %v2607
        %2671 = vmatpush1.msra.mxu0 %v2606
        %2672 = vmatprep.subr.mxu0 %v2609
        %2673 = vmatpush1.msra.mxu0 %v2608
        %2674 = vmatprep.subr.mxu0 %v2611
        %2675 = vmatpush1.msra.mxu0 %v2610
        %2676 = vmatprep.subr.mxu0 %v2613
        %2677 = vmatpush1.msra.mxu0 %v2612
        %2678 = vmatprep.subr.mxu0 %v2615
        %2679 = vmatpush1.msra.mxu0 %v2614
        %2680 = vmatprep.subr.mxu0 %v2617
        %2681 = vmatpush1.msra.mxu0 %v2616
        %2682 = vmatprep.subr.mxu0 %v2619
        %2683 = vmatpush1.msra.mxu0 %v2618
        %2684 = vmatprep.subr.mxu0 %v2621
        %2685 = vmatpush1.msra.mxu0 %v2620
        %2686 = vmatprep.subr.mxu0 %v2623
        %2687 = vmatpush1.msra.mxu0 %v2622
        %2688 = vmatprep.subr.mxu0 %v2625
        %2689 = vmatpush1.msra.mxu0 %v2624
        %2690 = vmatprep.subr.mxu0 %v2627
        %2691 = vmatpush1.msra.mxu0 %v2626
        %2692 = vmatprep.subr.mxu0 %v2629
        %2693 = vmatpush1.msra.mxu0 %v2628
        %2694 = vmatprep.subr.mxu0 %v2631
        %2695 = vmatpush1.msra.mxu0 %v2630
        %2696 = vmatprep.subr.mxu0 %v2633
        %2697 = vmatpush1.msra.mxu0 %v2632
        %2698 = vmatprep.subr.mxu0 %v2635
        %2699 = vmatpush1.msra.mxu0 %v2634
        %2700 = vmatprep.subr.mxu0 %v2637
        %2701 = vmatpush1.msra.mxu0 %v2636
        %2702 = vmatprep.subr.mxu0 %v2639
        %2703 = vmatpush1.msra.mxu0 %v2638
        %2704 = vmatprep.subr.mxu0 %v2641
        %2705 = vmatpush1.msra.mxu0 %v2640
        %2706 = vmatprep.mubr.f32.mxu0 %v922
        %2707 = vmatmul.mubr.f32.gmra.mrb[0].mxu0 %v920
        %v2708 = vpop.f32.mrb[0].mxu0
        %v2709 = vadd.f32 0.0, %v2708
        %v2710 = vpop.f32.mrb[0].mxu0
        %v2711 = vadd.f32 0.0, %v2710
        %2712 = vdwg.mxu0
        %v2713 = vld [vmem:[%s11] sm:$0xf]
        %v2714 = vld [vmem:[%s12] sm:$0xf]
        %2716 = vset.pattern.permute.xlu0 0
        %2717 = vperm.xlu0 %2716, %v2714
        %v2718 = vpop.permute.xlu0 %2717
        %vm2720 = vcmask 130048
        %v2722 = vsel %vm2720, %v2713, 0
        %2724 = vmatprep.subr.mxu0 %v1817
        %2725 = vmatpush1.msra.mxu0 %v1815
        %2726 = vmatprep.subr.mxu0 %v2711
        %2727 = vmatpush1.msra.mxu0 %v2709
        %2728 = vmatprep.subr.mxu0 0.0
        %2729 = vmatpush1.msra.mxu0 0.0
        %2730 = vmatprep.subr.mxu0 0.0
        %2731 = vmatpush1.msra.mxu0 0.0
        %2732 = vmatprep.subr.mxu0 0.0
        %2733 = vmatpush1.msra.mxu0 0.0
        %2734 = vmatprep.subr.mxu0 0.0
        %2735 = vmatpush1.msra.mxu0 0.0
        %2736 = vmatprep.subr.mxu0 0.0
        %2737 = vmatpush1.msra.mxu0 0.0
        %2738 = vmatprep.subr.mxu0 0.0
        %2739 = vmatpush1.msra.mxu0 0.0
        %2740 = vmatprep.subr.mxu0 0.0
        %2741 = vmatpush1.msra.mxu0 0.0
        %2742 = vmatprep.subr.mxu0 0.0
        %2743 = vmatpush1.msra.mxu0 0.0
        %2744 = vmatprep.subr.mxu0 0.0
        %2745 = vmatpush1.msra.mxu0 0.0
        %2746 = vmatprep.subr.mxu0 0.0
        %2747 = vmatpush1.msra.mxu0 0.0
        %2748 = vmatprep.subr.mxu0 0.0
        %2749 = vmatpush1.msra.mxu0 0.0
        %2750 = vmatprep.subr.mxu0 0.0
        %2751 = vmatpush1.msra.mxu0 0.0
        %2752 = vmatprep.subr.mxu0 0.0
        %2753 = vmatpush1.msra.mxu0 0.0
        %2754 = vmatprep.subr.mxu0 0.0
        %2755 = vmatpush1.msra.mxu0 0.0
        %2756 = vmatprep.subr.mxu0 0.0
        %2757 = vmatpush1.msra.mxu0 0.0
        %2758 = vmatprep.subr.mxu0 0.0
        %2759 = vmatpush1.msra.mxu0 0.0
        %2760 = vmatprep.subr.mxu0 0.0
        %2761 = vmatpush1.msra.mxu0 0.0
        %2762 = vmatprep.subr.mxu0 0.0
        %2763 = vmatpush1.msra.mxu0 0.0
        %2764 = vmatprep.subr.mxu0 0.0
        %2765 = vmatpush1.msra.mxu0 0.0
        %2766 = vmatprep.subr.mxu0 0.0
        %2767 = vmatpush1.msra.mxu0 0.0
        %2768 = vmatprep.subr.mxu0 0.0
        %2769 = vmatpush1.msra.mxu0 0.0
        %2770 = vmatprep.subr.mxu0 0.0
        %2771 = vmatpush1.msra.mxu0 0.0
        %2772 = vmatprep.subr.mxu0 0.0
        %2773 = vmatpush1.msra.mxu0 0.0
        %2774 = vmatprep.subr.mxu0 0.0
        %2775 = vmatpush1.msra.mxu0 0.0
        %2776 = vmatprep.subr.mxu0 0.0
        %2777 = vmatpush1.msra.mxu0 0.0
        %2778 = vmatprep.subr.mxu0 0.0
        %2779 = vmatpush1.msra.mxu0 0.0
        %2780 = vmatprep.subr.mxu0 0.0
        %2781 = vmatpush1.msra.mxu0 0.0
        %2782 = vmatprep.subr.mxu0 0.0
        %2783 = vmatpush1.msra.mxu0 0.0
        %2784 = vmatprep.subr.mxu0 0.0
        %2785 = vmatpush1.msra.mxu0 0.0
        %2786 = vmatprep.subr.mxu0 0.0
        %2787 = vmatpush1.msra.mxu0 0.0
        %2788 = vmatprep.mubr.f32.mxu0 0.0
        %2789 = vmatmul.mubr.f32.gmra.mrb[0].mxu0 %v2722
        %v2790 = vpop.f32.mrb[0].mxu0
        %v2791 = vadd.f32 %v2718, %v2790
        %v2792 = vpop.f32.mrb[0].mxu0
        %v2793 = vadd.f32 %v2718, %v2792
        %2794 = vdwg.mxu0
        %v2795 = vld [vmem:[%s13] sm:$0xff]
        %v2796 = vld [vmem:[%s13 + $0x8] sm:$0xff]
        %v2797 = vld [vmem:[%s13 + $0x10] sm:$0xff]
        %v2798 = vld [vmem:[%s13 + $0x18] sm:$0xff]
        %v2799 = vld [vmem:[%s14] sm:$0xff]
        %v2800 = vld [vmem:[%s14 + $0x8] sm:$0xff]
        %v2801 = vld [vmem:[%s14 + $0x10] sm:$0xff]
        %v2802 = vld [vmem:[%s14 + $0x18] sm:$0xff]
        %2804 = vset.pattern.permute.xlu0 0
        %2805 = vperm.xlu0 %2804, %v2799
        %v2806 = vpop.permute.xlu0 %2805
        %2809 = vset.pattern.permute.xlu0 0
        %2810 = vperm.xlu0 %2809, %v2800
        %v2811 = vpop.permute.xlu0 %2810
        %2814 = vset.pattern.permute.xlu0 0
        %2815 = vperm.xlu0 %2814, %v2801
        %v2816 = vpop.permute.xlu0 %2815
        %2819 = vset.pattern.permute.xlu0 0
        %2820 = vperm.xlu0 %2819, %v2802
        %v2821 = vpop.permute.xlu0 %2820
        %v2824 = vcombine.high %v649, %v649
        %v2826 = vsel %vm658, %v2795, 0
        %v2829 = vsel %vm658, %v2796, 0
        %v2832 = vsel %vm658, %v2797, 0
        %v2835 = vsel %vm658, %v2798, 0
        %v2837 = vsel %vm551, %v649, 0
        %v2839 = vsel %vm551, %v2824, 0
        %2841 = vmatprep.subr.mxu0 %v2839
        %2842 = vmatpush1.msra.mxu0 %v2837
        %2843 = vmatprep.subr.mxu0 0.0
        %2844 = vmatpush1.msra.mxu0 0.0
        %2845 = vmatprep.subr.mxu0 0.0
        %2846 = vmatpush1.msra.mxu0 0.0
        %2847 = vmatprep.subr.mxu0 0.0
        %2848 = vmatpush1.msra.mxu0 0.0
        %2849 = vmatprep.subr.mxu0 0.0
        %2850 = vmatpush1.msra.mxu0 0.0
        %2851 = vmatprep.subr.mxu0 0.0
        %2852 = vmatpush1.msra.mxu0 0.0
        %2853 = vmatprep.subr.mxu0 0.0
        %2854 = vmatpush1.msra.mxu0 0.0
        %2855 = vmatprep.subr.mxu0 0.0
        %2856 = vmatpush1.msra.mxu0 0.0
        %2857 = vmatprep.subr.mxu0 0.0
        %2858 = vmatpush1.msra.mxu0 0.0
        %2859 = vmatprep.subr.mxu0 0.0
        %2860 = vmatpush1.msra.mxu0 0.0
        %2861 = vmatprep.subr.mxu0 0.0
        %2862 = vmatpush1.msra.mxu0 0.0
        %2863 = vmatprep.subr.mxu0 0.0
        %2864 = vmatpush1.msra.mxu0 0.0
        %2865 = vmatprep.subr.mxu0 0.0
        %2866 = vmatpush1.msra.mxu0 0.0
        %2867 = vmatprep.subr.mxu0 0.0
        %2868 = vmatpush1.msra.mxu0 0.0
        %2869 = vmatprep.subr.mxu0 0.0
        %2870 = vmatpush1.msra.mxu0 0.0
        %2871 = vmatprep.subr.mxu0 0.0
        %2872 = vmatpush1.msra.mxu0 0.0
        %2873 = vmatprep.subr.mxu0 0.0
        %2874 = vmatpush1.msra.mxu0 0.0
        %2875 = vmatprep.subr.mxu0 0.0
        %2876 = vmatpush1.msra.mxu0 0.0
        %2877 = vmatprep.subr.mxu0 0.0
        %2878 = vmatpush1.msra.mxu0 0.0
        %2879 = vmatprep.subr.mxu0 0.0
        %2880 = vmatpush1.msra.mxu0 0.0
        %2881 = vmatprep.subr.mxu0 0.0
        %2882 = vmatpush1.msra.mxu0 0.0
        %2883 = vmatprep.subr.mxu0 0.0
        %2884 = vmatpush1.msra.mxu0 0.0
        %2885 = vmatprep.subr.mxu0 0.0
        %2886 = vmatpush1.msra.mxu0 0.0
        %2887 = vmatprep.subr.mxu0 0.0
        %2888 = vmatpush1.msra.mxu0 0.0
        %2889 = vmatprep.subr.mxu0 0.0
        %2890 = vmatpush1.msra.mxu0 0.0
        %2891 = vmatprep.subr.mxu0 0.0
        %2892 = vmatpush1.msra.mxu0 0.0
        %2893 = vmatprep.subr.mxu0 0.0
        %2894 = vmatpush1.msra.mxu0 0.0
        %2895 = vmatprep.subr.mxu0 0.0
        %2896 = vmatpush1.msra.mxu0 0.0
        %2897 = vmatprep.subr.mxu0 0.0
        %2898 = vmatpush1.msra.mxu0 0.0
        %2899 = vmatprep.subr.mxu0 0.0
        %2900 = vmatpush1.msra.mxu0 0.0
        %2901 = vmatprep.subr.mxu0 0.0
        %2902 = vmatpush1.msra.mxu0 0.0
        %2903 = vmatprep.subr.mxu0 0.0
        %2904 = vmatpush1.msra.mxu0 0.0
        %2905 = vmatprep.mubr.f32.mxu0 0.0
        %2906 = vmatmul.mubr.f32.gmra.mrb[0].mxu0 %v2826
        %v2907 = vpop.f32.mrb[0].mxu0
        %v2908 = vadd.f32 %v2806, %v2907
        %v2909 = vpop.f32.mrb[0].mxu0
        %v2910 = vadd.f32 %v2806, %v2909
        %2911 = vmatprep.mubr.f32.mxu0 0.0
        %2912 = vmatmul.mubr.f32.gmra.mrb[0].mxu0 %v2829
        %v2913 = vpop.f32.mrb[0].mxu0
        %v2914 = vadd.f32 %v2811, %v2913
        %v2915 = vpop.f32.mrb[0].mxu0
        %v2916 = vadd.f32 %v2811, %v2915
        %2917 = vmatprep.mubr.f32.mxu0 0.0
        %2918 = vmatmul.mubr.f32.gmra.mrb[0].mxu0 %v2832
        %v2919 = vpop.f32.mrb[0].mxu0
        %v2920 = vadd.f32 %v2816, %v2919
        %v2921 = vpop.f32.mrb[0].mxu0
        %v2922 = vadd.f32 %v2816, %v2921
        %2923 = vmatprep.mubr.f32.mxu0 0.0
        %2924 = vmatmul.mubr.f32.gmra.mrb[0].mxu0 %v2835
        %v2925 = vpop.f32.mrb[0].mxu0
        %v2926 = vadd.f32 %v2821, %v2925
        %v2927 = vpop.f32.mrb[0].mxu0
        %v2928 = vadd.f32 %v2821, %v2927
        %2929 = vdwg.mxu0
        %v2930 = vmax.f32 %v2908, 0.0
        %v2931 = vmax.f32 %v2910, 0.0
        %v2932 = vmax.f32 %v2914, 0.0
        %v2933 = vmax.f32 %v2916, 0.0
        %v2934 = vmax.f32 %v2920, 0.0
        %v2935 = vmax.f32 %v2922, 0.0
        %v2936 = vmax.f32 %v2926, 0.0
        %v2937 = vmax.f32 %v2928, 0.0
        %v2938 = vld [vmem:[%s15] sm:$0xf]
        %v2939 = vld [vmem:[%s16] sm:$0xf]
        %2941 = vset.pattern.permute.xlu0 0
        %2942 = vperm.xlu0 %2941, %v2939
        %v2943 = vpop.permute.xlu0 %2942
        %vm2945 = vcmask 261120
        %v2947 = vsel %vm2945, %v2938, 0
        %2949 = vmatprep.subr.mxu0 %v2931
        %2950 = vmatpush1.msra.mxu0 %v2930
        %2951 = vmatprep.subr.mxu0 %v2933
        %2952 = vmatpush1.msra.mxu0 %v2932
        %2953 = vmatprep.subr.mxu0 %v2935
        %2954 = vmatpush1.msra.mxu0 %v2934
        %2955 = vmatprep.subr.mxu0 %v2937
        %2956 = vmatpush1.msra.mxu0 %v2936
        %2957 = vmatprep.subr.mxu0 0.0
        %2958 = vmatpush1.msra.mxu0 0.0
        %2959 = vmatprep.subr.mxu0 0.0
        %2960 = vmatpush1.msra.mxu0 0.0
        %2961 = vmatprep.subr.mxu0 0.0
        %2962 = vmatpush1.msra.mxu0 0.0
        %2963 = vmatprep.subr.mxu0 0.0
        %2964 = vmatpush1.msra.mxu0 0.0
        %2965 = vmatprep.subr.mxu0 0.0
        %2966 = vmatpush1.msra.mxu0 0.0
        %2967 = vmatprep.subr.mxu0 0.0
        %2968 = vmatpush1.msra.mxu0 0.0
        %2969 = vmatprep.subr.mxu0 0.0
        %2970 = vmatpush1.msra.mxu0 0.0
        %2971 = vmatprep.subr.mxu0 0.0
        %2972 = vmatpush1.msra.mxu0 0.0
        %2973 = vmatprep.subr.mxu0 0.0
        %2974 = vmatpush1.msra.mxu0 0.0
        %2975 = vmatprep.subr.mxu0 0.0
        %2976 = vmatpush1.msra.mxu0 0.0
        %2977 = vmatprep.subr.mxu0 0.0
        %2978 = vmatpush1.msra.mxu0 0.0
        %2979 = vmatprep.subr.mxu0 0.0
        %2980 = vmatpush1.msra.mxu0 0.0
        %2981 = vmatprep.subr.mxu0 0.0
        %2982 = vmatpush1.msra.mxu0 0.0
        %2983 = vmatprep.subr.mxu0 0.0
        %2984 = vmatpush1.msra.mxu0 0.0
        %2985 = vmatprep.subr.mxu0 0.0
        %2986 = vmatpush1.msra.mxu0 0.0
        %2987 = vmatprep.subr.mxu0 0.0
        %2988 = vmatpush1.msra.mxu0 0.0
        %2989 = vmatprep.subr.mxu0 0.0
        %2990 = vmatpush1.msra.mxu0 0.0
        %2991 = vmatprep.subr.mxu0 0.0
        %2992 = vmatpush1.msra.mxu0 0.0
        %2993 = vmatprep.subr.mxu0 0.0
        %2994 = vmatpush1.msra.mxu0 0.0
        %2995 = vmatprep.subr.mxu0 0.0
        %2996 = vmatpush1.msra.mxu0 0.0
        %2997 = vmatprep.subr.mxu0 0.0
        %2998 = vmatpush1.msra.mxu0 0.0
        %2999 = vmatprep.subr.mxu0 0.0
        %3000 = vmatpush1.msra.mxu0 0.0
        %3001 = vmatprep.subr.mxu0 0.0
        %3002 = vmatpush1.msra.mxu0 0.0
        %3003 = vmatprep.subr.mxu0 0.0
        %3004 = vmatpush1.msra.mxu0 0.0
        %3005 = vmatprep.subr.mxu0 0.0
        %3006 = vmatpush1.msra.mxu0 0.0
        %3007 = vmatprep.subr.mxu0 0.0
        %3008 = vmatpush1.msra.mxu0 0.0
        %3009 = vmatprep.subr.mxu0 0.0
        %3010 = vmatpush1.msra.mxu0 0.0
        %3011 = vmatprep.subr.mxu0 0.0
        %3012 = vmatpush1.msra.mxu0 0.0
        %3013 = vmatprep.mubr.f32.mxu0 0.0
        %3014 = vmatmul.mubr.f32.gmra.mrb[0].mxu0 %v2947
        %v3015 = vpop.f32.mrb[0].mxu0
        %v3016 = vadd.f32 %v2943, %v3015
        %v3017 = vpop.f32.mrb[0].mxu0
        %v3018 = vadd.f32 %v2943, %v3017
        %3019 = vdwg.mxu0
        %v3022 = vcombine.low %v2791, %v2793
        %v3024 = vadd.f32 %v547, %v3022
        %v3027 = vcombine.low %v3016, %v3018
        %v3029 = vadd.f32 %v3024, %v3027
        %3030 = vst [vmem:[%s541] sm:$0xff] %v3029
        %s3031 = sand.u32 %s401, 1
        %s3032 = scalar_lea.sflag [#allocation3], %s3031
        %s3033 = sand.u32 %s401, 1
        %s3034 = smul.addr %s3033, 8
        %s3035 = scalar_lea.vmem [#allocation2], %s3034
        // Predicated region
        $region89: #{tpu_custom_call.1} parent=87 // pred_check
          %p3036 = pneg %p411
        $region90: #{tpu_custom_call.1} parent=87 // pred_check_branch
          %3038 = sbr.rel (%p3036) target = $region92
        $region91: #{tpu_custom_call.1} parent=87 // pred_region
          %s3040 = ssub.s32 128, 128
          %3041 = vsyncadd %s3032, %s3040
          %s3042 = smul.addr %s31, 2
          %s3043 = smul.addr %s3042, 64
          %s3044 = scalar_lea.hbm %s17, %s3043
          %s3046 = sshll.u32 %s3035, 4
          %s3047 = int_to_ptr.vmem [resolvable:$true] %s3046
          %3049 = dma.vmem_to_hbm [thread:$0]  %s3047, 128, %s3044, %s3032
        $region92: #{tpu_custom_call.1} parent=87 // pred_fallthru
          _
      $region88: #{tpu_custom_call.1} parent=5 // pred_fallthru
        _
      %p3050 = scmp.le.s32.totalorder 2, %s26
      // Predicated region
      $region93: #{tpu_custom_call.1} parent=5 // pred_check
        %p3051 = pneg %p3050
      $region94: #{tpu_custom_call.1} parent=5 // pred_check_branch
        %3053 = sbr.rel (%p3051) target = $region96
      $region95: #{tpu_custom_call.1} parent=5 // pred_region
        %s3054 = ssub.s32 %s26, 2
        // Predicated region
        $region97: #{tpu_custom_call.1} parent=95 // pred_check
          %p3055 = pneg %p417
        $region98: #{tpu_custom_call.1} parent=95 // pred_check_branch
          %3057 = sbr.rel (%p3055) target = $region100
        $region99: #{tpu_custom_call.1} parent=95 // pred_region
          %s3058 = sand.u32 %s402, 1
          %s3059 = scalar_lea.sflag [#allocation3], %s3058
          %s3060 = sand.u32 %s402, 1
          %s3061 = smul.addr %s3060, 8
          %s3062 = scalar_lea.vmem [#allocation2], %s3061
          %3063 = dma.done %s3059, 128
        $region100: #{tpu_custom_call.1} parent=95 // pred_fallthru
          _
      $region96: #{tpu_custom_call.1} parent=5 // pred_fallthru
        _
    $region6: #{tpu_custom_call.1} parent=1 // loop_footer
      %s30 = sadd.s32 1, %s26
    $region7: #{tpu_custom_call.1} parent=1 // loop_footer_branch
      %25 = sbr.rel target = $region3
    $region8: #{tpu_custom_call.1} parent=1 // loop_exit
      _
    %3064 = vsyncpa [#allocation3], 1
    %s3065 = scalar_lea.sflag [#allocation3], 1
    %3066 = vsyncpa %s3065, 1

</llo_original>
